<compile_context>
chip_gen: v7x
topology: tpu7x:2x2x1
jax: 0.10.0
libtpu: 0.0.40
codegen_flags: <defaults>
</compile_context>

<pallas_src>
import functools

import jax
import jax.numpy as jnp
from jax import lax
from jax.experimental import pallas as pl
from jax.experimental.pallas import tpu as pltpu

# --- deit_tiny_patch16 config ---
PATCH = 16
EMBED = 192
HEADS = 3
HEAD_DIM = EMBED // HEADS
MLP_HIDDEN = EMBED * 4
DEPTH = 12
LN_EPS = 1e-6


# ---------------- in-kernel helpers ----------------
def _gelu(x):
    # TODO(synk): torch nn.GELU() defaults to exact erf; tanh approximation kept for Mosaic-safe lowering.
    c = jnp.float32(0.7978845608028654)  # sqrt(2/pi)
    return 0.5 * x * (1.0 + jnp.tanh(c * (x + 0.044715 * x * x * x)))


def _layernorm(x, gamma, beta):
    mu = jnp.mean(x, axis=-1, keepdims=True)
    var = jnp.mean((x - mu) ** 2, axis=-1, keepdims=True)
    return (x - mu) * lax.rsqrt(var + LN_EPS) * gamma + beta


def _bf16(x):
    return x.astype(jnp.bfloat16)


# ---------------- fused ViT kernel ----------------
def _make_vit_kernel(Bs, P, N, Np, D, NC):
    BNp = Bs * Np
    CKK = 3 * PATCH * PATCH

    def kernel(xp_hbm, pw_ref, base_ref,
               ln1g_ref, ln1b_ref, qkvw_ref, qkvb_ref, projw_ref, projb_ref,
               ln2g_ref, ln2b_ref, fc1w_ref, fc1b_ref, fc2w_ref, fc2b_ref,
               lnfg_ref, lnfb_ref, hw_ref, hb_ref,
               logits_ref, tok_ref):
        s_id = pl.program_id(0)     # batch shard (one per TensorCore on v7x)
        d = pl.program_id(1)        # transformer depth

        # ---- patch embed + cls/pos (first depth step only) ----
        # xp rows are pre-padded so that row 0 (cls slot) and rows >= N are zero; cls token,
        # pos embed and the conv bias are folded into base_ref -> single full-slab store.
        @pl.when(d == 0)
        def _embed():
            def scoped(xbuf, sem):
                cp = pltpu.make_async_copy(xp_hbm.at[s_id], xbuf, sem)
                cp.start()
                cp.wait()
                pe = jnp.dot(xbuf[...], pw_ref[...],
                             preferred_element_type=jnp.float32)            # (Bs*Np, D)
                tok_ref[...] = pe.reshape(Bs, Np, D) + base_ref[...][None]

            pl.run_scoped(scoped,
                          pltpu.VMEM((BNp, CKK), jnp.bfloat16),
                          pltpu.SemaphoreType.DMA(()))

        # ---- transformer block d (pre-norm) on VMEM-resident tokens ----
        x = tok_ref[...].reshape(BNp, D)          # f32; Np % 8 == 0 -> tile-aligned reshape
        xn = _layernorm(x, ln1g_ref[0], ln1b_ref[0])
        qkv = jnp.dot(_bf16(xn), qkvw_ref[0],
                      preferred_element_type=jnp.float32) + qkvb_ref[0]       # (BNp, 3D)
        qkv3 = qkv.reshape(Bs, Np, 3 * D)

        scale = jnp.float32(HEAD_DIM) ** -0.5
        if Np > N:  # padded key positions must never receive attention weight
            key_valid = lax.broadcasted_iota(jnp.int32, (1, 1, Np), 2) < N

        proj_w = projw_ref[0]                      # (D, D) bf16
        attn = jnp.zeros((BNp, D), jnp.float32)
        for h in range(HEADS):
            q = qkv3[:, :, h * HEAD_DIM:(h + 1) * HEAD_DIM] * scale
            k = qkv3[:, :, D + h * HEAD_DIM:D + (h + 1) * HEAD_DIM]
            v = qkv3[:, :, 2 * D + h * HEAD_DIM:2 * D + (h + 1) * HEAD_DIM]
            s_h = jnp.einsum('bqd,bkd->bqk', _bf16(q), _bf16(k),
                             preferred_element_type=jnp.float32)              # (Bs, Np, Np)
            if Np > N:
                s_h = jnp.where(key_valid, s_h, jnp.float32(-1e30))
            s_h = s_h - jnp.max(s_h, axis=-1, keepdims=True)
            p = jnp.exp(s_h)
            p = p * pl.reciprocal(jnp.sum(p, axis=-1, keepdims=True), approx=True)
            o_h = jnp.einsum('bqk,bkd->bqd', _bf16(p), _bf16(v),
                             preferred_element_type=jnp.float32)              # (Bs, Np, Dh)
            # fold this head directly into the output projection (no head concat):
            attn = attn + jnp.dot(_bf16(o_h.reshape(BNp, HEAD_DIM)),
                                  proj_w[h * HEAD_DIM:(h + 1) * HEAD_DIM, :],
                                  preferred_element_type=jnp.float32)
        x = x + attn + projb_ref[0]

        xn2 = _layernorm(x, ln2g_ref[0], ln2b_ref[0])
        h1 = jnp.dot(_bf16(xn2), fc1w_ref[0],
                     preferred_element_type=jnp.float32) + fc1b_ref[0]
        h1 = _gelu(h1)
        h2 = jnp.dot(_bf16(h1), fc2w_ref[0],
                     preferred_element_type=jnp.float32) + fc2b_ref[0]
        x_out = x + h2
        tok_ref[...] = x_out.reshape(Bs, Np, D)

        # ---- final LN (cls tokens only) + classification head (last depth step) ----
        @pl.when(d == DEPTH - 1)
        def _head():
            cls_rows = x_out.reshape(Bs, Np, D)[:, 0, :]                      # (Bs, D)
            xf = _layernorm(cls_rows, lnfg_ref[...], lnfb_ref[...])
            logits_ref[0] = jnp.dot(_bf16(xf), hw_ref[...],
                                    preferred_element_type=jnp.float32) + hb_ref[...]

    return kernel


# ---------------- JAX glue / pallas_call wrapper ----------------
def extract_patches(x):
    # x: (B, C, H, W) NCHW; patch flattening order (c, kh, kw) matches Conv2d-as-matmul weights.
    B, C, H, W = x.shape
    ph, pw = H // PATCH, W // PATCH
    x = x.reshape(B, C, ph, PATCH, pw, PATCH)
    x = x.transpose(0, 2, 4, 1, 3, 5)          # (B, ph, pw, C, PATCH, PATCH)
    return x.reshape(B, ph * pw, C * PATCH * PATCH)


def vit_forward_fused(params, x, *, batch_shards=1):
    B, C, H, W = x.shape
    assert B % batch_shards == 0
    Bs = B // batch_shards
    P = (H // PATCH) * (W // PATCH)
    N = P + 1
    Np = ((N + 7) // 8) * 8                    # pad tokens to a sublane multiple
    D = EMBED
    CKK = C * PATCH * PATCH
    NC = params["head_b"].shape[-1]

    # Patch matrix in bf16, zero-padded so row 0 (cls slot) and rows >= N are zero.
    xp = extract_patches(x).astype(jnp.bfloat16)                       # (B, P, CKK)
    xp_pad = jnp.zeros((B, Np, CKK), jnp.bfloat16).at[:, 1:N, :].set(xp)
    xp_pad = xp_pad.reshape(batch_shards, Bs * Np, CKK)

    # Fold cls token, positional embedding and patch-embed bias into one additive base (Np, D).
    base = jnp.zeros((Np, D), jnp.float32)
    base = base.at[0, :].set(params["cls_token"][0] + params["pos_embed"][0])
    base = base.at[1:N, :].set(params["patch_b"] + params["pos_embed"][1:N])

    blk = params["blocks"]
    depth_keys = ["ln1_g", "ln1_b", "qkv_w", "qkv_b", "proj_w", "proj_b",
                  "ln2_g", "ln2_b", "fc1_w", "fc1_b", "fc2_w", "fc2_b"]
    depth_inputs = [blk[k] for k in depth_keys]
    const_inputs = [params["patch_w"], base]
    head_inputs = [params["ln_g"], params["ln_b"], params["head_w"], params["head_b"]]

    def const_spec(a):
        nd = a.ndim
        return pl.BlockSpec(a.shape, lambda s, d, _nd=nd: (0,) * _nd)

    def depth_spec(a):
        # weights stacked along DEPTH are streamed (double-buffered) one block per depth step
        return pl.BlockSpec((1,) + a.shape[1:], lambda s, d: (d, 0, 0))

    in_specs = ([pl.BlockSpec(memory_space=pl.ANY)]          # xp: manual DMA at d==0 only
                + [const_spec(a) for a in const_inputs]
                + [depth_spec(a) for a in depth_inputs]
                + [const_spec(a) for a in head_inputs])

    kernel = _make_vit_kernel(Bs, P, N, Np, D, NC)
    logits = pl.pallas_call(
        kernel,
        out_shape=jax.ShapeDtypeStruct((batch_shards, Bs, NC), jnp.float32),
        grid=(batch_shards, DEPTH),
        in_specs=in_specs,
        out_specs=pl.BlockSpec((1, Bs, NC), lambda s, d: (s, 0, 0)),
        scratch_shapes=[pltpu.VMEM((Bs, Np, D), jnp.float32)],   # per-shard resident tokens
        compiler_params=pltpu.CompilerParams(
            dimension_semantics=("parallel", "arbitrary"),       # shard batch across TCs (v7x)
            vmem_limit_bytes=48 * 1024 * 1024),                  # stays under v7x 64 MiB VMEM
    )(xp_pad, *const_inputs, *depth_inputs, *head_inputs)
    return logits.reshape(B, NC)


def init_params(key, num_classes, img_size):
    n_patches = (img_size // PATCH) ** 2
    n_tokens = n_patches + 1
    keys = iter(jax.random.split(key, 64))

    def nrm(shape, std=0.02, dtype=jnp.float32):
        return (std * jax.random.normal(next(keys), shape)).astype(dtype)

    # Large weight matrices stored in bf16 (halves HBM weight traffic); biases/LN stay f32.
    params = {
        "patch_w": nrm((3 * PATCH * PATCH, EMBED), dtype=jnp.bfloat16),  # conv16/s16 as matmul
        "patch_b": jnp.zeros((1, EMBED), jnp.float32),
        "cls_token": nrm((1, EMBED)),
        "pos_embed": nrm((n_tokens, EMBED)),
        "ln_g": jnp.ones((1, EMBED), jnp.float32),
        "ln_b": jnp.zeros((1, EMBED), jnp.float32),
        "head_w": nrm((EMBED, num_classes), dtype=jnp.bfloat16),         # replaced nn.Linear(192, nc)
        "head_b": jnp.zeros((1, num_classes), jnp.float32),
        "blocks": {  # per-block weights stacked along a leading DEPTH axis
            "ln1_g": jnp.ones((DEPTH, 1, EMBED), jnp.float32),
            "ln1_b": jnp.zeros((DEPTH, 1, EMBED), jnp.float32),
            "qkv_w": nrm((DEPTH, EMBED, 3 * EMBED), dtype=jnp.bfloat16),
            "qkv_b": jnp.zeros((DEPTH, 1, 3 * EMBED), jnp.float32),
            "proj_w": nrm((DEPTH, EMBED, EMBED), dtype=jnp.bfloat16),
            "proj_b": jnp.zeros((DEPTH, 1, EMBED), jnp.float32),
            "ln2_g": jnp.ones((DEPTH, 1, EMBED), jnp.float32),
            "ln2_b": jnp.zeros((DEPTH, 1, EMBED), jnp.float32),
            "fc1_w": nrm((DEPTH, EMBED, MLP_HIDDEN), dtype=jnp.bfloat16),
            "fc1_b": jnp.zeros((DEPTH, 1, MLP_HIDDEN), jnp.float32),
            "fc2_w": nrm((DEPTH, MLP_HIDDEN, EMBED), dtype=jnp.bfloat16),
            "fc2_b": jnp.zeros((DEPTH, 1, EMBED), jnp.float32),
        },
    }
    return params


if __name__ == "__main__":
    num_classes = 10
    img_size = 32  # small image -> 2x2 = 4 patches + cls token = 5 tokens (padded to 8)
    key = jax.random.PRNGKey(0)
    kx, kp = jax.random.split(key)
    x = jax.random.normal(kx, (2, 3, img_size, img_size), jnp.float32)  # NCHW like torch
    params = init_params(kp, num_classes, img_size)

    # batch_shards=2 -> one shard per TensorCore on v7x; sequential (cheap) on v5e/v6e.
    fwd = jax.jit(functools.partial(vit_forward_fused, batch_shards=2))
    logits = jax.block_until_ready(fwd(params, x))
    assert logits.shape == (2, num_classes)
    assert bool(jnp.all(jnp.isfinite(logits)))
    print("KERNEL_OK")
</pallas_src>

<mosaic_0001>
module attributes {stable_mosaic.version = 11 : i64} {
  func.func @kernel(%arg0: i32, %arg1: i32, %arg2: memref<2x8x768xbf16, #tpu.memory_space<any>>, %arg3: memref<768x192xbf16, #tpu.memory_space<vmem>>, %arg4: memref<8x192xf32, #tpu.memory_space<vmem>>, %arg5: memref<1x1x192xf32, #tpu.memory_space<vmem>>, %arg6: memref<1x1x192xf32, #tpu.memory_space<vmem>>, %arg7: memref<1x192x576xbf16, #tpu.memory_space<vmem>>, %arg8: memref<1x1x576xf32, #tpu.memory_space<vmem>>, %arg9: memref<1x192x192xbf16, #tpu.memory_space<vmem>>, %arg10: memref<1x1x192xf32, #tpu.memory_space<vmem>>, %arg11: memref<1x1x192xf32, #tpu.memory_space<vmem>>, %arg12: memref<1x1x192xf32, #tpu.memory_space<vmem>>, %arg13: memref<1x192x768xbf16, #tpu.memory_space<vmem>>, %arg14: memref<1x1x768xf32, #tpu.memory_space<vmem>>, %arg15: memref<1x768x192xbf16, #tpu.memory_space<vmem>>, %arg16: memref<1x1x192xf32, #tpu.memory_space<vmem>>, %arg17: memref<1x192xf32, #tpu.memory_space<vmem>>, %arg18: memref<1x192xf32, #tpu.memory_space<vmem>>, %arg19: memref<192x10xbf16, #tpu.memory_space<vmem>>, %arg20: memref<1x10xf32, #tpu.memory_space<vmem>>, %arg21: memref<1x1x10xf32, #tpu.memory_space<vmem>>, %arg22: memref<1x8x192xf32, #tpu.memory_space<vmem>>) attributes {dimension_semantics = [#tpu.dimension_semantics<parallel>, #tpu.dimension_semantics<arbitrary>], iteration_bounds = array<i64: 2, 12>, scalar_prefetch = 0 : i64, scratch_operands = 1 : i64, tpu.core_type = #tpu.core_type<tc>, window_params = [{}, {pipeline_mode = #tpu.pipeline_mode<synchronous>, transform_indices = @transform_1, window_bounds = array<i64: 768, 192>}, {pipeline_mode = #tpu.pipeline_mode<synchronous>, transform_indices = @transform_2, window_bounds = array<i64: 8, 192>}, {transform_indices = @transform_3, window_bounds = array<i64: 1, 1, 192>}, {transform_indices = @transform_4, window_bounds = array<i64: 1, 1, 192>}, {transform_indices = @transform_5, window_bounds = array<i64: 1, 192, 576>}, {transform_indices = @transform_6, window_bounds = array<i64: 1, 1, 576>}, {transform_indices = @transform_7, window_bounds = array<i64: 1, 192, 192>}, {transform_indices = @transform_8, window_bounds = array<i64: 1, 1, 192>}, {transform_indices = @transform_9, window_bounds = array<i64: 1, 1, 192>}, {transform_indices = @transform_10, window_bounds = array<i64: 1, 1, 192>}, {transform_indices = @transform_11, window_bounds = array<i64: 1, 192, 768>}, {transform_indices = @transform_12, window_bounds = array<i64: 1, 1, 768>}, {transform_indices = @transform_13, window_bounds = array<i64: 1, 768, 192>}, {transform_indices = @transform_14, window_bounds = array<i64: 1, 1, 192>}, {pipeline_mode = #tpu.pipeline_mode<synchronous>, transform_indices = @transform_15, window_bounds = array<i64: 1, 192>}, {pipeline_mode = #tpu.pipeline_mode<synchronous>, transform_indices = @transform_16, window_bounds = array<i64: 1, 192>}, {pipeline_mode = #tpu.pipeline_mode<synchronous>, transform_indices = @transform_17, window_bounds = array<i64: 192, 10>}, {pipeline_mode = #tpu.pipeline_mode<synchronous>, transform_indices = @transform_18, window_bounds = array<i64: 1, 10>}, {transform_indices = @transform_19, window_bounds = array<i64: 1, 1, 10>}]} {
    %c0_i32 = arith.constant 0 : i32
    %0 = arith.cmpi eq, %arg1, %c0_i32 : i32
    %1 = arith.extui %0 : i1 to i32
    %c0_i32_0 = arith.constant 0 : i32
    %2 = arith.cmpi ne, %1, %c0_i32_0 : i32
    scf.if %2 {
      "tpu.region"() ({
        %alloca = memref.alloca() : memref<8x768xbf16, #tpu.memory_space<vmem>>
        %203 = tpu.sem_alloc : memref<!tpu.dma_semaphore, #tpu.memory_space<semaphore_mem>>
        %c0_i32_80 = arith.constant 0 : i32
        %c0_i32_81 = arith.constant 0 : i32
        %204 = tpu.memref_slice %arg2[%arg0, %c0_i32_80, %c0_i32_81] : memref<2x8x768xbf16, #tpu.memory_space<any>> -> memref<1x8x768xbf16, #tpu.memory_space<any>>
        %205 = tpu.memref_squeeze %204 : memref<1x8x768xbf16, #tpu.memory_space<any>> -> memref<8x768xbf16, #tpu.memory_space<any>>
        tpu.enqueue_dma source(%205 : memref<8x768xbf16, #tpu.memory_space<any>>) target(%alloca : memref<8x768xbf16, #tpu.memory_space<vmem>>) target_semaphore(%203 : memref<!tpu.dma_semaphore, #tpu.memory_space<semaphore_mem>>)
        %c0_i32_82 = arith.constant 0 : i32
        %c0_i32_83 = arith.constant 0 : i32
        %206 = tpu.memref_slice %arg2[%arg0, %c0_i32_82, %c0_i32_83] : memref<2x8x768xbf16, #tpu.memory_space<any>> -> memref<1x8x768xbf16, #tpu.memory_space<any>>
        %207 = tpu.memref_squeeze %206 : memref<1x8x768xbf16, #tpu.memory_space<any>> -> memref<8x768xbf16, #tpu.memory_space<any>>
        tpu.wait_dma2 semaphore(%203 : memref<!tpu.dma_semaphore, #tpu.memory_space<semaphore_mem>>) src(%207 : memref<8x768xbf16, #tpu.memory_space<any>>) dst(%alloca : memref<8x768xbf16, #tpu.memory_space<vmem>>)
        %c0_84 = arith.constant 0 : index
        %c0_85 = arith.constant 0 : index
        %208 = vector.load %alloca[%c0_84, %c0_85] : memref<8x768xbf16, #tpu.memory_space<vmem>>, vector<8x768xbf16>
        %c0_86 = arith.constant 0 : index
        %c0_87 = arith.constant 0 : index
        %209 = vector.load %arg3[%c0_86, %c0_87] : memref<768x192xbf16, #tpu.memory_space<vmem>>, vector<768x192xbf16>
        %cst_88 = arith.constant dense<0.000000e+00> : vector<8x192xf32>
        %210 = tpu.matmul %208, %209, %cst_88 {dimension_numbers = #tpu.dot_dimension_numbers<[1], [0], [0], [1], [0, 0, 1, 1], [], []>} : vector<8x768xbf16>, vector<768x192xbf16>, vector<8x192xf32> -> vector<8x192xf32>
        %211 = vector.shape_cast %210 : vector<8x192xf32> to vector<1x8x192xf32>
        %c0_89 = arith.constant 0 : index
        %c0_90 = arith.constant 0 : index
        %212 = vector.load %arg4[%c0_89, %c0_90] : memref<8x192xf32, #tpu.memory_space<vmem>>, vector<8x192xf32>
        %213 = vector.shape_cast %212 : vector<8x192xf32> to vector<1x8x192xf32>
        %214 = arith.addf %211, %213 : vector<1x8x192xf32>
        %c0_91 = arith.constant 0 : index
        %c0_92 = arith.constant 0 : index
        %c0_93 = arith.constant 0 : index
        %215 = vector.load %arg22[%c0_91, %c0_92, %c0_93] : memref<1x8x192xf32, #tpu.memory_space<vmem>>, vector<1x8x192xf32>
        tpu.vector_store %arg22[%c0_91, %c0_92, %c0_93], %214 {strides = array<i32>} : memref<1x8x192xf32, #tpu.memory_space<vmem>>, vector<1x8x192xf32>,
        tpu.yield
      }) : () -> ()
    } else {
    }
    %c0 = arith.constant 0 : index
    %c0_1 = arith.constant 0 : index
    %c0_2 = arith.constant 0 : index
    %3 = vector.load %arg22[%c0, %c0_1, %c0_2] : memref<1x8x192xf32, #tpu.memory_space<vmem>>, vector<1x8x192xf32>
    %4 = vector.shape_cast %3 : vector<1x8x192xf32> to vector<8x192xf32>
    %c0_3 = arith.constant 0 : index
    %c0_4 = arith.constant 0 : index
    %c0_5 = arith.constant 0 : index
    %5 = vector.load %arg5[%c0_3, %c0_4, %c0_5] : memref<1x1x192xf32, #tpu.memory_space<vmem>>, vector<1x1x192xf32>
    %6 = vector.shape_cast %5 : vector<1x1x192xf32> to vector<1x192xf32>
    %c0_6 = arith.constant 0 : index
    %c0_7 = arith.constant 0 : index
    %c0_8 = arith.constant 0 : index
    %7 = vector.load %arg6[%c0_6, %c0_7, %c0_8] : memref<1x1x192xf32, #tpu.memory_space<vmem>>, vector<1x1x192xf32>
    %8 = vector.shape_cast %7 : vector<1x1x192xf32> to vector<1x192xf32>
    %cst = arith.constant dense<0.000000e+00> : vector<8xf32>
    %9 = vector.multi_reduction <add>, %4, %cst [1] : vector<8x192xf32> to vector<8xf32>
    %10 = vector.shape_cast %9 : vector<8xf32> to vector<8x1xf32>
    %cst_9 = arith.constant 1.920000e+02 : f32
    %11 = vector.broadcast %cst_9 : f32 to vector<8x1xf32>
    %12 = arith.divf %10, %11 : vector<8x1xf32>
    %13 = vector.broadcast %12 : vector<8x1xf32> to vector<8x192xf32>
    %14 = arith.subf %4, %13 : vector<8x192xf32>
    %15 = arith.mulf %14, %14 : vector<8x192xf32>
    %cst_10 = arith.constant dense<0.000000e+00> : vector<8xf32>
    %16 = vector.multi_reduction <add>, %15, %cst_10 [1] : vector<8x192xf32> to vector<8xf32>
    %17 = vector.shape_cast %16 : vector<8xf32> to vector<8x1xf32>
    %cst_11 = arith.constant 1.920000e+02 : f32
    %18 = vector.broadcast %cst_11 : f32 to vector<8x1xf32>
    %19 = arith.divf %17, %18 : vector<8x1xf32>
    %20 = vector.broadcast %12 : vector<8x1xf32> to vector<8x192xf32>
    %21 = arith.subf %4, %20 : vector<8x192xf32>
    %cst_12 = arith.constant 9.99999997E-7 : f32
    %22 = vector.broadcast %cst_12 : f32 to vector<8x1xf32>
    %23 = arith.addf %19, %22 : vector<8x1xf32>
    %24 = math.rsqrt %23 : vector<8x1xf32>
    %25 = vector.broadcast %24 : vector<8x1xf32> to vector<8x192xf32>
    %26 = arith.mulf %21, %25 : vector<8x192xf32>
    %27 = vector.broadcast %6 : vector<1x192xf32> to vector<8x192xf32>
    %28 = arith.mulf %26, %27 : vector<8x192xf32>
    %29 = vector.broadcast %8 : vector<1x192xf32> to vector<8x192xf32>
    %30 = arith.addf %28, %29 : vector<8x192xf32>
    %31 = arith.truncf %30 : vector<8x192xf32> to vector<8x192xbf16>
    %c0_13 = arith.constant 0 : index
    %c0_14 = arith.constant 0 : index
    %c0_15 = arith.constant 0 : index
    %32 = vector.load %arg7[%c0_13, %c0_14, %c0_15] : memref<1x192x576xbf16, #tpu.memory_space<vmem>>, vector<1x192x576xbf16>
    %33 = vector.shape_cast %32 : vector<1x192x576xbf16> to vector<192x576xbf16>
    %cst_16 = arith.constant dense<0.000000e+00> : vector<8x576xf32>
    %34 = tpu.matmul %31, %33, %cst_16 {dimension_numbers = #tpu.dot_dimension_numbers<[1], [0], [0], [1], [0, 0, 1, 1], [], []>} : vector<8x192xbf16>, vector<192x576xbf16>, vector<8x576xf32> -> vector<8x576xf32>
    %c0_17 = arith.constant 0 : index
    %c0_18 = arith.constant 0 : index
    %c0_19 = arith.constant 0 : index
    %35 = vector.load %arg8[%c0_17, %c0_18, %c0_19] : memref<1x1x576xf32, #tpu.memory_space<vmem>>, vector<1x1x576xf32>
    %36 = vector.shape_cast %35 : vector<1x1x576xf32> to vector<1x576xf32>
    %37 = vector.broadcast %36 : vector<1x576xf32> to vector<8x576xf32>
    %38 = arith.addf %34, %37 : vector<8x576xf32>
    %39 = vector.shape_cast %38 : vector<8x576xf32> to vector<1x8x576xf32>
    %cst_20 = arith.constant 6.400000e+01 : f32
    %cst_21 = arith.constant -5.000000e-01 : f32
    %40 = math.powf %cst_20, %cst_21 : f32
    %41 = tpu.iota {dimensions = array<i32: 2>} : vector<1x1x8xi32>
    %c5_i32 = arith.constant 5 : i32
    %42 = vector.broadcast %c5_i32 : i32 to vector<1x1x8xi32>
    %43 = arith.cmpi slt, %41, %42 : vector<1x1x8xi32>
    %c0_22 = arith.constant 0 : index
    %c0_23 = arith.constant 0 : index
    %c0_24 = arith.constant 0 : index
    %44 = vector.load %arg9[%c0_22, %c0_23, %c0_24] : memref<1x192x192xbf16, #tpu.memory_space<vmem>>, vector<1x192x192xbf16>
    %45 = vector.shape_cast %44 : vector<1x192x192xbf16> to vector<192x192xbf16>
    %cst_25 = arith.constant 0.000000e+00 : f32
    %46 = vector.broadcast %cst_25 : f32 to vector<8x192xf32>
    %47 = vector.extract_strided_slice %39 {offsets = [0, 0, 0], sizes = [1, 8, 64], strides = [1, 1, 1]} : vector<1x8x576xf32> to vector<1x8x64xf32>
    %48 = vector.broadcast %40 : f32 to vector<1x8x64xf32>
    %49 = arith.mulf %47, %48 : vector<1x8x64xf32>
    %50 = vector.extract_strided_slice %39 {offsets = [0, 0, 192], sizes = [1, 8, 64], strides = [1, 1, 1]} : vector<1x8x576xf32> to vector<1x8x64xf32>
    %51 = vector.extract_strided_slice %39 {offsets = [0, 0, 384], sizes = [1, 8, 64], strides = [1, 1, 1]} : vector<1x8x576xf32> to vector<1x8x64xf32>
    %52 = arith.truncf %49 : vector<1x8x64xf32> to vector<1x8x64xbf16>
    %53 = arith.truncf %50 : vector<1x8x64xf32> to vector<1x8x64xbf16>
    "tpu.trace_start"() <{level = 10 : i32, message = "bqd,bkd->bqk"}> : () -> ()
    %cst_26 = arith.constant dense<0.000000e+00> : vector<1x8x8xf32>
    %54 = tpu.matmul %52, %53, %cst_26 {dimension_numbers = #tpu.dot_dimension_numbers<[2], [2], [1], [1], [0, 0, 0, 1, 1, 1], [0], [0]>} : vector<1x8x64xbf16>, vector<1x8x64xbf16>, vector<1x8x8xf32> -> vector<1x8x8xf32>
    %cst_27 = arith.constant -1.000000e+30 : f32
    "tpu.trace_stop"() : () -> ()
    %55 = vector.shape_cast %43 : vector<1x1x8xi1> to vector<1x1x8xi1>
    %56 = vector.broadcast %55 : vector<1x1x8xi1> to vector<1x8x8xi1>
    %57 = vector.broadcast %cst_27 : f32 to vector<1x8x8xf32>
    %58 = arith.select %56, %54, %57 : vector<1x8x8xi1>, vector<1x8x8xf32>
    %cst_28 = arith.constant dense<0xFF800000> : vector<1x8xf32>
    %59 = vector.multi_reduction <maximumf>, %58, %cst_28 [2] : vector<1x8x8xf32> to vector<1x8xf32>
    %60 = vector.shape_cast %59 : vector<1x8xf32> to vector<1x8x1xf32>
    %61 = vector.broadcast %60 : vector<1x8x1xf32> to vector<1x8x8xf32>
    %62 = arith.subf %58, %61 : vector<1x8x8xf32>
    %63 = math.exp %62 : vector<1x8x8xf32>
    %cst_29 = arith.constant dense<0.000000e+00> : vector<1x8xf32>
    %64 = vector.multi_reduction <add>, %63, %cst_29 [2] : vector<1x8x8xf32> to vector<1x8xf32>
    %65 = vector.shape_cast %64 : vector<1x8xf32> to vector<1x8x1xf32>
    %66 = tpu.reciprocal %65 {approx = true} : vector<1x8x1xf32> -> vector<1x8x1xf32>
    %67 = vector.broadcast %66 : vector<1x8x1xf32> to vector<1x8x8xf32>
    %68 = arith.mulf %63, %67 : vector<1x8x8xf32>
    %69 = arith.truncf %68 : vector<1x8x8xf32> to vector<1x8x8xbf16>
    %70 = arith.truncf %51 : vector<1x8x64xf32> to vector<1x8x64xbf16>
    "tpu.trace_start"() <{level = 10 : i32, message = "bqk,bkd->bqd"}> : () -> ()
    %cst_30 = arith.constant dense<0.000000e+00> : vector<1x8x64xf32>
    %71 = tpu.matmul %69, %70, %cst_30 {dimension_numbers = #tpu.dot_dimension_numbers<[2], [1], [1], [2], [0, 0, 0, 1, 1, 2], [0], [0]>} : vector<1x8x8xbf16>, vector<1x8x64xbf16>, vector<1x8x64xf32> -> vector<1x8x64xf32>
    "tpu.trace_stop"() : () -> ()
    %72 = vector.shape_cast %71 : vector<1x8x64xf32> to vector<8x64xf32>
    %73 = arith.truncf %72 : vector<8x64xf32> to vector<8x64xbf16>
    %74 = vector.extract_strided_slice %45 {offsets = [0, 0], sizes = [64, 192], strides = [1, 1]} : vector<192x192xbf16> to vector<64x192xbf16>
    %cst_31 = arith.constant dense<0.000000e+00> : vector<8x192xf32>
    %75 = tpu.matmul %73, %74, %cst_31 {dimension_numbers = #tpu.dot_dimension_numbers<[1], [0], [0], [1], [0, 0, 1, 1], [], []>} : vector<8x64xbf16>, vector<64x192xbf16>, vector<8x192xf32> -> vector<8x192xf32>
    %76 = arith.addf %46, %75 : vector<8x192xf32>
    %77 = vector.extract_strided_slice %39 {offsets = [0, 0, 64], sizes = [1, 8, 64], strides = [1, 1, 1]} : vector<1x8x576xf32> to vector<1x8x64xf32>
    %78 = vector.broadcast %40 : f32 to vector<1x8x64xf32>
    %79 = arith.mulf %77, %78 : vector<1x8x64xf32>
    %80 = vector.extract_strided_slice %39 {offsets = [0, 0, 256], sizes = [1, 8, 64], strides = [1, 1, 1]} : vector<1x8x576xf32> to vector<1x8x64xf32>
    %81 = vector.extract_strided_slice %39 {offsets = [0, 0, 448], sizes = [1, 8, 64], strides = [1, 1, 1]} : vector<1x8x576xf32> to vector<1x8x64xf32>
    %82 = arith.truncf %79 : vector<1x8x64xf32> to vector<1x8x64xbf16>
    %83 = arith.truncf %80 : vector<1x8x64xf32> to vector<1x8x64xbf16>
    "tpu.trace_start"() <{level = 10 : i32, message = "bqd,bkd->bqk"}> : () -> ()
    %cst_32 = arith.constant dense<0.000000e+00> : vector<1x8x8xf32>
    %84 = tpu.matmul %82, %83, %cst_32 {dimension_numbers = #tpu.dot_dimension_numbers<[2], [2], [1], [1], [0, 0, 0, 1, 1, 1], [0], [0]>} : vector<1x8x64xbf16>, vector<1x8x64xbf16>, vector<1x8x8xf32> -> vector<1x8x8xf32>
    %cst_33 = arith.constant -1.000000e+30 : f32
    "tpu.trace_stop"() : () -> ()
    %85 = vector.shape_cast %43 : vector<1x1x8xi1> to vector<1x1x8xi1>
    %86 = vector.broadcast %85 : vector<1x1x8xi1> to vector<1x8x8xi1>
    %87 = vector.broadcast %cst_33 : f32 to vector<1x8x8xf32>
    %88 = arith.select %86, %84, %87 : vector<1x8x8xi1>, vector<1x8x8xf32>
    %cst_34 = arith.constant dense<0xFF800000> : vector<1x8xf32>
    %89 = vector.multi_reduction <maximumf>, %88, %cst_34 [2] : vector<1x8x8xf32> to vector<1x8xf32>
    %90 = vector.shape_cast %89 : vector<1x8xf32> to vector<1x8x1xf32>
    %91 = vector.broadcast %90 : vector<1x8x1xf32> to vector<1x8x8xf32>
    %92 = arith.subf %88, %91 : vector<1x8x8xf32>
    %93 = math.exp %92 : vector<1x8x8xf32>
    %cst_35 = arith.constant dense<0.000000e+00> : vector<1x8xf32>
    %94 = vector.multi_reduction <add>, %93, %cst_35 [2] : vector<1x8x8xf32> to vector<1x8xf32>
    %95 = vector.shape_cast %94 : vector<1x8xf32> to vector<1x8x1xf32>
    %96 = tpu.reciprocal %95 {approx = true} : vector<1x8x1xf32> -> vector<1x8x1xf32>
    %97 = vector.broadcast %96 : vector<1x8x1xf32> to vector<1x8x8xf32>
    %98 = arith.mulf %93, %97 : vector<1x8x8xf32>
    %99 = arith.truncf %98 : vector<1x8x8xf32> to vector<1x8x8xbf16>
    %100 = arith.truncf %81 : vector<1x8x64xf32> to vector<1x8x64xbf16>
    "tpu.trace_start"() <{level = 10 : i32, message = "bqk,bkd->bqd"}> : () -> ()
    %cst_36 = arith.constant dense<0.000000e+00> : vector<1x8x64xf32>
    %101 = tpu.matmul %99, %100, %cst_36 {dimension_numbers = #tpu.dot_dimension_numbers<[2], [1], [1], [2], [0, 0, 0, 1, 1, 2], [0], [0]>} : vector<1x8x8xbf16>, vector<1x8x64xbf16>, vector<1x8x64xf32> -> vector<1x8x64xf32>
    "tpu.trace_stop"() : () -> ()
    %102 = vector.shape_cast %101 : vector<1x8x64xf32> to vector<8x64xf32>
    %103 = arith.truncf %102 : vector<8x64xf32> to vector<8x64xbf16>
    %104 = vector.extract_strided_slice %45 {offsets = [64, 0], sizes = [64, 192], strides = [1, 1]} : vector<192x192xbf16> to vector<64x192xbf16>
    %cst_37 = arith.constant dense<0.000000e+00> : vector<8x192xf32>
    %105 = tpu.matmul %103, %104, %cst_37 {dimension_numbers = #tpu.dot_dimension_numbers<[1], [0], [0], [1], [0, 0, 1, 1], [], []>} : vector<8x64xbf16>, vector<64x192xbf16>, vector<8x192xf32> -> vector<8x192xf32>
    %106 = arith.addf %76, %105 : vector<8x192xf32>
    %107 = vector.extract_strided_slice %39 {offsets = [0, 0, 128], sizes = [1, 8, 64], strides = [1, 1, 1]} : vector<1x8x576xf32> to vector<1x8x64xf32>
    %108 = vector.broadcast %40 : f32 to vector<1x8x64xf32>
    %109 = arith.mulf %107, %108 : vector<1x8x64xf32>
    %110 = vector.extract_strided_slice %39 {offsets = [0, 0, 320], sizes = [1, 8, 64], strides = [1, 1, 1]} : vector<1x8x576xf32> to vector<1x8x64xf32>
    %111 = vector.extract_strided_slice %39 {offsets = [0, 0, 512], sizes = [1, 8, 64], strides = [1, 1, 1]} : vector<1x8x576xf32> to vector<1x8x64xf32>
    %112 = arith.truncf %109 : vector<1x8x64xf32> to vector<1x8x64xbf16>
    %113 = arith.truncf %110 : vector<1x8x64xf32> to vector<1x8x64xbf16>
    "tpu.trace_start"() <{level = 10 : i32, message = "bqd,bkd->bqk"}> : () -> ()
    %cst_38 = arith.constant dense<0.000000e+00> : vector<1x8x8xf32>
    %114 = tpu.matmul %112, %113, %cst_38 {dimension_numbers = #tpu.dot_dimension_numbers<[2], [2], [1], [1], [0, 0, 0, 1, 1, 1], [0], [0]>} : vector<1x8x64xbf16>, vector<1x8x64xbf16>, vector<1x8x8xf32> -> vector<1x8x8xf32>
    %cst_39 = arith.constant -1.000000e+30 : f32
    "tpu.trace_stop"() : () -> ()
    %115 = vector.shape_cast %43 : vector<1x1x8xi1> to vector<1x1x8xi1>
    %116 = vector.broadcast %115 : vector<1x1x8xi1> to vector<1x8x8xi1>
    %117 = vector.broadcast %cst_39 : f32 to vector<1x8x8xf32>
    %118 = arith.select %116, %114, %117 : vector<1x8x8xi1>, vector<1x8x8xf32>
    %cst_40 = arith.constant dense<0xFF800000> : vector<1x8xf32>
    %119 = vector.multi_reduction <maximumf>, %118, %cst_40 [2] : vector<1x8x8xf32> to vector<1x8xf32>
    %120 = vector.shape_cast %119 : vector<1x8xf32> to vector<1x8x1xf32>
    %121 = vector.broadcast %120 : vector<1x8x1xf32> to vector<1x8x8xf32>
    %122 = arith.subf %118, %121 : vector<1x8x8xf32>
    %123 = math.exp %122 : vector<1x8x8xf32>
    %cst_41 = arith.constant dense<0.000000e+00> : vector<1x8xf32>
    %124 = vector.multi_reduction <add>, %123, %cst_41 [2] : vector<1x8x8xf32> to vector<1x8xf32>
    %125 = vector.shape_cast %124 : vector<1x8xf32> to vector<1x8x1xf32>
    %126 = tpu.reciprocal %125 {approx = true} : vector<1x8x1xf32> -> vector<1x8x1xf32>
    %127 = vector.broadcast %126 : vector<1x8x1xf32> to vector<1x8x8xf32>
    %128 = arith.mulf %123, %127 : vector<1x8x8xf32>
    %129 = arith.truncf %128 : vector<1x8x8xf32> to vector<1x8x8xbf16>
    %130 = arith.truncf %111 : vector<1x8x64xf32> to vector<1x8x64xbf16>
    "tpu.trace_start"() <{level = 10 : i32, message = "bqk,bkd->bqd"}> : () -> ()
    %cst_42 = arith.constant dense<0.000000e+00> : vector<1x8x64xf32>
    %131 = tpu.matmul %129, %130, %cst_42 {dimension_numbers = #tpu.dot_dimension_numbers<[2], [1], [1], [2], [0, 0, 0, 1, 1, 2], [0], [0]>} : vector<1x8x8xbf16>, vector<1x8x64xbf16>, vector<1x8x64xf32> -> vector<1x8x64xf32>
    "tpu.trace_stop"() : () -> ()
    %132 = vector.shape_cast %131 : vector<1x8x64xf32> to vector<8x64xf32>
    %133 = arith.truncf %132 : vector<8x64xf32> to vector<8x64xbf16>
    %134 = vector.extract_strided_slice %45 {offsets = [128, 0], sizes = [64, 192], strides = [1, 1]} : vector<192x192xbf16> to vector<64x192xbf16>
    %cst_43 = arith.constant dense<0.000000e+00> : vector<8x192xf32>
    %135 = tpu.matmul %133, %134, %cst_43 {dimension_numbers = #tpu.dot_dimension_numbers<[1], [0], [0], [1], [0, 0, 1, 1], [], []>} : vector<8x64xbf16>, vector<64x192xbf16>, vector<8x192xf32> -> vector<8x192xf32>
    %136 = arith.addf %106, %135 : vector<8x192xf32>
    %137 = arith.addf %4, %136 : vector<8x192xf32>
    %c0_44 = arith.constant 0 : index
    %c0_45 = arith.constant 0 : index
    %c0_46 = arith.constant 0 : index
    %138 = vector.load %arg10[%c0_44, %c0_45, %c0_46] : memref<1x1x192xf32, #tpu.memory_space<vmem>>, vector<1x1x192xf32>
    %139 = vector.shape_cast %138 : vector<1x1x192xf32> to vector<1x192xf32>
    %140 = vector.broadcast %139 : vector<1x192xf32> to vector<8x192xf32>
    %141 = arith.addf %137, %140 : vector<8x192xf32>
    %c0_47 = arith.constant 0 : index
    %c0_48 = arith.constant 0 : index
    %c0_49 = arith.constant 0 : index
    %142 = vector.load %arg11[%c0_47, %c0_48, %c0_49] : memref<1x1x192xf32, #tpu.memory_space<vmem>>, vector<1x1x192xf32>
    %143 = vector.shape_cast %142 : vector<1x1x192xf32> to vector<1x192xf32>
    %c0_50 = arith.constant 0 : index
    %c0_51 = arith.constant 0 : index
    %c0_52 = arith.constant 0 : index
    %144 = vector.load %arg12[%c0_50, %c0_51, %c0_52] : memref<1x1x192xf32, #tpu.memory_space<vmem>>, vector<1x1x192xf32>
    %145 = vector.shape_cast %144 : vector<1x1x192xf32> to vector<1x192xf32>
    %cst_53 = arith.constant dense<0.000000e+00> : vector<8xf32>
    %146 = vector.multi_reduction <add>, %141, %cst_53 [1] : vector<8x192xf32> to vector<8xf32>
    %147 = vector.shape_cast %146 : vector<8xf32> to vector<8x1xf32>
    %cst_54 = arith.constant 1.920000e+02 : f32
    %148 = vector.broadcast %cst_54 : f32 to vector<8x1xf32>
    %149 = arith.divf %147, %148 : vector<8x1xf32>
    %150 = vector.broadcast %149 : vector<8x1xf32> to vector<8x192xf32>
    %151 = arith.subf %141, %150 : vector<8x192xf32>
    %152 = arith.mulf %151, %151 : vector<8x192xf32>
    %cst_55 = arith.constant dense<0.000000e+00> : vector<8xf32>
    %153 = vector.multi_reduction <add>, %152, %cst_55 [1] : vector<8x192xf32> to vector<8xf32>
    %154 = vector.shape_cast %153 : vector<8xf32> to vector<8x1xf32>
    %cst_56 = arith.constant 1.920000e+02 : f32
    %155 = vector.broadcast %cst_56 : f32 to vector<8x1xf32>
    %156 = arith.divf %154, %155 : vector<8x1xf32>
    %157 = vector.broadcast %149 : vector<8x1xf32> to vector<8x192xf32>
    %158 = arith.subf %141, %157 : vector<8x192xf32>
    %cst_57 = arith.constant 9.99999997E-7 : f32
    %159 = vector.broadcast %cst_57 : f32 to vector<8x1xf32>
    %160 = arith.addf %156, %159 : vector<8x1xf32>
    %161 = math.rsqrt %160 : vector<8x1xf32>
    %162 = vector.broadcast %161 : vector<8x1xf32> to vector<8x192xf32>
    %163 = arith.mulf %158, %162 : vector<8x192xf32>
    %164 = vector.broadcast %143 : vector<1x192xf32> to vector<8x192xf32>
    %165 = arith.mulf %163, %164 : vector<8x192xf32>
    %166 = vector.broadcast %145 : vector<1x192xf32> to vector<8x192xf32>
    %167 = arith.addf %165, %166 : vector<8x192xf32>
    %168 = arith.truncf %167 : vector<8x192xf32> to vector<8x192xbf16>
    %c0_58 = arith.constant 0 : index
    %c0_59 = arith.constant 0 : index
    %c0_60 = arith.constant 0 : index
    %169 = vector.load %arg13[%c0_58, %c0_59, %c0_60] : memref<1x192x768xbf16, #tpu.memory_space<vmem>>, vector<1x192x768xbf16>
    %170 = vector.shape_cast %169 : vector<1x192x768xbf16> to vector<192x768xbf16>
    %cst_61 = arith.constant dense<0.000000e+00> : vector<8x768xf32>
    %171 = tpu.matmul %168, %170, %cst_61 {dimension_numbers = #tpu.dot_dimension_numbers<[1], [0], [0], [1], [0, 0, 1, 1], [], []>} : vector<8x192xbf16>, vector<192x768xbf16>, vector<8x768xf32> -> vector<8x768xf32>
    %c0_62 = arith.constant 0 : index
    %c0_63 = arith.constant 0 : index
    %c0_64 = arith.constant 0 : index
    %172 = vector.load %arg14[%c0_62, %c0_63, %c0_64] : memref<1x1x768xf32, #tpu.memory_space<vmem>>, vector<1x1x768xf32>
    %173 = vector.shape_cast %172 : vector<1x1x768xf32> to vector<1x768xf32>
    %174 = vector.broadcast %173 : vector<1x768xf32> to vector<8x768xf32>
    %175 = arith.addf %171, %174 : vector<8x768xf32>
    %cst_65 = arith.constant 5.000000e-01 : f32
    %176 = vector.broadcast %cst_65 : f32 to vector<8x768xf32>
    %177 = arith.mulf %176, %175 : vector<8x768xf32>
    %cst_66 = arith.constant 4.471500e-02 : f32
    %178 = vector.broadcast %cst_66 : f32 to vector<8x768xf32>
    %179 = arith.mulf %178, %175 : vector<8x768xf32>
    %180 = arith.mulf %179, %175 : vector<8x768xf32>
    %181 = arith.mulf %180, %175 : vector<8x768xf32>
    %182 = arith.addf %175, %181 : vector<8x768xf32>
    %cst_67 = arith.constant 0.797884583 : f32
    %183 = vector.broadcast %cst_67 : f32 to vector<8x768xf32>
    %184 = arith.mulf %183, %182 : vector<8x768xf32>
    %185 = math.tanh %184 : vector<8x768xf32>
    %cst_68 = arith.constant 1.000000e+00 : f32
    %186 = vector.broadcast %cst_68 : f32 to vector<8x768xf32>
    %187 = arith.addf %186, %185 : vector<8x768xf32>
    %188 = arith.mulf %177, %187 : vector<8x768xf32>
    %189 = arith.truncf %188 : vector<8x768xf32> to vector<8x768xbf16>
    %c0_69 = arith.constant 0 : index
    %c0_70 = arith.constant 0 : index
    %c0_71 = arith.constant 0 : index
    %190 = vector.load %arg15[%c0_69, %c0_70, %c0_71] : memref<1x768x192xbf16, #tpu.memory_space<vmem>>, vector<1x768x192xbf16>
    %191 = vector.shape_cast %190 : vector<1x768x192xbf16> to vector<768x192xbf16>
    %cst_72 = arith.constant dense<0.000000e+00> : vector<8x192xf32>
    %192 = tpu.matmul %189, %191, %cst_72 {dimension_numbers = #tpu.dot_dimension_numbers<[1], [0], [0], [1], [0, 0, 1, 1], [], []>} : vector<8x768xbf16>, vector<768x192xbf16>, vector<8x192xf32> -> vector<8x192xf32>
    %c0_73 = arith.constant 0 : index
    %c0_74 = arith.constant 0 : index
    %c0_75 = arith.constant 0 : index
    %193 = vector.load %arg16[%c0_73, %c0_74, %c0_75] : memref<1x1x192xf32, #tpu.memory_space<vmem>>, vector<1x1x192xf32>
    %194 = vector.shape_cast %193 : vector<1x1x192xf32> to vector<1x192xf32>
    %195 = vector.broadcast %194 : vector<1x192xf32> to vector<8x192xf32>
    %196 = arith.addf %192, %195 : vector<8x192xf32>
    %197 = arith.addf %141, %196 : vector<8x192xf32>
    %198 = vector.shape_cast %197 : vector<8x192xf32> to vector<1x8x192xf32>
    %c0_76 = arith.constant 0 : index
    %c0_77 = arith.constant 0 : index
    %c0_78 = arith.constant 0 : index
    %199 = vector.load %arg22[%c0_76, %c0_77, %c0_78] : memref<1x8x192xf32, #tpu.memory_space<vmem>>, vector<1x8x192xf32>
    tpu.vector_store %arg22[%c0_76, %c0_77, %c0_78], %198 {strides = array<i32>} : memref<1x8x192xf32, #tpu.memory_space<vmem>>, vector<1x8x192xf32>,
    %c11_i32 = arith.constant 11 : i32
    %200 = arith.cmpi eq, %arg1, %c11_i32 : i32
    %201 = arith.extui %200 : i1 to i32
    %c0_i32_79 = arith.constant 0 : i32
    %202 = arith.cmpi ne, %201, %c0_i32_79 : i32
    scf.if %202 {
      %203 = vector.shape_cast %197 : vector<8x192xf32> to vector<1x8x192xf32>
      %204 = vector.extract_strided_slice %203 {offsets = [0, 0, 0], sizes = [1, 1, 192], strides = [1, 1, 1]} : vector<1x8x192xf32> to vector<1x1x192xf32>
      %205 = vector.shape_cast %204 : vector<1x1x192xf32> to vector<1x192xf32>
      %c0_80 = arith.constant 0 : index
      %c0_81 = arith.constant 0 : index
      %206 = vector.load %arg17[%c0_80, %c0_81] : memref<1x192xf32, #tpu.memory_space<vmem>>, vector<1x192xf32>
      %c0_82 = arith.constant 0 : index
      %c0_83 = arith.constant 0 : index
      %207 = vector.load %arg18[%c0_82, %c0_83] : memref<1x192xf32, #tpu.memory_space<vmem>>, vector<1x192xf32>
      %cst_84 = arith.constant dense<0.000000e+00> : vector<1xf32>
      %208 = vector.multi_reduction <add>, %205, %cst_84 [1] : vector<1x192xf32> to vector<1xf32>
      %209 = vector.shape_cast %208 : vector<1xf32> to vector<1x1xf32>
      %cst_85 = arith.constant 1.920000e+02 : f32
      %210 = vector.broadcast %cst_85 : f32 to vector<1x1xf32>
      %211 = arith.divf %209, %210 : vector<1x1xf32>
      %212 = vector.broadcast %211 : vector<1x1xf32> to vector<1x192xf32>
      %213 = arith.subf %205, %212 : vector<1x192xf32>
      %214 = arith.mulf %213, %213 : vector<1x192xf32>
      %cst_86 = arith.constant dense<0.000000e+00> : vector<1xf32>
      %215 = vector.multi_reduction <add>, %214, %cst_86 [1] : vector<1x192xf32> to vector<1xf32>
      %216 = vector.shape_cast %215 : vector<1xf32> to vector<1x1xf32>
      %cst_87 = arith.constant 1.920000e+02 : f32
      %217 = vector.broadcast %cst_87 : f32 to vector<1x1xf32>
      %218 = arith.divf %216, %217 : vector<1x1xf32>
      %219 = vector.broadcast %211 : vector<1x1xf32> to vector<1x192xf32>
      %220 = arith.subf %205, %219 : vector<1x192xf32>
      %cst_88 = arith.constant 9.99999997E-7 : f32
      %221 = vector.broadcast %cst_88 : f32 to vector<1x1xf32>
      %222 = arith.addf %218, %221 : vector<1x1xf32>
      %223 = math.rsqrt %222 : vector<1x1xf32>
      %224 = vector.broadcast %223 : vector<1x1xf32> to vector<1x192xf32>
      %225 = arith.mulf %220, %224 : vector<1x192xf32>
      %226 = arith.mulf %225, %206 : vector<1x192xf32>
      %227 = arith.addf %226, %207 : vector<1x192xf32>
      %228 = arith.truncf %227 : vector<1x192xf32> to vector<1x192xbf16>
      %c0_89 = arith.constant 0 : index
      %c0_90 = arith.constant 0 : index
      %229 = vector.load %arg19[%c0_89, %c0_90] : memref<192x10xbf16, #tpu.memory_space<vmem>>, vector<192x10xbf16>
      %cst_91 = arith.constant dense<0.000000e+00> : vector<1x10xf32>
      %230 = tpu.matmul %228, %229, %cst_91 {dimension_numbers = #tpu.dot_dimension_numbers<[1], [0], [0], [1], [0, 0, 1, 1], [], []>} : vector<1x192xbf16>, vector<192x10xbf16>, vector<1x10xf32> -> vector<1x10xf32>
      %c0_92 = arith.constant 0 : index
      %c0_93 = arith.constant 0 : index
      %231 = vector.load %arg20[%c0_92, %c0_93] : memref<1x10xf32, #tpu.memory_space<vmem>>, vector<1x10xf32>
      %232 = arith.addf %230, %231 : vector<1x10xf32>
      %c0_94 = arith.constant 0 : index
      %c0_95 = arith.constant 0 : index
      %c0_96 = arith.constant 0 : index
      %233 = vector.load %arg21[%c0_94, %c0_95, %c0_96] : memref<1x1x10xf32, #tpu.memory_space<vmem>>, vector<1x1x10xf32>
      %234 = vector.shape_cast %233 : vector<1x1x10xf32> to vector<1x10xf32>
      %235 = vector.shape_cast %232 : vector<1x10xf32> to vector<1x1x10xf32>
      tpu.vector_store %arg21[%c0_94, %c0_95, %c0_96], %235 {strides = array<i32>} : memref<1x1x10xf32, #tpu.memory_space<vmem>>, vector<1x1x10xf32>,
    } else {
    }
    return
  }
  func.func @transform_1(%arg0: i32, %arg1: i32) -> (i32, i32) {
    %c0_i32 = arith.constant 0 : i32
    %c0_i32_0 = arith.constant 0 : i32
    %c0_i32_1 = arith.constant 0 : i32
    return %c0_i32, %c0_i32_0 : i32, i32
  }
  func.func @transform_2(%arg0: i32, %arg1: i32) -> (i32, i32) {
    %c0_i32 = arith.constant 0 : i32
    %c0_i32_0 = arith.constant 0 : i32
    %c0_i32_1 = arith.constant 0 : i32
    return %c0_i32, %c0_i32_0 : i32, i32
  }
  func.func @transform_3(%arg0: i32, %arg1: i32) -> (i32, i32, i32) {
    %c0_i32 = arith.constant 0 : i32
    %c0_i32_0 = arith.constant 0 : i32
    %c0_i32_1 = arith.constant 0 : i32
    return %arg1, %c0_i32, %c0_i32_0 : i32, i32, i32
  }
  func.func @transform_4(%arg0: i32, %arg1: i32) -> (i32, i32, i32) {
    %c0_i32 = arith.constant 0 : i32
    %c0_i32_0 = arith.constant 0 : i32
    %c0_i32_1 = arith.constant 0 : i32
    return %arg1, %c0_i32, %c0_i32_0 : i32, i32, i32
  }
  func.func @transform_5(%arg0: i32, %arg1: i32) -> (i32, i32, i32) {
    %c0_i32 = arith.constant 0 : i32
    %c0_i32_0 = arith.constant 0 : i32
    %c0_i32_1 = arith.constant 0 : i32
    return %arg1, %c0_i32, %c0_i32_0 : i32, i32, i32
  }
  func.func @transform_6(%arg0: i32, %arg1: i32) -> (i32, i32, i32) {
    %c0_i32 = arith.constant 0 : i32
    %c0_i32_0 = arith.constant 0 : i32
    %c0_i32_1 = arith.constant 0 : i32
    return %arg1, %c0_i32, %c0_i32_0 : i32, i32, i32
  }
  func.func @transform_7(%arg0: i32, %arg1: i32) -> (i32, i32, i32) {
    %c0_i32 = arith.constant 0 : i32
    %c0_i32_0 = arith.constant 0 : i32
    %c0_i32_1 = arith.constant 0 : i32
    return %arg1, %c0_i32, %c0_i32_0 : i32, i32, i32
  }
  func.func @transform_8(%arg0: i32, %arg1: i32) -> (i32, i32, i32) {
    %c0_i32 = arith.constant 0 : i32
    %c0_i32_0 = arith.constant 0 : i32
    %c0_i32_1 = arith.constant 0 : i32
    return %arg1, %c0_i32, %c0_i32_0 : i32, i32, i32
  }
  func.func @transform_9(%arg0: i32, %arg1: i32) -> (i32, i32, i32) {
    %c0_i32 = arith.constant 0 : i32
    %c0_i32_0 = arith.constant 0 : i32
    %c0_i32_1 = arith.constant 0 : i32
    return %arg1, %c0_i32, %c0_i32_0 : i32, i32, i32
  }
  func.func @transform_10(%arg0: i32, %arg1: i32) -> (i32, i32, i32) {
    %c0_i32 = arith.constant 0 : i32
    %c0_i32_0 = arith.constant 0 : i32
    %c0_i32_1 = arith.constant 0 : i32
    return %arg1, %c0_i32, %c0_i32_0 : i32, i32, i32
  }
  func.func @transform_11(%arg0: i32, %arg1: i32) -> (i32, i32, i32) {
    %c0_i32 = arith.constant 0 : i32
    %c0_i32_0 = arith.constant 0 : i32
    %c0_i32_1 = arith.constant 0 : i32
    return %arg1, %c0_i32, %c0_i32_0 : i32, i32, i32
  }
  func.func @transform_12(%arg0: i32, %arg1: i32) -> (i32, i32, i32) {
    %c0_i32 = arith.constant 0 : i32
    %c0_i32_0 = arith.constant 0 : i32
    %c0_i32_1 = arith.constant 0 : i32
    return %arg1, %c0_i32, %c0_i32_0 : i32, i32, i32
  }
  func.func @transform_13(%arg0: i32, %arg1: i32) -> (i32, i32, i32) {
    %c0_i32 = arith.constant 0 : i32
    %c0_i32_0 = arith.constant 0 : i32
    %c0_i32_1 = arith.constant 0 : i32
    return %arg1, %c0_i32, %c0_i32_0 : i32, i32, i32
  }
  func.func @transform_14(%arg0: i32, %arg1: i32) -> (i32, i32, i32) {
    %c0_i32 = arith.constant 0 : i32
    %c0_i32_0 = arith.constant 0 : i32
    %c0_i32_1 = arith.constant 0 : i32
    return %arg1, %c0_i32, %c0_i32_0 : i32, i32, i32
  }
  func.func @transform_15(%arg0: i32, %arg1: i32) -> (i32, i32) {
    %c0_i32 = arith.constant 0 : i32
    %c0_i32_0 = arith.constant 0 : i32
    %c0_i32_1 = arith.constant 0 : i32
    return %c0_i32, %c0_i32_0 : i32, i32
  }
  func.func @transform_16(%arg0: i32, %arg1: i32) -> (i32, i32) {
    %c0_i32 = arith.constant 0 : i32
    %c0_i32_0 = arith.constant 0 : i32
    %c0_i32_1 = arith.constant 0 : i32
    return %c0_i32, %c0_i32_0 : i32, i32
  }
  func.func @transform_17(%arg0: i32, %arg1: i32) -> (i32, i32) {
    %c0_i32 = arith.constant 0 : i32
    %c0_i32_0 = arith.constant 0 : i32
    %c0_i32_1 = arith.constant 0 : i32
    return %c0_i32, %c0_i32_0 : i32, i32
  }
  func.func @transform_18(%arg0: i32, %arg1: i32) -> (i32, i32) {
    %c0_i32 = arith.constant 0 : i32
    %c0_i32_0 = arith.constant 0 : i32
    %c0_i32_1 = arith.constant 0 : i32
    return %c0_i32, %c0_i32_0 : i32, i32
  }
  func.func @transform_19(%arg0: i32, %arg1: i32) -> (i32, i32, i32) {
    %c0_i32 = arith.constant 0 : i32
    %c0_i32_0 = arith.constant 0 : i32
    %c0_i32_1 = arith.constant 0 : i32
    return %arg0, %c0_i32, %c0_i32_0 : i32, i32, i32
  }
}

</mosaic_0001>

<llo_original>
// kernel: vit_forward_fused.1
$region0: #{vit_forward_fused.1}
  #allocation0 [shape = 'u32[]', space=smem, size = 0x4, offset = 0x4, fixed_abs, tag = 'smem constant byte address 0x4 - core index']
  #allocation1 [shape = 'u32[144,128]{1,0:T(1,128)}', space=vmem, size = 0x12000, scoped, tag = 'internal scratch']
  #allocation2 [shape = 'f32[1,8,192]{2,1,0:T(8,128)}', space=vmem, size = 0x2000, scoped, tag = 'scratch operand']
  #allocation7 [shape = 's32[]', space=sflag, size = 0x4, offset = 0, fixed_abs, tag = 'sflag constant byte address 0x0 - dummy sync flag']
  %s0 = inlined_call_operand.vmem [shape: bf16[2,8,768], index: 0, kind: input, shape index: {}]
  %s1 = inlined_call_operand.vmem [shape: bf16[768,192], index: 1, kind: input, shape index: {}]
  %s2 = inlined_call_operand.vmem [shape: f32[8,192], index: 2, kind: input, shape index: {}]
  %s3 = inlined_call_operand.vmem [shape: f32[12,1,192], index: 3, kind: input, shape index: {}]
  %s4 = inlined_call_operand.vmem [shape: f32[12,1,192], index: 4, kind: input, shape index: {}]
  %s5 = inlined_call_operand.vmem [shape: bf16[12,192,576], index: 5, kind: input, shape index: {}]
  %s6 = inlined_call_operand.vmem [shape: f32[12,1,576], index: 6, kind: input, shape index: {}]
  %s7 = inlined_call_operand.vmem [shape: bf16[12,192,192], index: 7, kind: input, shape index: {}]
  %s8 = inlined_call_operand.vmem [shape: f32[12,1,192], index: 8, kind: input, shape index: {}]
  %s9 = inlined_call_operand.vmem [shape: f32[12,1,192], index: 9, kind: input, shape index: {}]
  %s10 = inlined_call_operand.vmem [shape: f32[12,1,192], index: 10, kind: input, shape index: {}]
  %s11 = inlined_call_operand.vmem [shape: bf16[12,192,768], index: 11, kind: input, shape index: {}]
  %s12 = inlined_call_operand.vmem [shape: f32[12,1,768], index: 12, kind: input, shape index: {}]
  %s13 = inlined_call_operand.vmem [shape: bf16[12,768,192], index: 13, kind: input, shape index: {}]
  %s14 = inlined_call_operand.vmem [shape: f32[12,1,192], index: 14, kind: input, shape index: {}]
  %s15 = inlined_call_operand.vmem [shape: f32[1,192], index: 15, kind: input, shape index: {}]
  %s16 = inlined_call_operand.vmem [shape: f32[1,192], index: 16, kind: input, shape index: {}]
  %s17 = inlined_call_operand.vmem [shape: bf16[192,10], index: 17, kind: input, shape index: {}]
  %s18 = inlined_call_operand.vmem [shape: f32[1,10], index: 18, kind: input, shape index: {}]
  %s19 = inlined_call_operand.hbm [shape: f32[2,1,10], index: 19, kind: output, shape index: {}]
  %s20 = sld [smem:[#allocation0]]
  $region148: #{vit_forward_fused.1} parent=0
    _
  %s22 = ssub.s32 1, %s20
  %s23 = scalar_select 0, %s22, %s20
  $region1: #{vit_forward_fused.1} parent=0
    #allocation3 [shape = 'u8[1024]{0}', space=vmem, size = 0x400, scoped, tag = 'output window, operand 0']
    #allocation4 [shape = 's32[2]{0}', space=sflag, size = 0x8, scoped, tag = 'scoped memory for vit_forward_fused.1']
    %24 = vsyncpa [#allocation4], 0
    %s25 = scalar_lea.sflag [#allocation4], 1
    %26 = vsyncpa %s25, 0
    loop: start=0, step=1, limit=26
    $region2: #{vit_forward_fused.1} parent=1 // loop_pre_header
      _
    $region3: #{vit_forward_fused.1} parent=1 // loop_header
      %s28 = sphi 0, %s32
      %p29 = scmp.ge.s32.totalorder %s28, 26
      %s35 = sphi 0, %s47
      %s36 = sphi 0, %s43
      %s37 = sphi 0, %s35
      %s38 = sphi 0, %s36
      %s39 = sphi 0, %s37
      %s40 = sphi 0, %s38
      %s48 = sphi 0, %s48
      %s50 = sphi 0, %s48
      %s51 = sphi 0, %s50
      %s65 = sphi 0, %s51
      %s69 = sphi 0, %s69
      %s71 = sphi 0, %s69
      %s72 = sphi 0, %s71
      %s86 = sphi 0, %s72
      %s92 = sphi 0, %s94
      %s95 = sphi 0, %s92
      %s96 = sphi 0, %s95
      %s112 = sphi 0, %s96
      %s118 = sphi 0, %s120
      %s121 = sphi 0, %s118
      %s122 = sphi 0, %s121
      %s138 = sphi 0, %s122
      %s144 = sphi 0, %s146
      %s147 = sphi 0, %s144
      %s148 = sphi 0, %s147
      %s164 = sphi 0, %s148
      %s170 = sphi 0, %s172
      %s173 = sphi 0, %s170
      %s174 = sphi 0, %s173
      %s190 = sphi 0, %s174
      %s196 = sphi 0, %s198
      %s199 = sphi 0, %s196
      %s200 = sphi 0, %s199
      %s216 = sphi 0, %s200
      %s222 = sphi 0, %s224
      %s225 = sphi 0, %s222
      %s226 = sphi 0, %s225
      %s242 = sphi 0, %s226
      %s248 = sphi 0, %s250
      %s251 = sphi 0, %s248
      %s252 = sphi 0, %s251
      %s268 = sphi 0, %s252
      %s274 = sphi 0, %s276
      %s277 = sphi 0, %s274
      %s278 = sphi 0, %s277
      %s294 = sphi 0, %s278
      %s300 = sphi 0, %s302
      %s303 = sphi 0, %s300
      %s304 = sphi 0, %s303
      %s320 = sphi 0, %s304
      %s326 = sphi 0, %s328
      %s329 = sphi 0, %s326
      %s330 = sphi 0, %s329
      %s346 = sphi 0, %s330
      %s352 = sphi 0, %s354
      %s355 = sphi 0, %s352
      %s356 = sphi 0, %s355
      %s372 = sphi 0, %s356
      %s378 = sphi 0, %s380
      %s381 = sphi 0, %s378
      %s382 = sphi 0, %s381
      %s398 = sphi 0, %s382
      %s402 = sphi 0, %s402
      %s404 = sphi 0, %s402
      %s405 = sphi 0, %s404
      %s419 = sphi 0, %s405
      %s423 = sphi 0, %s423
      %s425 = sphi 0, %s423
      %s426 = sphi 0, %s425
      %s440 = sphi 0, %s426
      %s444 = sphi 0, %s444
      %s446 = sphi 0, %s444
      %s447 = sphi 0, %s446
      %s461 = sphi 0, %s447
      %s465 = sphi 0, %s465
      %s467 = sphi 0, %s465
      %s468 = sphi 0, %s467
      %s482 = sphi 0, %s468
      %s488 = sphi 0, %s490
      %s491 = sphi 0, %s488
      %s492 = sphi 0, %s491
      %s508 = sphi 0, %s492
    $region4: #{vit_forward_fused.1} parent=1 // loop_header_branch
      %31 = sbr.rel (%p29) target = $region8
    $region5: #{vit_forward_fused.1} parent=1 // loop_body
      %s33 = ssub.s32 %s28, 1
      %s34 = ssub.s32 %s28, 2
      %s41 = sadd.s32 1, %s36
      %p42 = scmp.ge.s32.totalorder %s41, 12
      %s43 = scalar_select %p42, 0, %s41
      %s44 = sadd.s32 1, %s35
      %s45 = scalar_select %p42, %s44, %s35
      %p46 = scmp.ge.s32.totalorder %s45, 2
      %s47 = scalar_select %p46, 0, %s45
      %s49 = sadd.s32 %s48, 1
      %p52 = scmp.eq.s32.totalorder %s28, 23
      %p53 = scmp.ne.s32.totalorder %s48, %s50
      %p54 = scmp.eq.s32.totalorder %s28, 0
      %p55 = por %p53, %p54
      %p56 = scmp.ne.s32.totalorder %s48, %s50
      %p57 = scmp.eq.s32.totalorder %s33, 23
      %p58 = por %p56, %p57
      %p59 = scmp.ne.s32.totalorder %s50, %s51
      %p60 = scmp.eq.s32.totalorder %s33, 0
      %p61 = por %p59, %p60
      %p62 = scmp.ne.s32.totalorder %s50, %s51
      %p63 = scmp.eq.s32.totalorder %s34, 23
      %p64 = por %p62, %p63
      %p66 = scmp.ne.s32.totalorder %s51, %s65
      %p67 = scmp.eq.s32.totalorder %s34, 0
      %p68 = por %p66, %p67
      %s70 = sadd.s32 %s69, 1
      %p73 = scmp.eq.s32.totalorder %s28, 23
      %p74 = scmp.ne.s32.totalorder %s69, %s71
      %p75 = scmp.eq.s32.totalorder %s28, 0
      %p76 = por %p74, %p75
      %p77 = scmp.ne.s32.totalorder %s69, %s71
      %p78 = scmp.eq.s32.totalorder %s33, 23
      %p79 = por %p77, %p78
      %p80 = scmp.ne.s32.totalorder %s71, %s72
      %p81 = scmp.eq.s32.totalorder %s33, 0
      %p82 = por %p80, %p81
      %p83 = scmp.ne.s32.totalorder %s71, %s72
      %p84 = scmp.eq.s32.totalorder %s34, 23
      %p85 = por %p83, %p84
      %p87 = scmp.ne.s32.totalorder %s72, %s86
      %p88 = scmp.eq.s32.totalorder %s34, 0
      %p89 = por %p87, %p88
      %s90 = ssub.s32 %s36, %s43
      %p91 = scmp.eq.s32.totalorder %s90, 0
      %s93 = sadd.s32 %s92, 1
      %s94 = scalar_select %p91, %s92, %s93
      %p97 = pneg %p91
      %p98 = scmp.eq.s32.totalorder %s28, 23
      %p99 = por %p97, %p98
      %p100 = scmp.ne.s32.totalorder %s92, %s95
      %p101 = scmp.eq.s32.totalorder %s28, 0
      %p102 = por %p100, %p101
      %p103 = scmp.ne.s32.totalorder %s92, %s95
      %p104 = scmp.eq.s32.totalorder %s33, 23
      %p105 = por %p103, %p104
      %p106 = scmp.ne.s32.totalorder %s95, %s96
      %p107 = scmp.eq.s32.totalorder %s33, 0
      %p108 = por %p106, %p107
      %p109 = scmp.ne.s32.totalorder %s95, %s96
      %p110 = scmp.eq.s32.totalorder %s34, 23
      %p111 = por %p109, %p110
      %p113 = scmp.ne.s32.totalorder %s96, %s112
      %p114 = scmp.eq.s32.totalorder %s34, 0
      %p115 = por %p113, %p114
      %s116 = ssub.s32 %s36, %s43
      %p117 = scmp.eq.s32.totalorder %s116, 0
      %s119 = sadd.s32 %s118, 1
      %s120 = scalar_select %p117, %s118, %s119
      %p123 = pneg %p117
      %p124 = scmp.eq.s32.totalorder %s28, 23
      %p125 = por %p123, %p124
      %p126 = scmp.ne.s32.totalorder %s118, %s121
      %p127 = scmp.eq.s32.totalorder %s28, 0
      %p128 = por %p126, %p127
      %p129 = scmp.ne.s32.totalorder %s118, %s121
      %p130 = scmp.eq.s32.totalorder %s33, 23
      %p131 = por %p129, %p130
      %p132 = scmp.ne.s32.totalorder %s121, %s122
      %p133 = scmp.eq.s32.totalorder %s33, 0
      %p134 = por %p132, %p133
      %p135 = scmp.ne.s32.totalorder %s121, %s122
      %p136 = scmp.eq.s32.totalorder %s34, 23
      %p137 = por %p135, %p136
      %p139 = scmp.ne.s32.totalorder %s122, %s138
      %p140 = scmp.eq.s32.totalorder %s34, 0
      %p141 = por %p139, %p140
      %s142 = ssub.s32 %s36, %s43
      %p143 = scmp.eq.s32.totalorder %s142, 0
      %s145 = sadd.s32 %s144, 1
      %s146 = scalar_select %p143, %s144, %s145
      %p149 = pneg %p143
      %p150 = scmp.eq.s32.totalorder %s28, 23
      %p151 = por %p149, %p150
      %p152 = scmp.ne.s32.totalorder %s144, %s147
      %p153 = scmp.eq.s32.totalorder %s28, 0
      %p154 = por %p152, %p153
      %p155 = scmp.ne.s32.totalorder %s144, %s147
      %p156 = scmp.eq.s32.totalorder %s33, 23
      %p157 = por %p155, %p156
      %p158 = scmp.ne.s32.totalorder %s147, %s148
      %p159 = scmp.eq.s32.totalorder %s33, 0
      %p160 = por %p158, %p159
      %p161 = scmp.ne.s32.totalorder %s147, %s148
      %p162 = scmp.eq.s32.totalorder %s34, 23
      %p163 = por %p161, %p162
      %p165 = scmp.ne.s32.totalorder %s148, %s164
      %p166 = scmp.eq.s32.totalorder %s34, 0
      %p167 = por %p165, %p166
      %s168 = ssub.s32 %s36, %s43
      %p169 = scmp.eq.s32.totalorder %s168, 0
      %s171 = sadd.s32 %s170, 1
      %s172 = scalar_select %p169, %s170, %s171
      %p175 = pneg %p169
      %p176 = scmp.eq.s32.totalorder %s28, 23
      %p177 = por %p175, %p176
      %p178 = scmp.ne.s32.totalorder %s170, %s173
      %p179 = scmp.eq.s32.totalorder %s28, 0
      %p180 = por %p178, %p179
      %p181 = scmp.ne.s32.totalorder %s170, %s173
      %p182 = scmp.eq.s32.totalorder %s33, 23
      %p183 = por %p181, %p182
      %p184 = scmp.ne.s32.totalorder %s173, %s174
      %p185 = scmp.eq.s32.totalorder %s33, 0
      %p186 = por %p184, %p185
      %p187 = scmp.ne.s32.totalorder %s173, %s174
      %p188 = scmp.eq.s32.totalorder %s34, 23
      %p189 = por %p187, %p188
      %p191 = scmp.ne.s32.totalorder %s174, %s190
      %p192 = scmp.eq.s32.totalorder %s34, 0
      %p193 = por %p191, %p192
      %s194 = ssub.s32 %s36, %s43
      %p195 = scmp.eq.s32.totalorder %s194, 0
      %s197 = sadd.s32 %s196, 1
      %s198 = scalar_select %p195, %s196, %s197
      %p201 = pneg %p195
      %p202 = scmp.eq.s32.totalorder %s28, 23
      %p203 = por %p201, %p202
      %p204 = scmp.ne.s32.totalorder %s196, %s199
      %p205 = scmp.eq.s32.totalorder %s28, 0
      %p206 = por %p204, %p205
      %p207 = scmp.ne.s32.totalorder %s196, %s199
      %p208 = scmp.eq.s32.totalorder %s33, 23
      %p209 = por %p207, %p208
      %p210 = scmp.ne.s32.totalorder %s199, %s200
      %p211 = scmp.eq.s32.totalorder %s33, 0
      %p212 = por %p210, %p211
      %p213 = scmp.ne.s32.totalorder %s199, %s200
      %p214 = scmp.eq.s32.totalorder %s34, 23
      %p215 = por %p213, %p214
      %p217 = scmp.ne.s32.totalorder %s200, %s216
      %p218 = scmp.eq.s32.totalorder %s34, 0
      %p219 = por %p217, %p218
      %s220 = ssub.s32 %s36, %s43
      %p221 = scmp.eq.s32.totalorder %s220, 0
      %s223 = sadd.s32 %s222, 1
      %s224 = scalar_select %p221, %s222, %s223
      %p227 = pneg %p221
      %p228 = scmp.eq.s32.totalorder %s28, 23
      %p229 = por %p227, %p228
      %p230 = scmp.ne.s32.totalorder %s222, %s225
      %p231 = scmp.eq.s32.totalorder %s28, 0
      %p232 = por %p230, %p231
      %p233 = scmp.ne.s32.totalorder %s222, %s225
      %p234 = scmp.eq.s32.totalorder %s33, 23
      %p235 = por %p233, %p234
      %p236 = scmp.ne.s32.totalorder %s225, %s226
      %p237 = scmp.eq.s32.totalorder %s33, 0
      %p238 = por %p236, %p237
      %p239 = scmp.ne.s32.totalorder %s225, %s226
      %p240 = scmp.eq.s32.totalorder %s34, 23
      %p241 = por %p239, %p240
      %p243 = scmp.ne.s32.totalorder %s226, %s242
      %p244 = scmp.eq.s32.totalorder %s34, 0
      %p245 = por %p243, %p244
      %s246 = ssub.s32 %s36, %s43
      %p247 = scmp.eq.s32.totalorder %s246, 0
      %s249 = sadd.s32 %s248, 1
      %s250 = scalar_select %p247, %s248, %s249
      %p253 = pneg %p247
      %p254 = scmp.eq.s32.totalorder %s28, 23
      %p255 = por %p253, %p254
      %p256 = scmp.ne.s32.totalorder %s248, %s251
      %p257 = scmp.eq.s32.totalorder %s28, 0
      %p258 = por %p256, %p257
      %p259 = scmp.ne.s32.totalorder %s248, %s251
      %p260 = scmp.eq.s32.totalorder %s33, 23
      %p261 = por %p259, %p260
      %p262 = scmp.ne.s32.totalorder %s251, %s252
      %p263 = scmp.eq.s32.totalorder %s33, 0
      %p264 = por %p262, %p263
      %p265 = scmp.ne.s32.totalorder %s251, %s252
      %p266 = scmp.eq.s32.totalorder %s34, 23
      %p267 = por %p265, %p266
      %p269 = scmp.ne.s32.totalorder %s252, %s268
      %p270 = scmp.eq.s32.totalorder %s34, 0
      %p271 = por %p269, %p270
      %s272 = ssub.s32 %s36, %s43
      %p273 = scmp.eq.s32.totalorder %s272, 0
      %s275 = sadd.s32 %s274, 1
      %s276 = scalar_select %p273, %s274, %s275
      %p279 = pneg %p273
      %p280 = scmp.eq.s32.totalorder %s28, 23
      %p281 = por %p279, %p280
      %p282 = scmp.ne.s32.totalorder %s274, %s277
      %p283 = scmp.eq.s32.totalorder %s28, 0
      %p284 = por %p282, %p283
      %p285 = scmp.ne.s32.totalorder %s274, %s277
      %p286 = scmp.eq.s32.totalorder %s33, 23
      %p287 = por %p285, %p286
      %p288 = scmp.ne.s32.totalorder %s277, %s278
      %p289 = scmp.eq.s32.totalorder %s33, 0
      %p290 = por %p288, %p289
      %p291 = scmp.ne.s32.totalorder %s277, %s278
      %p292 = scmp.eq.s32.totalorder %s34, 23
      %p293 = por %p291, %p292
      %p295 = scmp.ne.s32.totalorder %s278, %s294
      %p296 = scmp.eq.s32.totalorder %s34, 0
      %p297 = por %p295, %p296
      %s298 = ssub.s32 %s36, %s43
      %p299 = scmp.eq.s32.totalorder %s298, 0
      %s301 = sadd.s32 %s300, 1
      %s302 = scalar_select %p299, %s300, %s301
      %p305 = pneg %p299
      %p306 = scmp.eq.s32.totalorder %s28, 23
      %p307 = por %p305, %p306
      %p308 = scmp.ne.s32.totalorder %s300, %s303
      %p309 = scmp.eq.s32.totalorder %s28, 0
      %p310 = por %p308, %p309
      %p311 = scmp.ne.s32.totalorder %s300, %s303
      %p312 = scmp.eq.s32.totalorder %s33, 23
      %p313 = por %p311, %p312
      %p314 = scmp.ne.s32.totalorder %s303, %s304
      %p315 = scmp.eq.s32.totalorder %s33, 0
      %p316 = por %p314, %p315
      %p317 = scmp.ne.s32.totalorder %s303, %s304
      %p318 = scmp.eq.s32.totalorder %s34, 23
      %p319 = por %p317, %p318
      %p321 = scmp.ne.s32.totalorder %s304, %s320
      %p322 = scmp.eq.s32.totalorder %s34, 0
      %p323 = por %p321, %p322
      %s324 = ssub.s32 %s36, %s43
      %p325 = scmp.eq.s32.totalorder %s324, 0
      %s327 = sadd.s32 %s326, 1
      %s328 = scalar_select %p325, %s326, %s327
      %p331 = pneg %p325
      %p332 = scmp.eq.s32.totalorder %s28, 23
      %p333 = por %p331, %p332
      %p334 = scmp.ne.s32.totalorder %s326, %s329
      %p335 = scmp.eq.s32.totalorder %s28, 0
      %p336 = por %p334, %p335
      %p337 = scmp.ne.s32.totalorder %s326, %s329
      %p338 = scmp.eq.s32.totalorder %s33, 23
      %p339 = por %p337, %p338
      %p340 = scmp.ne.s32.totalorder %s329, %s330
      %p341 = scmp.eq.s32.totalorder %s33, 0
      %p342 = por %p340, %p341
      %p343 = scmp.ne.s32.totalorder %s329, %s330
      %p344 = scmp.eq.s32.totalorder %s34, 23
      %p345 = por %p343, %p344
      %p347 = scmp.ne.s32.totalorder %s330, %s346
      %p348 = scmp.eq.s32.totalorder %s34, 0
      %p349 = por %p347, %p348
      %s350 = ssub.s32 %s36, %s43
      %p351 = scmp.eq.s32.totalorder %s350, 0
      %s353 = sadd.s32 %s352, 1
      %s354 = scalar_select %p351, %s352, %s353
      %p357 = pneg %p351
      %p358 = scmp.eq.s32.totalorder %s28, 23
      %p359 = por %p357, %p358
      %p360 = scmp.ne.s32.totalorder %s352, %s355
      %p361 = scmp.eq.s32.totalorder %s28, 0
      %p362 = por %p360, %p361
      %p363 = scmp.ne.s32.totalorder %s352, %s355
      %p364 = scmp.eq.s32.totalorder %s33, 23
      %p365 = por %p363, %p364
      %p366 = scmp.ne.s32.totalorder %s355, %s356
      %p367 = scmp.eq.s32.totalorder %s33, 0
      %p368 = por %p366, %p367
      %p369 = scmp.ne.s32.totalorder %s355, %s356
      %p370 = scmp.eq.s32.totalorder %s34, 23
      %p371 = por %p369, %p370
      %p373 = scmp.ne.s32.totalorder %s356, %s372
      %p374 = scmp.eq.s32.totalorder %s34, 0
      %p375 = por %p373, %p374
      %s376 = ssub.s32 %s36, %s43
      %p377 = scmp.eq.s32.totalorder %s376, 0
      %s379 = sadd.s32 %s378, 1
      %s380 = scalar_select %p377, %s378, %s379
      %p383 = pneg %p377
      %p384 = scmp.eq.s32.totalorder %s28, 23
      %p385 = por %p383, %p384
      %p386 = scmp.ne.s32.totalorder %s378, %s381
      %p387 = scmp.eq.s32.totalorder %s28, 0
      %p388 = por %p386, %p387
      %p389 = scmp.ne.s32.totalorder %s378, %s381
      %p390 = scmp.eq.s32.totalorder %s33, 23
      %p391 = por %p389, %p390
      %p392 = scmp.ne.s32.totalorder %s381, %s382
      %p393 = scmp.eq.s32.totalorder %s33, 0
      %p394 = por %p392, %p393
      %p395 = scmp.ne.s32.totalorder %s381, %s382
      %p396 = scmp.eq.s32.totalorder %s34, 23
      %p397 = por %p395, %p396
      %p399 = scmp.ne.s32.totalorder %s382, %s398
      %p400 = scmp.eq.s32.totalorder %s34, 0
      %p401 = por %p399, %p400
      %s403 = sadd.s32 %s402, 1
      %p406 = scmp.eq.s32.totalorder %s28, 23
      %p407 = scmp.ne.s32.totalorder %s402, %s404
      %p408 = scmp.eq.s32.totalorder %s28, 0
      %p409 = por %p407, %p408
      %p410 = scmp.ne.s32.totalorder %s402, %s404
      %p411 = scmp.eq.s32.totalorder %s33, 23
      %p412 = por %p410, %p411
      %p413 = scmp.ne.s32.totalorder %s404, %s405
      %p414 = scmp.eq.s32.totalorder %s33, 0
      %p415 = por %p413, %p414
      %p416 = scmp.ne.s32.totalorder %s404, %s405
      %p417 = scmp.eq.s32.totalorder %s34, 23
      %p418 = por %p416, %p417
      %p420 = scmp.ne.s32.totalorder %s405, %s419
      %p421 = scmp.eq.s32.totalorder %s34, 0
      %p422 = por %p420, %p421
      %s424 = sadd.s32 %s423, 1
      %p427 = scmp.eq.s32.totalorder %s28, 23
      %p428 = scmp.ne.s32.totalorder %s423, %s425
      %p429 = scmp.eq.s32.totalorder %s28, 0
      %p430 = por %p428, %p429
      %p431 = scmp.ne.s32.totalorder %s423, %s425
      %p432 = scmp.eq.s32.totalorder %s33, 23
      %p433 = por %p431, %p432
      %p434 = scmp.ne.s32.totalorder %s425, %s426
      %p435 = scmp.eq.s32.totalorder %s33, 0
      %p436 = por %p434, %p435
      %p437 = scmp.ne.s32.totalorder %s425, %s426
      %p438 = scmp.eq.s32.totalorder %s34, 23
      %p439 = por %p437, %p438
      %p441 = scmp.ne.s32.totalorder %s426, %s440
      %p442 = scmp.eq.s32.totalorder %s34, 0
      %p443 = por %p441, %p442
      %s445 = sadd.s32 %s444, 1
      %p448 = scmp.eq.s32.totalorder %s28, 23
      %p449 = scmp.ne.s32.totalorder %s444, %s446
      %p450 = scmp.eq.s32.totalorder %s28, 0
      %p451 = por %p449, %p450
      %p452 = scmp.ne.s32.totalorder %s444, %s446
      %p453 = scmp.eq.s32.totalorder %s33, 23
      %p454 = por %p452, %p453
      %p455 = scmp.ne.s32.totalorder %s446, %s447
      %p456 = scmp.eq.s32.totalorder %s33, 0
      %p457 = por %p455, %p456
      %p458 = scmp.ne.s32.totalorder %s446, %s447
      %p459 = scmp.eq.s32.totalorder %s34, 23
      %p460 = por %p458, %p459
      %p462 = scmp.ne.s32.totalorder %s447, %s461
      %p463 = scmp.eq.s32.totalorder %s34, 0
      %p464 = por %p462, %p463
      %s466 = sadd.s32 %s465, 1
      %p469 = scmp.eq.s32.totalorder %s28, 23
      %p470 = scmp.ne.s32.totalorder %s465, %s467
      %p471 = scmp.eq.s32.totalorder %s28, 0
      %p472 = por %p470, %p471
      %p473 = scmp.ne.s32.totalorder %s465, %s467
      %p474 = scmp.eq.s32.totalorder %s33, 23
      %p475 = por %p473, %p474
      %p476 = scmp.ne.s32.totalorder %s467, %s468
      %p477 = scmp.eq.s32.totalorder %s33, 0
      %p478 = por %p476, %p477
      %p479 = scmp.ne.s32.totalorder %s467, %s468
      %p480 = scmp.eq.s32.totalorder %s34, 23
      %p481 = por %p479, %p480
      %p483 = scmp.ne.s32.totalorder %s468, %s482
      %p484 = scmp.eq.s32.totalorder %s34, 0
      %p485 = por %p483, %p484
      %s486 = ssub.s32 %s35, %s47
      %p487 = scmp.eq.s32.totalorder %s486, 0
      %s489 = sadd.s32 %s488, 1
      %s490 = scalar_select %p487, %s488, %s489
      %p493 = pneg %p487
      %p494 = scmp.eq.s32.totalorder %s28, 23
      %p495 = por %p493, %p494
      %p496 = scmp.ne.s32.totalorder %s488, %s491
      %p497 = scmp.eq.s32.totalorder %s28, 0
      %p498 = por %p496, %p497
      %p499 = scmp.ne.s32.totalorder %s488, %s491
      %p500 = scmp.eq.s32.totalorder %s33, 23
      %p501 = por %p499, %p500
      %p502 = scmp.ne.s32.totalorder %s491, %s492
      %p503 = scmp.eq.s32.totalorder %s33, 0
      %p504 = por %p502, %p503
      %p505 = scmp.ne.s32.totalorder %s491, %s492
      %p506 = scmp.eq.s32.totalorder %s34, 23
      %p507 = por %p505, %p506
      %p509 = scmp.ne.s32.totalorder %s492, %s508
      %p510 = scmp.eq.s32.totalorder %s34, 0
      %p511 = por %p509, %p510
      %p512 = scmp.le.s32.totalorder 1, %s28
      %p513 = scmp.lt.s32.totalorder %s28, 25
      %p514 = pnand %p512, %p513
      %p515 = pneg %p514
      // Predicated region
      $region9: #{vit_forward_fused.1} parent=5 // pred_check
        _
      $region10: #{vit_forward_fused.1} parent=5 // pred_check_branch
        %517 = sbr.rel (%p514) target = $region12
      $region11: #{vit_forward_fused.1} parent=5 // pred_region
        %s518 = ssub.s32 %s28, 1
        // Predicated region
        $region13: #{vit_forward_fused.1} parent=11 // pred_check
          %p519 = pneg %p61
        $region14: #{vit_forward_fused.1} parent=11 // pred_check_branch
          %521 = sbr.rel (%p519) target = $region16
        $region15: #{vit_forward_fused.1} parent=11 // pred_region
          _
        $region16: #{vit_forward_fused.1} parent=11 // pred_fallthru
          _
        // Predicated region
        $region17: #{vit_forward_fused.1} parent=11 // pred_check
          %p522 = pneg %p82
        $region18: #{vit_forward_fused.1} parent=11 // pred_check_branch
          %524 = sbr.rel (%p522) target = $region20
        $region19: #{vit_forward_fused.1} parent=11 // pred_region
          _
        $region20: #{vit_forward_fused.1} parent=11 // pred_fallthru
          _
        // Predicated region
        $region21: #{vit_forward_fused.1} parent=11 // pred_check
          %p525 = pneg %p415
        $region22: #{vit_forward_fused.1} parent=11 // pred_check_branch
          %527 = sbr.rel (%p525) target = $region24
        $region23: #{vit_forward_fused.1} parent=11 // pred_region
          _
        $region24: #{vit_forward_fused.1} parent=11 // pred_fallthru
          _
        // Predicated region
        $region25: #{vit_forward_fused.1} parent=11 // pred_check
          %p528 = pneg %p436
        $region26: #{vit_forward_fused.1} parent=11 // pred_check_branch
          %530 = sbr.rel (%p528) target = $region28
        $region27: #{vit_forward_fused.1} parent=11 // pred_region
          _
        $region28: #{vit_forward_fused.1} parent=11 // pred_fallthru
          _
        // Predicated region
        $region29: #{vit_forward_fused.1} parent=11 // pred_check
          %p531 = pneg %p457
        $region30: #{vit_forward_fused.1} parent=11 // pred_check_branch
          %533 = sbr.rel (%p531) target = $region32
        $region31: #{vit_forward_fused.1} parent=11 // pred_region
          _
        $region32: #{vit_forward_fused.1} parent=11 // pred_fallthru
          _
        // Predicated region
        $region33: #{vit_forward_fused.1} parent=11 // pred_check
          %p534 = pneg %p478
        $region34: #{vit_forward_fused.1} parent=11 // pred_check_branch
          %536 = sbr.rel (%p534) target = $region36
        $region35: #{vit_forward_fused.1} parent=11 // pred_region
          _
        $region36: #{vit_forward_fused.1} parent=11 // pred_fallthru
          _
      $region12: #{vit_forward_fused.1} parent=5 // pred_fallthru
        _
      %p537 = scmp.lt.s32.totalorder %s28, 24
      // Predicated region
      $region37: #{vit_forward_fused.1} parent=5 // pred_check
        %p538 = pneg %p537
      $region38: #{vit_forward_fused.1} parent=5 // pred_check_branch
        %540 = sbr.rel (%p538) target = $region40
      $region39: #{vit_forward_fused.1} parent=5 // pred_region
        // Predicated region
        $region41: #{vit_forward_fused.1} parent=39 // pred_check
          %p541 = pneg %p102
        $region42: #{vit_forward_fused.1} parent=39 // pred_check_branch
          %543 = sbr.rel (%p541) target = $region44
        $region43: #{vit_forward_fused.1} parent=39 // pred_region
          %p544 = scmp.lt.s32.totalorder %s36, 11
          %s545 = scalar_select %p544, %s36, 11
          %s546 = smul.addr %s545, 2
          %s547 = scalar_lea.vmem %s3, %s546
        $region44: #{vit_forward_fused.1} parent=39 // pred_fallthru
          _
        // Predicated region
        $region45: #{vit_forward_fused.1} parent=39 // pred_check
          %p548 = pneg %p128
        $region46: #{vit_forward_fused.1} parent=39 // pred_check_branch
          %550 = sbr.rel (%p548) target = $region48
        $region47: #{vit_forward_fused.1} parent=39 // pred_region
          %p551 = scmp.lt.s32.totalorder %s36, 11
          %s552 = scalar_select %p551, %s36, 11
          %s553 = smul.addr %s552, 2
          %s554 = scalar_lea.vmem %s4, %s553
        $region48: #{vit_forward_fused.1} parent=39 // pred_fallthru
          _
        // Predicated region
        $region49: #{vit_forward_fused.1} parent=39 // pred_check
          %p555 = pneg %p154
        $region50: #{vit_forward_fused.1} parent=39 // pred_check_branch
          %557 = sbr.rel (%p555) target = $region52
        $region51: #{vit_forward_fused.1} parent=39 // pred_region
          %p558 = scmp.lt.s32.totalorder %s36, 11
          %s559 = scalar_select %p558, %s36, 11
          %s560 = smul.addr %s559, 120
          %s561 = smul.addr %s560, 4
          %s562 = scalar_lea.vmem %s5, %s561
        $region52: #{vit_forward_fused.1} parent=39 // pred_fallthru
          _
        // Predicated region
        $region53: #{vit_forward_fused.1} parent=39 // pred_check
          %p563 = pneg %p180
        $region54: #{vit_forward_fused.1} parent=39 // pred_check_branch
          %565 = sbr.rel (%p563) target = $region56
        $region55: #{vit_forward_fused.1} parent=39 // pred_region
          %p566 = scmp.lt.s32.totalorder %s36, 11
          %s567 = scalar_select %p566, %s36, 11
          %s568 = smul.addr %s567, 5
          %s569 = scalar_lea.vmem %s6, %s568
        $region56: #{vit_forward_fused.1} parent=39 // pred_fallthru
          _
        // Predicated region
        $region57: #{vit_forward_fused.1} parent=39 // pred_check
          %p570 = pneg %p206
        $region58: #{vit_forward_fused.1} parent=39 // pred_check_branch
          %572 = sbr.rel (%p570) target = $region60
        $region59: #{vit_forward_fused.1} parent=39 // pred_region
          %p573 = scmp.lt.s32.totalorder %s36, 11
          %s574 = scalar_select %p573, %s36, 11
          %s575 = smul.addr %s574, 48
          %s576 = smul.addr %s575, 4
          %s577 = scalar_lea.vmem %s7, %s576
        $region60: #{vit_forward_fused.1} parent=39 // pred_fallthru
          _
        // Predicated region
        $region61: #{vit_forward_fused.1} parent=39 // pred_check
          %p578 = pneg %p232
        $region62: #{vit_forward_fused.1} parent=39 // pred_check_branch
          %580 = sbr.rel (%p578) target = $region64
        $region63: #{vit_forward_fused.1} parent=39 // pred_region
          %p581 = scmp.lt.s32.totalorder %s36, 11
          %s582 = scalar_select %p581, %s36, 11
          %s583 = smul.addr %s582, 2
          %s584 = scalar_lea.vmem %s8, %s583
        $region64: #{vit_forward_fused.1} parent=39 // pred_fallthru
          _
        // Predicated region
        $region65: #{vit_forward_fused.1} parent=39 // pred_check
          %p585 = pneg %p258
        $region66: #{vit_forward_fused.1} parent=39 // pred_check_branch
          %587 = sbr.rel (%p585) target = $region68
        $region67: #{vit_forward_fused.1} parent=39 // pred_region
          %p588 = scmp.lt.s32.totalorder %s36, 11
          %s589 = scalar_select %p588, %s36, 11
          %s590 = smul.addr %s589, 2
          %s591 = scalar_lea.vmem %s9, %s590
        $region68: #{vit_forward_fused.1} parent=39 // pred_fallthru
          _
        // Predicated region
        $region69: #{vit_forward_fused.1} parent=39 // pred_check
          %p592 = pneg %p284
        $region70: #{vit_forward_fused.1} parent=39 // pred_check_branch
          %594 = sbr.rel (%p592) target = $region72
        $region71: #{vit_forward_fused.1} parent=39 // pred_region
          %p595 = scmp.lt.s32.totalorder %s36, 11
          %s596 = scalar_select %p595, %s36, 11
          %s597 = smul.addr %s596, 2
          %s598 = scalar_lea.vmem %s10, %s597
        $region72: #{vit_forward_fused.1} parent=39 // pred_fallthru
          _
        // Predicated region
        $region73: #{vit_forward_fused.1} parent=39 // pred_check
          %p599 = pneg %p310
        $region74: #{vit_forward_fused.1} parent=39 // pred_check_branch
          %601 = sbr.rel (%p599) target = $region76
        $region75: #{vit_forward_fused.1} parent=39 // pred_region
          %p602 = scmp.lt.s32.totalorder %s36, 11
          %s603 = scalar_select %p602, %s36, 11
          %s604 = smul.addr %s603, 144
          %s605 = smul.addr %s604, 4
          %s606 = scalar_lea.vmem %s11, %s605
        $region76: #{vit_forward_fused.1} parent=39 // pred_fallthru
          _
        // Predicated region
        $region77: #{vit_forward_fused.1} parent=39 // pred_check
          %p607 = pneg %p336
        $region78: #{vit_forward_fused.1} parent=39 // pred_check_branch
          %609 = sbr.rel (%p607) target = $region80
        $region79: #{vit_forward_fused.1} parent=39 // pred_region
          %p610 = scmp.lt.s32.totalorder %s36, 11
          %s611 = scalar_select %p610, %s36, 11
          %s612 = smul.addr %s611, 6
          %s613 = scalar_lea.vmem %s12, %s612
        $region80: #{vit_forward_fused.1} parent=39 // pred_fallthru
          _
        // Predicated region
        $region81: #{vit_forward_fused.1} parent=39 // pred_check
          %p614 = pneg %p362
        $region82: #{vit_forward_fused.1} parent=39 // pred_check_branch
          %616 = sbr.rel (%p614) target = $region84
        $region83: #{vit_forward_fused.1} parent=39 // pred_region
          %p617 = scmp.lt.s32.totalorder %s36, 11
          %s618 = scalar_select %p617, %s36, 11
          %s619 = smul.addr %s618, 192
          %s620 = smul.addr %s619, 4
          %s621 = scalar_lea.vmem %s13, %s620
        $region84: #{vit_forward_fused.1} parent=39 // pred_fallthru
          _
        // Predicated region
        $region85: #{vit_forward_fused.1} parent=39 // pred_check
          %p622 = pneg %p388
        $region86: #{vit_forward_fused.1} parent=39 // pred_check_branch
          %624 = sbr.rel (%p622) target = $region88
        $region87: #{vit_forward_fused.1} parent=39 // pred_region
          %p625 = scmp.lt.s32.totalorder %s36, 11
          %s626 = scalar_select %p625, %s36, 11
          %s627 = smul.addr %s626, 2
          %s628 = scalar_lea.vmem %s14, %s627
        $region88: #{vit_forward_fused.1} parent=39 // pred_fallthru
          _
      $region40: #{vit_forward_fused.1} parent=5 // pred_fallthru
        _
      %p629 = scmp.le.s32.totalorder 1, %s28
      %p630 = scmp.lt.s32.totalorder %s28, 25
      %p631 = pnand %p629, %p630
      %p632 = pneg %p631
      // Predicated region
      $region89: #{vit_forward_fused.1} parent=5 // pred_check
        _
      $region90: #{vit_forward_fused.1} parent=5 // pred_check_branch
        %634 = sbr.rel (%p631) target = $region92
      $region91: #{vit_forward_fused.1} parent=5 // pred_region
        %s635 = ssub.s32 %s28, 1
        %p636 = pneg %p61
        %p637 = pneg %p58
        %p638 = pneg %p82
        %p639 = pneg %p79
        %p640 = scmp.lt.s32.totalorder %s38, 11
        %s641 = scalar_select %p640, %s38, 11
        %s642 = smul.addr %s641, 2
        %s643 = scalar_lea.vmem %s3, %s642
        %p644 = pneg %p108
        %p645 = pneg %p105
        %p646 = scmp.lt.s32.totalorder %s38, 11
        %s647 = scalar_select %p646, %s38, 11
        %s648 = smul.addr %s647, 2
        %s649 = scalar_lea.vmem %s4, %s648
        %p650 = pneg %p134
        %p651 = pneg %p131
        %p652 = scmp.lt.s32.totalorder %s38, 11
        %s653 = scalar_select %p652, %s38, 11
        %s654 = smul.addr %s653, 120
        %s655 = smul.addr %s654, 4
        %s656 = scalar_lea.vmem %s5, %s655
        %p657 = pneg %p160
        %p658 = pneg %p157
        %p659 = scmp.lt.s32.totalorder %s38, 11
        %s660 = scalar_select %p659, %s38, 11
        %s661 = smul.addr %s660, 5
        %s662 = scalar_lea.vmem %s6, %s661
        %p663 = pneg %p186
        %p664 = pneg %p183
        %p665 = scmp.lt.s32.totalorder %s38, 11
        %s666 = scalar_select %p665, %s38, 11
        %s667 = smul.addr %s666, 48
        %s668 = smul.addr %s667, 4
        %s669 = scalar_lea.vmem %s7, %s668
        %p670 = pneg %p212
        %p671 = pneg %p209
        %p672 = scmp.lt.s32.totalorder %s38, 11
        %s673 = scalar_select %p672, %s38, 11
        %s674 = smul.addr %s673, 2
        %s675 = scalar_lea.vmem %s8, %s674
        %p676 = pneg %p238
        %p677 = pneg %p235
        %p678 = scmp.lt.s32.totalorder %s38, 11
        %s679 = scalar_select %p678, %s38, 11
        %s680 = smul.addr %s679, 2
        %s681 = scalar_lea.vmem %s9, %s680
        %p682 = pneg %p264
        %p683 = pneg %p261
        %p684 = scmp.lt.s32.totalorder %s38, 11
        %s685 = scalar_select %p684, %s38, 11
        %s686 = smul.addr %s685, 2
        %s687 = scalar_lea.vmem %s10, %s686
        %p688 = pneg %p290
        %p689 = pneg %p287
        %p690 = scmp.lt.s32.totalorder %s38, 11
        %s691 = scalar_select %p690, %s38, 11
        %s692 = smul.addr %s691, 144
        %s693 = smul.addr %s692, 4
        %s694 = scalar_lea.vmem %s11, %s693
        %p695 = pneg %p316
        %p696 = pneg %p313
        %p697 = scmp.lt.s32.totalorder %s38, 11
        %s698 = scalar_select %p697, %s38, 11
        %s699 = smul.addr %s698, 6
        %s700 = scalar_lea.vmem %s12, %s699
        %p701 = pneg %p342
        %p702 = pneg %p339
        %p703 = scmp.lt.s32.totalorder %s38, 11
        %s704 = scalar_select %p703, %s38, 11
        %s705 = smul.addr %s704, 192
        %s706 = smul.addr %s705, 4
        %s707 = scalar_lea.vmem %s13, %s706
        %p708 = pneg %p368
        %p709 = pneg %p365
        %p710 = scmp.lt.s32.totalorder %s38, 11
        %s711 = scalar_select %p710, %s38, 11
        %s712 = smul.addr %s711, 2
        %s713 = scalar_lea.vmem %s14, %s712
        %p714 = pneg %p394
        %p715 = pneg %p391
        %p716 = pneg %p415
        %p717 = pneg %p412
        %p718 = pneg %p436
        %p719 = pneg %p433
        %p720 = pneg %p457
        %p721 = pneg %p454
        %p722 = pneg %p478
        %p723 = pneg %p475
        %p724 = pneg %p504
        %p725 = pneg %p501
        %s726 = sand.u32 %s491, 1
        %s727 = scalar_lea.sflag [#allocation4], %s726
        %s728 = sand.u32 %s491, 1
        %s729 = scalar_lea.vmem [#allocation3], %s728
        %p730 = scmp.lt.s32.totalorder %s38, 11
        %s731 = scalar_select %p730, %s38, 11
        %s732 = smul.addr %s731, 2
        %s733 = scalar_lea.vmem %s3, %s732
        %p734 = scmp.lt.s32.totalorder %s38, 11
        %s735 = scalar_select %p734, %s38, 11
        %s736 = smul.addr %s735, 2
        %s737 = scalar_lea.vmem %s4, %s736
        %p738 = scmp.lt.s32.totalorder %s38, 11
        %s739 = scalar_select %p738, %s38, 11
        %s740 = smul.addr %s739, 120
        %s741 = smul.addr %s740, 4
        %s742 = scalar_lea.vmem %s5, %s741
        %p743 = scmp.lt.s32.totalorder %s38, 11
        %s744 = scalar_select %p743, %s38, 11
        %s745 = smul.addr %s744, 5
        %s746 = scalar_lea.vmem %s6, %s745
        %p747 = scmp.lt.s32.totalorder %s38, 11
        %s748 = scalar_select %p747, %s38, 11
        %s749 = smul.addr %s748, 48
        %s750 = smul.addr %s749, 4
        %s751 = scalar_lea.vmem %s7, %s750
        %p752 = scmp.lt.s32.totalorder %s38, 11
        %s753 = scalar_select %p752, %s38, 11
        %s754 = smul.addr %s753, 2
        %s755 = scalar_lea.vmem %s8, %s754
        %p756 = scmp.lt.s32.totalorder %s38, 11
        %s757 = scalar_select %p756, %s38, 11
        %s758 = smul.addr %s757, 2
        %s759 = scalar_lea.vmem %s9, %s758
        %p760 = scmp.lt.s32.totalorder %s38, 11
        %s761 = scalar_select %p760, %s38, 11
        %s762 = smul.addr %s761, 2
        %s763 = scalar_lea.vmem %s10, %s762
        %p764 = scmp.lt.s32.totalorder %s38, 11
        %s765 = scalar_select %p764, %s38, 11
        %s766 = smul.addr %s765, 144
        %s767 = smul.addr %s766, 4
        %s768 = scalar_lea.vmem %s11, %s767
        %p769 = scmp.lt.s32.totalorder %s38, 11
        %s770 = scalar_select %p769, %s38, 11
        %s771 = smul.addr %s770, 6
        %s772 = scalar_lea.vmem %s12, %s771
        %p773 = scmp.lt.s32.totalorder %s38, 11
        %s774 = scalar_select %p773, %s38, 11
        %s775 = smul.addr %s774, 192
        %s776 = smul.addr %s775, 4
        %s777 = scalar_lea.vmem %s13, %s776
        %p778 = scmp.lt.s32.totalorder %s38, 11
        %s779 = scalar_select %p778, %s38, 11
        %s780 = smul.addr %s779, 2
        %s781 = scalar_lea.vmem %s14, %s780
        %p783 = scmp.eq.s32.totalorder %s38, 0
        // Predicated region
        $region93: #{vit_forward_fused.1} parent=91 // pred_check
          %p784 = pneg %p783
        $region94: #{vit_forward_fused.1} parent=91 // pred_check_branch
          %786 = sbr.rel (%p784) target = $region96
        $region95: #{vit_forward_fused.1} parent=91 // pred_region
          $region97: #{vit_forward_fused.1} parent=95
            #allocation5 [shape = 'u8[12288]{0}', space=vmem, size = 0x3000, scoped, tag = 'scoped memory for vit_forward_fused.1']
            #allocation6 [shape = 's32[1]{0}', space=sflag, size = 0x4, scoped, tag = 'scoped memory for vit_forward_fused.1']
            %s787 = smul.u32 %s37, 6
            %s788 = smul.addr %s787, 4
            %s789 = scalar_lea.vmem %s0, %s788
            %p791 = scmp.lt.u32.totalorder 24, 8
            %p792 = pneg %p791
            // Predicated region
            $region98: #{vit_forward_fused.1} parent=97 // pred_check
              _
            $region99: #{vit_forward_fused.1} parent=97 // pred_check_branch
              %794 = sbr.rel (%p791) target = $region101
            $region100: #{vit_forward_fused.1} parent=97 // pred_region
              %s809 = sand.u32 24, 7
              %p810 = scmp.eq.s32.totalorder %s809, 0
              // Predicated region
              $region113: #{vit_forward_fused.1} parent=100 // pred_check
                %p811 = pneg %p810
              $region114: #{vit_forward_fused.1} parent=100 // pred_check_branch
                %813 = sbr.rel (%p811) target = $region116
              $region115: #{vit_forward_fused.1} parent=100 // pred_region
                loop: start=0, step=1, limit=1
                $region117: #{vit_forward_fused.1} parent=115 // loop_pre_header
                  _
                $region118: #{vit_forward_fused.1} parent=115 // loop_header
                  %s815 = sphi 0, %s819
                  %p816 = scmp.ge.s32.totalorder %s815, 1
                  %s820 = sphi %s789, %s789
                  %s821 = sphi [#allocation5], [#allocation5]
                $region119: #{vit_forward_fused.1} parent=115 // loop_header_branch
                  %818 = sbr.rel (%p816) target = $region123
                $region120: #{vit_forward_fused.1} parent=115 // loop_body
                  %v822 = vld [vmem:[%s820] sm:$0xff]
                  %823 = vst [vmem:[%s821] sm:$0xff] %v822
                  %v824 = vld [vmem:[%s820 + $0x8] sm:$0xff]
                  %825 = vst [vmem:[%s821 + $0x8] sm:$0xff] %v824
                  %v826 = vld [vmem:[%s820 + $0x10] sm:$0xff]
                  %827 = vst [vmem:[%s821 + $0x10] sm:$0xff] %v826
                $region121: #{vit_forward_fused.1} parent=115 // loop_footer
                  %s819 = sadd.s32 1, %s815
                $region122: #{vit_forward_fused.1} parent=115 // loop_footer_branch
                  %814 = sbr.rel target = $region118
                $region123: #{vit_forward_fused.1} parent=115 // loop_exit
                  _
              $region116: #{vit_forward_fused.1} parent=100 // pred_fallthru
                _
              %p828 = pneg %p810
              // Predicated region
              $region124: #{vit_forward_fused.1} parent=100 // pred_check
                _
              $region125: #{vit_forward_fused.1} parent=100 // pred_check_branch
                %830 = sbr.rel (%p810) target = $region127
              $region126: #{vit_forward_fused.1} parent=100 // pred_region
                %s831 = sand.u32 24, 7
              $region127: #{vit_forward_fused.1} parent=100 // pred_fallthru
                _
            $region101: #{vit_forward_fused.1} parent=97 // pred_fallthru
              _
            // Predicated region
            $region102: #{vit_forward_fused.1} parent=97 // pred_check
              %p795 = pneg %p791
            $region103: #{vit_forward_fused.1} parent=97 // pred_check_branch
              %797 = sbr.rel (%p795) target = $region105
            $region104: #{vit_forward_fused.1} parent=97 // pred_region
              %s798 = sshllo.u32 0, 24
              loop: start=0, step=1, limit=1
              $region106: #{vit_forward_fused.1} parent=104 // loop_pre_header
                _
              $region107: #{vit_forward_fused.1} parent=104 // loop_header
                %s800 = sphi 0, %s804
                %p801 = scmp.ge.s32.totalorder %s800, 1
                %s805 = sphi %s789, %s789
                %s806 = sphi [#allocation5], [#allocation5]
              $region108: #{vit_forward_fused.1} parent=104 // loop_header_branch
                %803 = sbr.rel (%p801) target = $region112
              $region109: #{vit_forward_fused.1} parent=104 // loop_body
                %v807 = vld [vmem:[%s805] sm:%s798]
                %808 = vst [vmem:[%s806] sm:%s798] %v807
              $region110: #{vit_forward_fused.1} parent=104 // loop_footer
                %s804 = sadd.s32 1, %s800
              $region111: #{vit_forward_fused.1} parent=104 // loop_footer_branch
                %799 = sbr.rel target = $region107
              $region112: #{vit_forward_fused.1} parent=104 // loop_exit
                _
            $region105: #{vit_forward_fused.1} parent=97 // pred_fallthru
              _
            // Predicated region
            $region128: #{vit_forward_fused.1} parent=97 // pred_check
              _
            $region129: #{vit_forward_fused.1} parent=97 // pred_check_branch
              %834 = sbr.rel (0) target = $region131
            $region130: #{vit_forward_fused.1} parent=97 // pred_region
              %835 = vsyncadd [#allocation6], 384
            $region131: #{vit_forward_fused.1} parent=97 // pred_fallthru
              _
            %s836 = smul.u32 4, 1
            %s837 = smul.u32 %s836, 6
            %s838 = sshll.u32 %s837, 4
            %839 = dma.done [#allocation6], %s838
            %v840 = vld [vmem:[#allocation5] sm:$0xff]
            %v841 = vld [vmem:[#allocation5 + $0x8] sm:$0xff]
            %v842 = vld [vmem:[#allocation5 + $0x10] sm:$0xff]
            %v843 = vld [vmem:[%s1] sm:$0xff]
            %v844 = vld [vmem:[%s1 + $0x8] sm:$0xff]
            %v845 = vld [vmem:[%s1 + $0x10] sm:$0xff]
            %v846 = vld [vmem:[%s1 + $0x18] sm:$0xff]
            %v847 = vld [vmem:[%s1 + $0x20] sm:$0xff]
            %v848 = vld [vmem:[%s1 + $0x28] sm:$0xff]
            %v849 = vld [vmem:[%s1 + $0x30] sm:$0xff]
            %v850 = vld [vmem:[%s1 + $0x38] sm:$0xff]
            %v851 = vld [vmem:[%s1 + $0x40] sm:$0xff]
            %v852 = vld [vmem:[%s1 + $0x48] sm:$0xff]
            %v853 = vld [vmem:[%s1 + $0x50] sm:$0xff]
            %v854 = vld [vmem:[%s1 + $0x58] sm:$0xff]
            %v855 = vld [vmem:[%s1 + $0x60] sm:$0xff]
            %v856 = vld [vmem:[%s1 + $0x68] sm:$0xff]
            %v857 = vld [vmem:[%s1 + $0x70] sm:$0xff]
            %v858 = vld [vmem:[%s1 + $0x78] sm:$0xff]
            %v859 = vld [vmem:[%s1 + $0x80] sm:$0xff]
            %v860 = vld [vmem:[%s1 + $0x88] sm:$0xff]
            %v861 = vld [vmem:[%s1 + $0x90] sm:$0xff]
            %v862 = vld [vmem:[%s1 + $0x98] sm:$0xff]
            %v863 = vld [vmem:[%s1 + $0xa0] sm:$0xff]
            %v864 = vld [vmem:[%s1 + $0xa8] sm:$0xff]
            %v865 = vld [vmem:[%s1 + $0xb0] sm:$0xff]
            %v866 = vld [vmem:[%s1 + $0xb8] sm:$0xff]
            %v867 = vld [vmem:[%s1 + $0xc0] sm:$0xff]
            %v868 = vld [vmem:[%s1 + $0xc8] sm:$0xff]
            %v869 = vld [vmem:[%s1 + $0xd0] sm:$0xff]
            %v870 = vld [vmem:[%s1 + $0xd8] sm:$0xff]
            %v871 = vld [vmem:[%s1 + $0xe0] sm:$0xff]
            %v872 = vld [vmem:[%s1 + $0xe8] sm:$0xff]
            %v873 = vld [vmem:[%s1 + $0xf0] sm:$0xff]
            %v874 = vld [vmem:[%s1 + $0xf8] sm:$0xff]
            %v875 = vld [vmem:[%s1 + $0x100] sm:$0xff]
            %v876 = vld [vmem:[%s1 + $0x108] sm:$0xff]
            %v877 = vld [vmem:[%s1 + $0x110] sm:$0xff]
            %v878 = vld [vmem:[%s1 + $0x118] sm:$0xff]
            %v879 = vld [vmem:[%s1 + $0x120] sm:$0xff]
            %v880 = vld [vmem:[%s1 + $0x128] sm:$0xff]
            %v881 = vld [vmem:[%s1 + $0x130] sm:$0xff]
            %v882 = vld [vmem:[%s1 + $0x138] sm:$0xff]
            %v883 = vld [vmem:[%s1 + $0x140] sm:$0xff]
            %v884 = vld [vmem:[%s1 + $0x148] sm:$0xff]
            %v885 = vld [vmem:[%s1 + $0x150] sm:$0xff]
            %v886 = vld [vmem:[%s1 + $0x158] sm:$0xff]
            %v887 = vld [vmem:[%s1 + $0x160] sm:$0xff]
            %v888 = vld [vmem:[%s1 + $0x168] sm:$0xff]
            %v889 = vld [vmem:[%s1 + $0x170] sm:$0xff]
            %v890 = vld [vmem:[%s1 + $0x178] sm:$0xff]
            %v891 = vld [vmem:[%s1 + $0x180] sm:$0xff]
            %v892 = vld [vmem:[%s1 + $0x188] sm:$0xff]
            %v893 = vld [vmem:[%s1 + $0x190] sm:$0xff]
            %v894 = vld [vmem:[%s1 + $0x198] sm:$0xff]
            %v895 = vld [vmem:[%s1 + $0x1a0] sm:$0xff]
            %v896 = vld [vmem:[%s1 + $0x1a8] sm:$0xff]
            %v897 = vld [vmem:[%s1 + $0x1b0] sm:$0xff]
            %v898 = vld [vmem:[%s1 + $0x1b8] sm:$0xff]
            %v899 = vld [vmem:[%s1 + $0x1c0] sm:$0xff]
            %v900 = vld [vmem:[%s1 + $0x1c8] sm:$0xff]
            %v901 = vld [vmem:[%s1 + $0x1d0] sm:$0xff]
            %v902 = vld [vmem:[%s1 + $0x1d8] sm:$0xff]
            %v903 = vld [vmem:[%s1 + $0x1e0] sm:$0xff]
            %v904 = vld [vmem:[%s1 + $0x1e8] sm:$0xff]
            %v905 = vld [vmem:[%s1 + $0x1f0] sm:$0xff]
            %v906 = vld [vmem:[%s1 + $0x1f8] sm:$0xff]
            %v907 = vld [vmem:[%s1 + $0x200] sm:$0xff]
            %v908 = vld [vmem:[%s1 + $0x208] sm:$0xff]
            %v909 = vld [vmem:[%s1 + $0x210] sm:$0xff]
            %v910 = vld [vmem:[%s1 + $0x218] sm:$0xff]
            %v911 = vld [vmem:[%s1 + $0x220] sm:$0xff]
            %v912 = vld [vmem:[%s1 + $0x228] sm:$0xff]
            %v913 = vld [vmem:[%s1 + $0x230] sm:$0xff]
            %v914 = vld [vmem:[%s1 + $0x238] sm:$0xff]
            %v915 = vld [vmem:[%s1 + $0x240] sm:$0xff]
            %v916 = vld [vmem:[%s1 + $0x248] sm:$0xff]
            %v917 = vld [vmem:[%s1 + $0x250] sm:$0xff]
            %v918 = vld [vmem:[%s1 + $0x258] sm:$0xff]
            %v919 = vld [vmem:[%s1 + $0x260] sm:$0xff]
            %v920 = vld [vmem:[%s1 + $0x268] sm:$0xff]
            %v921 = vld [vmem:[%s1 + $0x270] sm:$0xff]
            %v922 = vld [vmem:[%s1 + $0x278] sm:$0xff]
            %v923 = vld [vmem:[%s1 + $0x280] sm:$0xff]
            %v924 = vld [vmem:[%s1 + $0x288] sm:$0xff]
            %v925 = vld [vmem:[%s1 + $0x290] sm:$0xff]
            %v926 = vld [vmem:[%s1 + $0x298] sm:$0xff]
            %v927 = vld [vmem:[%s1 + $0x2a0] sm:$0xff]
            %v928 = vld [vmem:[%s1 + $0x2a8] sm:$0xff]
            %v929 = vld [vmem:[%s1 + $0x2b0] sm:$0xff]
            %v930 = vld [vmem:[%s1 + $0x2b8] sm:$0xff]
            %v931 = vld [vmem:[%s1 + $0x2c0] sm:$0xff]
            %v932 = vld [vmem:[%s1 + $0x2c8] sm:$0xff]
            %v933 = vld [vmem:[%s1 + $0x2d0] sm:$0xff]
            %v934 = vld [vmem:[%s1 + $0x2d8] sm:$0xff]
            %v935 = vld [vmem:[%s1 + $0x2e0] sm:$0xff]
            %v936 = vld [vmem:[%s1 + $0x2e8] sm:$0xff]
            %v937 = vld [vmem:[%s1 + $0x2f0] sm:$0xff]
            %v938 = vld [vmem:[%s1 + $0x2f8] sm:$0xff]
            %v942 = vunpack.c.l.b16 %v840
            %v943 = vunpack.c.h.b16 %v840
            %v944 = vunpack.c.l.b16 %v841
            %v945 = vunpack.c.h.b16 %v841
            %v946 = vunpack.c.l.b16 %v842
            %v947 = vunpack.c.h.b16 %v842
            %v948 = vpack.c.b16 %v942, %v942
            %v949 = vpack.c.b16 %v943, %v943
            %v950 = vpack.c.b16 %v944, %v944
            %v951 = vpack.c.b16 %v945, %v945
            %v952 = vpack.c.b16 %v946, %v946
            %v953 = vpack.c.b16 %v947, %v947
            %v1056 = vunpack.c.l.b16 %v843
            %v1057 = vunpack.c.h.b16 %v843
            %v1058 = vunpack.c.l.b16 %v844
            %v1059 = vunpack.c.h.b16 %v844
            %v1060 = vunpack.c.l.b16 %v845
            %v1061 = vunpack.c.h.b16 %v845
            %v1062 = vunpack.c.l.b16 %v846
            %v1063 = vunpack.c.h.b16 %v846
            %v1064 = vunpack.c.l.b16 %v847
            %v1065 = vunpack.c.h.b16 %v847
            %v1066 = vunpack.c.l.b16 %v848
            %v1067 = vunpack.c.h.b16 %v848
            %v1068 = vunpack.c.l.b16 %v849
            %v1069 = vunpack.c.h.b16 %v849
            %v1070 = vunpack.c.l.b16 %v850
            %v1071 = vunpack.c.h.b16 %v850
            %v1072 = vunpack.c.l.b16 %v851
            %v1073 = vunpack.c.h.b16 %v851
            %v1074 = vunpack.c.l.b16 %v852
            %v1075 = vunpack.c.h.b16 %v852
            %v1076 = vunpack.c.l.b16 %v853
            %v1077 = vunpack.c.h.b16 %v853
            %v1078 = vunpack.c.l.b16 %v854
            %v1079 = vunpack.c.h.b16 %v854
            %v1080 = vunpack.c.l.b16 %v855
            %v1081 = vunpack.c.h.b16 %v855
            %v1082 = vunpack.c.l.b16 %v856
            %v1083 = vunpack.c.h.b16 %v856
            %v1084 = vunpack.c.l.b16 %v857
            %v1085 = vunpack.c.h.b16 %v857
            %v1086 = vunpack.c.l.b16 %v858
            %v1087 = vunpack.c.h.b16 %v858
            %v1088 = vunpack.c.l.b16 %v859
            %v1089 = vunpack.c.h.b16 %v859
            %v1090 = vunpack.c.l.b16 %v860
            %v1091 = vunpack.c.h.b16 %v860
            %v1092 = vunpack.c.l.b16 %v861
            %v1093 = vunpack.c.h.b16 %v861
            %v1094 = vunpack.c.l.b16 %v862
            %v1095 = vunpack.c.h.b16 %v862
            %v1096 = vunpack.c.l.b16 %v863
            %v1097 = vunpack.c.h.b16 %v863
            %v1098 = vunpack.c.l.b16 %v864
            %v1099 = vunpack.c.h.b16 %v864
            %v1100 = vunpack.c.l.b16 %v865
            %v1101 = vunpack.c.h.b16 %v865
            %v1102 = vunpack.c.l.b16 %v866
            %v1103 = vunpack.c.h.b16 %v866
            %v1104 = vunpack.c.l.b16 %v867
            %v1105 = vunpack.c.h.b16 %v867
            %v1106 = vunpack.c.l.b16 %v868
            %v1107 = vunpack.c.h.b16 %v868
            %v1108 = vunpack.c.l.b16 %v869
            %v1109 = vunpack.c.h.b16 %v869
            %v1110 = vunpack.c.l.b16 %v870
            %v1111 = vunpack.c.h.b16 %v870
            %v1112 = vunpack.c.l.b16 %v871
            %v1113 = vunpack.c.h.b16 %v871
            %v1114 = vunpack.c.l.b16 %v872
            %v1115 = vunpack.c.h.b16 %v872
            %v1116 = vunpack.c.l.b16 %v873
            %v1117 = vunpack.c.h.b16 %v873
            %v1118 = vunpack.c.l.b16 %v874
            %v1119 = vunpack.c.h.b16 %v874
            %v1120 = vunpack.c.l.b16 %v875
            %v1121 = vunpack.c.h.b16 %v875
            %v1122 = vunpack.c.l.b16 %v876
            %v1123 = vunpack.c.h.b16 %v876
            %v1124 = vunpack.c.l.b16 %v877
            %v1125 = vunpack.c.h.b16 %v877
            %v1126 = vunpack.c.l.b16 %v878
            %v1127 = vunpack.c.h.b16 %v878
            %v1128 = vunpack.c.l.b16 %v879
            %v1129 = vunpack.c.h.b16 %v879
            %v1130 = vunpack.c.l.b16 %v880
            %v1131 = vunpack.c.h.b16 %v880
            %v1132 = vunpack.c.l.b16 %v881
            %v1133 = vunpack.c.h.b16 %v881
            %v1134 = vunpack.c.l.b16 %v882
            %v1135 = vunpack.c.h.b16 %v882
            %v1136 = vunpack.c.l.b16 %v883
            %v1137 = vunpack.c.h.b16 %v883
            %v1138 = vunpack.c.l.b16 %v884
            %v1139 = vunpack.c.h.b16 %v884
            %v1140 = vunpack.c.l.b16 %v885
            %v1141 = vunpack.c.h.b16 %v885
            %v1142 = vunpack.c.l.b16 %v886
            %v1143 = vunpack.c.h.b16 %v886
            %v1144 = vunpack.c.l.b16 %v887
            %v1145 = vunpack.c.h.b16 %v887
            %v1146 = vunpack.c.l.b16 %v888
            %v1147 = vunpack.c.h.b16 %v888
            %v1148 = vunpack.c.l.b16 %v889
            %v1149 = vunpack.c.h.b16 %v889
            %v1150 = vunpack.c.l.b16 %v890
            %v1151 = vunpack.c.h.b16 %v890
            %v1152 = vunpack.c.l.b16 %v891
            %v1153 = vunpack.c.h.b16 %v891
            %v1154 = vunpack.c.l.b16 %v892
            %v1155 = vunpack.c.h.b16 %v892
            %v1156 = vunpack.c.l.b16 %v893
            %v1157 = vunpack.c.h.b16 %v893
            %v1158 = vunpack.c.l.b16 %v894
            %v1159 = vunpack.c.h.b16 %v894
            %v1160 = vunpack.c.l.b16 %v895
            %v1161 = vunpack.c.h.b16 %v895
            %v1162 = vunpack.c.l.b16 %v896
            %v1163 = vunpack.c.h.b16 %v896
            %v1164 = vunpack.c.l.b16 %v897
            %v1165 = vunpack.c.h.b16 %v897
            %v1166 = vunpack.c.l.b16 %v898
            %v1167 = vunpack.c.h.b16 %v898
            %v1168 = vunpack.c.l.b16 %v899
            %v1169 = vunpack.c.h.b16 %v899
            %v1170 = vunpack.c.l.b16 %v900
            %v1171 = vunpack.c.h.b16 %v900
            %v1172 = vunpack.c.l.b16 %v901
            %v1173 = vunpack.c.h.b16 %v901
            %v1174 = vunpack.c.l.b16 %v902
            %v1175 = vunpack.c.h.b16 %v902
            %v1176 = vunpack.c.l.b16 %v903
            %v1177 = vunpack.c.h.b16 %v903
            %v1178 = vunpack.c.l.b16 %v904
            %v1179 = vunpack.c.h.b16 %v904
            %v1180 = vunpack.c.l.b16 %v905
            %v1181 = vunpack.c.h.b16 %v905
            %v1182 = vunpack.c.l.b16 %v906
            %v1183 = vunpack.c.h.b16 %v906
            %v1184 = vunpack.c.l.b16 %v907
            %v1185 = vunpack.c.h.b16 %v907
            %v1186 = vunpack.c.l.b16 %v908
            %v1187 = vunpack.c.h.b16 %v908
            %v1188 = vunpack.c.l.b16 %v909
            %v1189 = vunpack.c.h.b16 %v909
            %v1190 = vunpack.c.l.b16 %v910
            %v1191 = vunpack.c.h.b16 %v910
            %v1192 = vunpack.c.l.b16 %v911
            %v1193 = vunpack.c.h.b16 %v911
            %v1194 = vunpack.c.l.b16 %v912
            %v1195 = vunpack.c.h.b16 %v912
            %v1196 = vunpack.c.l.b16 %v913
            %v1197 = vunpack.c.h.b16 %v913
            %v1198 = vunpack.c.l.b16 %v914
            %v1199 = vunpack.c.h.b16 %v914
            %v1200 = vunpack.c.l.b16 %v915
            %v1201 = vunpack.c.h.b16 %v915
            %v1202 = vunpack.c.l.b16 %v916
            %v1203 = vunpack.c.h.b16 %v916
            %v1204 = vunpack.c.l.b16 %v917
            %v1205 = vunpack.c.h.b16 %v917
            %v1206 = vunpack.c.l.b16 %v918
            %v1207 = vunpack.c.h.b16 %v918
            %v1208 = vunpack.c.l.b16 %v919
            %v1209 = vunpack.c.h.b16 %v919
            %v1210 = vunpack.c.l.b16 %v920
            %v1211 = vunpack.c.h.b16 %v920
            %v1212 = vunpack.c.l.b16 %v921
            %v1213 = vunpack.c.h.b16 %v921
            %v1214 = vunpack.c.l.b16 %v922
            %v1215 = vunpack.c.h.b16 %v922
            %v1216 = vunpack.c.l.b16 %v923
            %v1217 = vunpack.c.h.b16 %v923
            %v1218 = vunpack.c.l.b16 %v924
            %v1219 = vunpack.c.h.b16 %v924
            %v1220 = vunpack.c.l.b16 %v925
            %v1221 = vunpack.c.h.b16 %v925
            %v1222 = vunpack.c.l.b16 %v926
            %v1223 = vunpack.c.h.b16 %v926
            %v1224 = vunpack.c.l.b16 %v927
            %v1225 = vunpack.c.h.b16 %v927
            %v1226 = vunpack.c.l.b16 %v928
            %v1227 = vunpack.c.h.b16 %v928
            %v1228 = vunpack.c.l.b16 %v929
            %v1229 = vunpack.c.h.b16 %v929
            %v1230 = vunpack.c.l.b16 %v930
            %v1231 = vunpack.c.h.b16 %v930
            %v1232 = vunpack.c.l.b16 %v931
            %v1233 = vunpack.c.h.b16 %v931
            %v1234 = vunpack.c.l.b16 %v932
            %v1235 = vunpack.c.h.b16 %v932
            %v1236 = vunpack.c.l.b16 %v933
            %v1237 = vunpack.c.h.b16 %v933
            %v1238 = vunpack.c.l.b16 %v934
            %v1239 = vunpack.c.h.b16 %v934
            %v1240 = vunpack.c.l.b16 %v935
            %v1241 = vunpack.c.h.b16 %v935
            %v1242 = vunpack.c.l.b16 %v936
            %v1243 = vunpack.c.h.b16 %v936
            %v1244 = vunpack.c.l.b16 %v937
            %v1245 = vunpack.c.h.b16 %v937
            %v1246 = vunpack.c.l.b16 %v938
            %v1247 = vunpack.c.h.b16 %v938
            %v1248 = vpack.c.b16 %v1058, %v1056
            %v1249 = vpack.c.b16 %v1059, %v1057
            %v1250 = vpack.c.b16 %v1062, %v1060
            %v1251 = vpack.c.b16 %v1063, %v1061
            %v1252 = vpack.c.b16 %v1066, %v1064
            %v1253 = vpack.c.b16 %v1067, %v1065
            %v1254 = vpack.c.b16 %v1070, %v1068
            %v1255 = vpack.c.b16 %v1071, %v1069
            %v1256 = vpack.c.b16 %v1074, %v1072
            %v1257 = vpack.c.b16 %v1075, %v1073
            %v1258 = vpack.c.b16 %v1078, %v1076
            %v1259 = vpack.c.b16 %v1079, %v1077
            %v1260 = vpack.c.b16 %v1082, %v1080
            %v1261 = vpack.c.b16 %v1083, %v1081
            %v1262 = vpack.c.b16 %v1086, %v1084
            %v1263 = vpack.c.b16 %v1087, %v1085
            %v1264 = vpack.c.b16 %v1090, %v1088
            %v1265 = vpack.c.b16 %v1091, %v1089
            %v1266 = vpack.c.b16 %v1094, %v1092
            %v1267 = vpack.c.b16 %v1095, %v1093
            %v1268 = vpack.c.b16 %v1098, %v1096
            %v1269 = vpack.c.b16 %v1099, %v1097
            %v1270 = vpack.c.b16 %v1102, %v1100
            %v1271 = vpack.c.b16 %v1103, %v1101
            %v1272 = vpack.c.b16 %v1106, %v1104
            %v1273 = vpack.c.b16 %v1107, %v1105
            %v1274 = vpack.c.b16 %v1110, %v1108
            %v1275 = vpack.c.b16 %v1111, %v1109
            %v1276 = vpack.c.b16 %v1114, %v1112
            %v1277 = vpack.c.b16 %v1115, %v1113
            %v1278 = vpack.c.b16 %v1118, %v1116
            %v1279 = vpack.c.b16 %v1119, %v1117
            %v1280 = vpack.c.b16 %v1122, %v1120
            %v1281 = vpack.c.b16 %v1123, %v1121
            %v1282 = vpack.c.b16 %v1126, %v1124
            %v1283 = vpack.c.b16 %v1127, %v1125
            %v1284 = vpack.c.b16 %v1130, %v1128
            %v1285 = vpack.c.b16 %v1131, %v1129
            %v1286 = vpack.c.b16 %v1134, %v1132
            %v1287 = vpack.c.b16 %v1135, %v1133
            %v1288 = vpack.c.b16 %v1138, %v1136
            %v1289 = vpack.c.b16 %v1139, %v1137
            %v1290 = vpack.c.b16 %v1142, %v1140
            %v1291 = vpack.c.b16 %v1143, %v1141
            %v1292 = vpack.c.b16 %v1146, %v1144
            %v1293 = vpack.c.b16 %v1147, %v1145
            %v1294 = vpack.c.b16 %v1150, %v1148
            %v1295 = vpack.c.b16 %v1151, %v1149
            %v1296 = vpack.c.b16 %v1154, %v1152
            %v1297 = vpack.c.b16 %v1155, %v1153
            %v1298 = vpack.c.b16 %v1158, %v1156
            %v1299 = vpack.c.b16 %v1159, %v1157
            %v1300 = vpack.c.b16 %v1162, %v1160
            %v1301 = vpack.c.b16 %v1163, %v1161
            %v1302 = vpack.c.b16 %v1166, %v1164
            %v1303 = vpack.c.b16 %v1167, %v1165
            %v1304 = vpack.c.b16 %v1170, %v1168
            %v1305 = vpack.c.b16 %v1171, %v1169
            %v1306 = vpack.c.b16 %v1174, %v1172
            %v1307 = vpack.c.b16 %v1175, %v1173
            %v1308 = vpack.c.b16 %v1178, %v1176
            %v1309 = vpack.c.b16 %v1179, %v1177
            %v1310 = vpack.c.b16 %v1182, %v1180
            %v1311 = vpack.c.b16 %v1183, %v1181
            %v1312 = vpack.c.b16 %v1186, %v1184
            %v1313 = vpack.c.b16 %v1187, %v1185
            %v1314 = vpack.c.b16 %v1190, %v1188
            %v1315 = vpack.c.b16 %v1191, %v1189
            %v1316 = vpack.c.b16 %v1194, %v1192
            %v1317 = vpack.c.b16 %v1195, %v1193
            %v1318 = vpack.c.b16 %v1198, %v1196
            %v1319 = vpack.c.b16 %v1199, %v1197
            %v1320 = vpack.c.b16 %v1202, %v1200
            %v1321 = vpack.c.b16 %v1203, %v1201
            %v1322 = vpack.c.b16 %v1206, %v1204
            %v1323 = vpack.c.b16 %v1207, %v1205
            %v1324 = vpack.c.b16 %v1210, %v1208
            %v1325 = vpack.c.b16 %v1211, %v1209
            %v1326 = vpack.c.b16 %v1214, %v1212
            %v1327 = vpack.c.b16 %v1215, %v1213
            %v1328 = vpack.c.b16 %v1218, %v1216
            %v1329 = vpack.c.b16 %v1219, %v1217
            %v1330 = vpack.c.b16 %v1222, %v1220
            %v1331 = vpack.c.b16 %v1223, %v1221
            %v1332 = vpack.c.b16 %v1226, %v1224
            %v1333 = vpack.c.b16 %v1227, %v1225
            %v1334 = vpack.c.b16 %v1230, %v1228
            %v1335 = vpack.c.b16 %v1231, %v1229
            %v1336 = vpack.c.b16 %v1234, %v1232
            %v1337 = vpack.c.b16 %v1235, %v1233
            %v1338 = vpack.c.b16 %v1238, %v1236
            %v1339 = vpack.c.b16 %v1239, %v1237
            %v1340 = vpack.c.b16 %v1242, %v1240
            %v1341 = vpack.c.b16 %v1243, %v1241
            %v1342 = vpack.c.b16 %v1246, %v1244
            %v1343 = vpack.c.b16 %v1247, %v1245
            %1440 = vmatprep.subr.bf16.mxu0 %v1249
            %1441 = vmatpush1.bf16.msra.mxu0 %v1248
            %1442 = vmatprep.subr.bf16.mxu0 %v1251
            %1443 = vmatpush1.bf16.msra.mxu0 %v1250
            %1444 = vmatprep.subr.bf16.mxu0 %v1253
            %1445 = vmatpush1.bf16.msra.mxu0 %v1252
            %1446 = vmatprep.subr.bf16.mxu0 %v1255
            %1447 = vmatpush1.bf16.msra.mxu0 %v1254
            %1448 = vmatprep.subr.bf16.mxu0 %v1257
            %1449 = vmatpush1.bf16.msra.mxu0 %v1256
            %1450 = vmatprep.subr.bf16.mxu0 %v1259
            %1451 = vmatpush1.bf16.msra.mxu0 %v1258
            %1452 = vmatprep.subr.bf16.mxu0 %v1261
            %1453 = vmatpush1.bf16.msra.mxu0 %v1260
            %1454 = vmatprep.subr.bf16.mxu0 %v1263
            %1455 = vmatpush1.bf16.msra.mxu0 %v1262
            %1456 = vmatprep.subr.bf16.mxu0 %v1265
            %1457 = vmatpush1.bf16.msra.mxu0 %v1264
            %1458 = vmatprep.subr.bf16.mxu0 %v1267
            %1459 = vmatpush1.bf16.msra.mxu0 %v1266
            %1460 = vmatprep.subr.bf16.mxu0 %v1269
            %1461 = vmatpush1.bf16.msra.mxu0 %v1268
            %1462 = vmatprep.subr.bf16.mxu0 %v1271
            %1463 = vmatpush1.bf16.msra.mxu0 %v1270
            %1464 = vmatprep.subr.bf16.mxu0 %v1273
            %1465 = vmatpush1.bf16.msra.mxu0 %v1272
            %1466 = vmatprep.subr.bf16.mxu0 %v1275
            %1467 = vmatpush1.bf16.msra.mxu0 %v1274
            %1468 = vmatprep.subr.bf16.mxu0 %v1277
            %1469 = vmatpush1.bf16.msra.mxu0 %v1276
            %1470 = vmatprep.subr.bf16.mxu0 %v1279
            %1471 = vmatpush1.bf16.msra.mxu0 %v1278
            %1472 = vmatprep.mubr.bf16.mxu0 %v949
            %1473 = vmatmul.mubr.bf16.gmra.mrb[0].mxu0 %v948
            %v1474 = vpop.f32.mrb[0].mxu0
            %v1475 = vadd.f32 0.0, %v1474
            %v1476 = vpop.f32.mrb[0].mxu0
            %v1477 = vadd.f32 0.0, %v1476
            %v1478 = vpop.f32.mrb[0].mxu0
            %v1479 = vpop.f32.mrb[0].mxu0
            %1480 = vdwg.mxu0
            %1481 = vmatprep.subr.bf16.mxu0 %v1281
            %1482 = vmatpush1.bf16.msra.mxu0 %v1280
            %1483 = vmatprep.subr.bf16.mxu0 %v1283
            %1484 = vmatpush1.bf16.msra.mxu0 %v1282
            %1485 = vmatprep.subr.bf16.mxu0 %v1285
            %1486 = vmatpush1.bf16.msra.mxu0 %v1284
            %1487 = vmatprep.subr.bf16.mxu0 %v1287
            %1488 = vmatpush1.bf16.msra.mxu0 %v1286
            %1489 = vmatprep.subr.bf16.mxu0 %v1289
            %1490 = vmatpush1.bf16.msra.mxu0 %v1288
            %1491 = vmatprep.subr.bf16.mxu0 %v1291
            %1492 = vmatpush1.bf16.msra.mxu0 %v1290
            %1493 = vmatprep.subr.bf16.mxu0 %v1293
            %1494 = vmatpush1.bf16.msra.mxu0 %v1292
            %1495 = vmatprep.subr.bf16.mxu0 %v1295
            %1496 = vmatpush1.bf16.msra.mxu0 %v1294
            %1497 = vmatprep.subr.bf16.mxu0 %v1297
            %1498 = vmatpush1.bf16.msra.mxu0 %v1296
            %1499 = vmatprep.subr.bf16.mxu0 %v1299
            %1500 = vmatpush1.bf16.msra.mxu0 %v1298
            %1501 = vmatprep.subr.bf16.mxu0 %v1301
            %1502 = vmatpush1.bf16.msra.mxu0 %v1300
            %1503 = vmatprep.subr.bf16.mxu0 %v1303
            %1504 = vmatpush1.bf16.msra.mxu0 %v1302
            %1505 = vmatprep.subr.bf16.mxu0 %v1305
            %1506 = vmatpush1.bf16.msra.mxu0 %v1304
            %1507 = vmatprep.subr.bf16.mxu0 %v1307
            %1508 = vmatpush1.bf16.msra.mxu0 %v1306
            %1509 = vmatprep.subr.bf16.mxu0 %v1309
            %1510 = vmatpush1.bf16.msra.mxu0 %v1308
            %1511 = vmatprep.subr.bf16.mxu0 %v1311
            %1512 = vmatpush1.bf16.msra.mxu0 %v1310
            %1513 = vmatprep.mubr.bf16.mxu0 %v951
            %1514 = vmatmul.mubr.bf16.gmra.mrb[0].mxu0 %v950
            %v1515 = vpop.f32.mrb[0].mxu0
            %v1516 = vadd.f32 %v1475, %v1515
            %v1517 = vpop.f32.mrb[0].mxu0
            %v1518 = vadd.f32 %v1477, %v1517
            %v1519 = vpop.f32.mrb[0].mxu0
            %v1520 = vpop.f32.mrb[0].mxu0
            %1521 = vdwg.mxu0
            %1522 = vmatprep.subr.bf16.mxu0 %v1313
            %1523 = vmatpush1.bf16.msra.mxu0 %v1312
            %1524 = vmatprep.subr.bf16.mxu0 %v1315
            %1525 = vmatpush1.bf16.msra.mxu0 %v1314
            %1526 = vmatprep.subr.bf16.mxu0 %v1317
            %1527 = vmatpush1.bf16.msra.mxu0 %v1316
            %1528 = vmatprep.subr.bf16.mxu0 %v1319
            %1529 = vmatpush1.bf16.msra.mxu0 %v1318
            %1530 = vmatprep.subr.bf16.mxu0 %v1321
            %1531 = vmatpush1.bf16.msra.mxu0 %v1320
            %1532 = vmatprep.subr.bf16.mxu0 %v1323
            %1533 = vmatpush1.bf16.msra.mxu0 %v1322
            %1534 = vmatprep.subr.bf16.mxu0 %v1325
            %1535 = vmatpush1.bf16.msra.mxu0 %v1324
            %1536 = vmatprep.subr.bf16.mxu0 %v1327
            %1537 = vmatpush1.bf16.msra.mxu0 %v1326
            %1538 = vmatprep.subr.bf16.mxu0 %v1329
            %1539 = vmatpush1.bf16.msra.mxu0 %v1328
            %1540 = vmatprep.subr.bf16.mxu0 %v1331
            %1541 = vmatpush1.bf16.msra.mxu0 %v1330
            %1542 = vmatprep.subr.bf16.mxu0 %v1333
            %1543 = vmatpush1.bf16.msra.mxu0 %v1332
            %1544 = vmatprep.subr.bf16.mxu0 %v1335
            %1545 = vmatpush1.bf16.msra.mxu0 %v1334
            %1546 = vmatprep.subr.bf16.mxu0 %v1337
            %1547 = vmatpush1.bf16.msra.mxu0 %v1336
            %1548 = vmatprep.subr.bf16.mxu0 %v1339
            %1549 = vmatpush1.bf16.msra.mxu0 %v1338
            %1550 = vmatprep.subr.bf16.mxu0 %v1341
            %1551 = vmatpush1.bf16.msra.mxu0 %v1340
            %1552 = vmatprep.subr.bf16.mxu0 %v1343
            %1553 = vmatpush1.bf16.msra.mxu0 %v1342
            %1554 = vmatprep.mubr.bf16.mxu0 %v953
            %1555 = vmatmul.mubr.bf16.gmra.mrb[0].mxu0 %v952
            %v1556 = vpop.f32.mrb[0].mxu0
            %v1557 = vadd.f32 %v1516, %v1556
            %v1558 = vpop.f32.mrb[0].mxu0
            %v1559 = vadd.f32 %v1518, %v1558
            %v1560 = vpop.f32.mrb[0].mxu0
            %v1561 = vpop.f32.mrb[0].mxu0
            %1562 = vdwg.mxu0
            %v1563 = vld [vmem:[%s2] sm:$0xff]
            %v1564 = vld [vmem:[%s2 + $0x8] sm:$0xff]
            %v1565 = vadd.f32 %v1557, %v1563
            %v1566 = vadd.f32 %v1559, %v1564
            %1567 = vst [vmem:[#allocation2] sm:$0xff] %v1565
            %vm1568 = vcmask 523264
            %1569 = vst.msk [vmem:[#allocation2 + $0x8] sm:$0xff] %vm1568, %v1566
        $region96: #{vit_forward_fused.1} parent=91 // pred_fallthru
          _
        %v1570 = vld [vmem:[#allocation2] sm:$0xff]
        %v1571 = vld [vmem:[#allocation2 + $0x8] sm:$0xff]
        %v1572 = vld [vmem:[%s733] sm:$0x3]
        %v1573 = vld [vmem:[%s737] sm:$0x3]
        %vm1574 = vcmask 523264
        %v1575 = vsel %vm1574, %v1571, 0.0
        %v1576 = vadd.f32 %v1570, %v1575
        %1577 = vadd.xlane.f32.xlu0 %v1576
        %v1578 = vpop.xlane.xlu0 %1577
        %v1579 = vrcp.pop 192.0
        %v1580 = vmul.f32 %v1578, %v1579
        %v1581 = vsub.f32 %v1570, %v1580
        %v1582 = vsub.f32 %v1571, %v1580
        %v1583 = vmul.f32 %v1581, %v1581
        %v1584 = vmul.f32 %v1582, %v1582
        %v1585 = vsel %vm1574, %v1584, 0.0
        %v1586 = vadd.f32 %v1583, %v1585
        %1587 = vadd.xlane.f32.xlu0 %v1586
        %v1588 = vpop.xlane.xlu0 %1587
        %v1589 = vmul.f32 %v1588, %v1579
        %v1590 = vadd.f32 %v1589, 1e-06
        %v1591 = vrsqrt.pop %v1590
        %v1592 = vmul.f32 %v1581, %v1591
        %v1593 = vmul.f32 %v1582, %v1591
        %v1595 = vlaneseq
        %v1596 = vshrl.u32 %v1595, 7
        %v1597 = vsub.s32 0, %v1596
        %v1598 = vrot.slane %v1572, %v1597
        %v1599 = vlaneseq
        %v1600 = vshrl.u32 %v1599, 7
        %v1601 = vsub.s32 1, %v1600
        %v1602 = vrot.slane %v1572, %v1601
        %v1605 = vmul.f32 %v1592, %v1598
        %v1606 = vmul.f32 %v1593, %v1602
        %v1608 = vlaneseq
        %v1609 = vshrl.u32 %v1608, 7
        %v1610 = vsub.s32 0, %v1609
        %v1611 = vrot.slane %v1573, %v1610
        %v1612 = vlaneseq
        %v1613 = vshrl.u32 %v1612, 7
        %v1614 = vsub.s32 1, %v1613
        %v1615 = vrot.slane %v1573, %v1614
        %v1618 = vadd.f32 %v1605, %v1611
        %v1619 = vadd.f32 %v1606, %v1615
        %v1620 = vpack.c.bf16 %v1618, %v1618
        %v1621 = vpack.c.bf16 %v1619, %v1619
        %v1622 = vld [vmem:[%s742] sm:$0xff]
        %v1623 = vld [vmem:[%s742 + $0x8] sm:$0xff]
        %v1624 = vld [vmem:[%s742 + $0x10] sm:$0xf]
        %v1625 = vld [vmem:[%s742 + $0x14] sm:$0xff]
        %v1626 = vld [vmem:[%s742 + $0x1c] sm:$0xff]
        %v1627 = vld [vmem:[%s742 + $0x24] sm:$0xf]
        %v1628 = vld [vmem:[%s742 + $0x28] sm:$0xff]
        %v1629 = vld [vmem:[%s742 + $0x30] sm:$0xff]
        %v1630 = vld [vmem:[%s742 + $0x38] sm:$0xf]
        %v1631 = vld [vmem:[%s742 + $0x3c] sm:$0xff]
        %v1632 = vld [vmem:[%s742 + $0x44] sm:$0xff]
        %v1633 = vld [vmem:[%s742 + $0x4c] sm:$0xf]
        %v1634 = vld [vmem:[%s742 + $0x50] sm:$0xff]
        %v1635 = vld [vmem:[%s742 + $0x58] sm:$0xff]
        %v1636 = vld [vmem:[%s742 + $0x60] sm:$0xf]
        %v1637 = vld [vmem:[%s742 + $0x64] sm:$0xff]
        %v1638 = vld [vmem:[%s742 + $0x6c] sm:$0xff]
        %v1639 = vld [vmem:[%s742 + $0x74] sm:$0xf]
        %v1640 = vld [vmem:[%s742 + $0x78] sm:$0xff]
        %v1641 = vld [vmem:[%s742 + $0x80] sm:$0xff]
        %v1642 = vld [vmem:[%s742 + $0x88] sm:$0xf]
        %v1643 = vld [vmem:[%s742 + $0x8c] sm:$0xff]
        %v1644 = vld [vmem:[%s742 + $0x94] sm:$0xff]
        %v1645 = vld [vmem:[%s742 + $0x9c] sm:$0xf]
        %v1646 = vld [vmem:[%s742 + $0xa0] sm:$0xff]
        %v1647 = vld [vmem:[%s742 + $0xa8] sm:$0xff]
        %v1648 = vld [vmem:[%s742 + $0xb0] sm:$0xf]
        %v1649 = vld [vmem:[%s742 + $0xb4] sm:$0xff]
        %v1650 = vld [vmem:[%s742 + $0xbc] sm:$0xff]
        %v1651 = vld [vmem:[%s742 + $0xc4] sm:$0xf]
        %v1652 = vld [vmem:[%s742 + $0xc8] sm:$0xff]
        %v1653 = vld [vmem:[%s742 + $0xd0] sm:$0xff]
        %v1654 = vld [vmem:[%s742 + $0xd8] sm:$0xf]
        %v1655 = vld [vmem:[%s742 + $0xdc] sm:$0xff]
        %v1656 = vld [vmem:[%s742 + $0xe4] sm:$0xff]
        %v1657 = vld [vmem:[%s742 + $0xec] sm:$0xf]
        %v1658 = vld [vmem:[%s742 + $0xf0] sm:$0xff]
        %v1659 = vld [vmem:[%s742 + $0xf8] sm:$0xff]
        %v1660 = vld [vmem:[%s742 + $0x100] sm:$0xf]
        %v1661 = vld [vmem:[%s742 + $0x104] sm:$0xff]
        %v1662 = vld [vmem:[%s742 + $0x10c] sm:$0xff]
        %v1663 = vld [vmem:[%s742 + $0x114] sm:$0xf]
        %v1664 = vld [vmem:[%s742 + $0x118] sm:$0xff]
        %v1665 = vld [vmem:[%s742 + $0x120] sm:$0xff]
        %v1666 = vld [vmem:[%s742 + $0x128] sm:$0xf]
        %v1667 = vld [vmem:[%s742 + $0x12c] sm:$0xff]
        %v1668 = vld [vmem:[%s742 + $0x134] sm:$0xff]
        %v1669 = vld [vmem:[%s742 + $0x13c] sm:$0xf]
        %v1670 = vld [vmem:[%s742 + $0x140] sm:$0xff]
        %v1671 = vld [vmem:[%s742 + $0x148] sm:$0xff]
        %v1672 = vld [vmem:[%s742 + $0x150] sm:$0xf]
        %v1673 = vld [vmem:[%s742 + $0x154] sm:$0xff]
        %v1674 = vld [vmem:[%s742 + $0x15c] sm:$0xff]
        %v1675 = vld [vmem:[%s742 + $0x164] sm:$0xf]
        %v1676 = vld [vmem:[%s742 + $0x168] sm:$0xff]
        %v1677 = vld [vmem:[%s742 + $0x170] sm:$0xff]
        %v1678 = vld [vmem:[%s742 + $0x178] sm:$0xf]
        %v1679 = vld [vmem:[%s742 + $0x17c] sm:$0xff]
        %v1680 = vld [vmem:[%s742 + $0x184] sm:$0xff]
        %v1681 = vld [vmem:[%s742 + $0x18c] sm:$0xf]
        %v1682 = vld [vmem:[%s742 + $0x190] sm:$0xff]
        %v1683 = vld [vmem:[%s742 + $0x198] sm:$0xff]
        %v1684 = vld [vmem:[%s742 + $0x1a0] sm:$0xf]
        %v1685 = vld [vmem:[%s742 + $0x1a4] sm:$0xff]
        %v1686 = vld [vmem:[%s742 + $0x1ac] sm:$0xff]
        %v1687 = vld [vmem:[%s742 + $0x1b4] sm:$0xf]
        %v1688 = vld [vmem:[%s742 + $0x1b8] sm:$0xff]
        %v1689 = vld [vmem:[%s742 + $0x1c0] sm:$0xff]
        %v1690 = vld [vmem:[%s742 + $0x1c8] sm:$0xf]
        %v1691 = vld [vmem:[%s742 + $0x1cc] sm:$0xff]
        %v1692 = vld [vmem:[%s742 + $0x1d4] sm:$0xff]
        %v1693 = vld [vmem:[%s742 + $0x1dc] sm:$0xf]
        %v1694 = vld [vmem:[%s746] sm:$0x1f]
        %v1696 = vlaneseq
        %v1697 = vshrl.u32 %v1696, 7
        %v1698 = vsub.s32 0, %v1697
        %v1699 = vrot.slane %v1694, %v1698
        %v1700 = vlaneseq
        %v1701 = vshrl.u32 %v1700, 7
        %v1702 = vsub.s32 1, %v1701
        %v1703 = vrot.slane %v1694, %v1702
        %v1704 = vlaneseq
        %v1705 = vshrl.u32 %v1704, 7
        %v1706 = vsub.s32 2, %v1705
        %v1707 = vrot.slane %v1694, %v1706
        %v1708 = vlaneseq
        %v1709 = vshrl.u32 %v1708, 7
        %v1710 = vsub.s32 3, %v1709
        %v1711 = vrot.slane %v1694, %v1710
        %v1712 = vlaneseq
        %v1713 = vshrl.u32 %v1712, 7
        %v1714 = vsub.s32 4, %v1713
        %v1715 = vrot.slane %v1694, %v1714
        %v1793 = vunpack.c.l.b16 %v1622
        %v1794 = vunpack.c.h.b16 %v1622
        %v1795 = vunpack.c.l.b16 %v1623
        %v1796 = vunpack.c.h.b16 %v1623
        %v1797 = vunpack.c.l.b16 %v1624
        %v1798 = vunpack.c.l.b16 %v1625
        %v1799 = vunpack.c.h.b16 %v1625
        %v1800 = vunpack.c.l.b16 %v1626
        %v1801 = vunpack.c.h.b16 %v1626
        %v1802 = vunpack.c.l.b16 %v1627
        %v1803 = vunpack.c.l.b16 %v1628
        %v1804 = vunpack.c.h.b16 %v1628
        %v1805 = vunpack.c.l.b16 %v1629
        %v1806 = vunpack.c.h.b16 %v1629
        %v1807 = vunpack.c.l.b16 %v1630
        %v1808 = vunpack.c.l.b16 %v1631
        %v1809 = vunpack.c.h.b16 %v1631
        %v1810 = vunpack.c.l.b16 %v1632
        %v1811 = vunpack.c.h.b16 %v1632
        %v1812 = vunpack.c.l.b16 %v1633
        %v1813 = vunpack.c.l.b16 %v1634
        %v1814 = vunpack.c.h.b16 %v1634
        %v1815 = vunpack.c.l.b16 %v1635
        %v1816 = vunpack.c.h.b16 %v1635
        %v1817 = vunpack.c.l.b16 %v1636
        %v1818 = vunpack.c.l.b16 %v1637
        %v1819 = vunpack.c.h.b16 %v1637
        %v1820 = vunpack.c.l.b16 %v1638
        %v1821 = vunpack.c.h.b16 %v1638
        %v1822 = vunpack.c.l.b16 %v1639
        %v1823 = vunpack.c.l.b16 %v1640
        %v1824 = vunpack.c.h.b16 %v1640
        %v1825 = vunpack.c.l.b16 %v1641
        %v1826 = vunpack.c.h.b16 %v1641
        %v1827 = vunpack.c.l.b16 %v1642
        %v1828 = vunpack.c.l.b16 %v1643
        %v1829 = vunpack.c.h.b16 %v1643
        %v1830 = vunpack.c.l.b16 %v1644
        %v1831 = vunpack.c.h.b16 %v1644
        %v1832 = vunpack.c.l.b16 %v1645
        %v1833 = vunpack.c.l.b16 %v1646
        %v1834 = vunpack.c.h.b16 %v1646
        %v1835 = vunpack.c.l.b16 %v1647
        %v1836 = vunpack.c.h.b16 %v1647
        %v1837 = vunpack.c.l.b16 %v1648
        %v1838 = vunpack.c.l.b16 %v1649
        %v1839 = vunpack.c.h.b16 %v1649
        %v1840 = vunpack.c.l.b16 %v1650
        %v1841 = vunpack.c.h.b16 %v1650
        %v1842 = vunpack.c.l.b16 %v1651
        %v1843 = vunpack.c.l.b16 %v1652
        %v1844 = vunpack.c.h.b16 %v1652
        %v1845 = vunpack.c.l.b16 %v1653
        %v1846 = vunpack.c.h.b16 %v1653
        %v1847 = vunpack.c.l.b16 %v1654
        %v1848 = vunpack.c.l.b16 %v1655
        %v1849 = vunpack.c.h.b16 %v1655
        %v1850 = vunpack.c.l.b16 %v1656
        %v1851 = vunpack.c.h.b16 %v1656
        %v1852 = vunpack.c.l.b16 %v1657
        %v1853 = vunpack.c.l.b16 %v1658
        %v1854 = vunpack.c.h.b16 %v1658
        %v1855 = vunpack.c.l.b16 %v1659
        %v1856 = vunpack.c.h.b16 %v1659
        %v1857 = vunpack.c.l.b16 %v1660
        %v1858 = vunpack.c.l.b16 %v1661
        %v1859 = vunpack.c.h.b16 %v1661
        %v1860 = vunpack.c.l.b16 %v1662
        %v1861 = vunpack.c.h.b16 %v1662
        %v1862 = vunpack.c.l.b16 %v1663
        %v1863 = vunpack.c.l.b16 %v1664
        %v1864 = vunpack.c.h.b16 %v1664
        %v1865 = vunpack.c.l.b16 %v1665
        %v1866 = vunpack.c.h.b16 %v1665
        %v1867 = vunpack.c.l.b16 %v1666
        %v1868 = vunpack.c.l.b16 %v1667
        %v1869 = vunpack.c.h.b16 %v1667
        %v1870 = vunpack.c.l.b16 %v1668
        %v1871 = vunpack.c.h.b16 %v1668
        %v1872 = vunpack.c.l.b16 %v1669
        %v1873 = vunpack.c.l.b16 %v1670
        %v1874 = vunpack.c.h.b16 %v1670
        %v1875 = vunpack.c.l.b16 %v1671
        %v1876 = vunpack.c.h.b16 %v1671
        %v1877 = vunpack.c.l.b16 %v1672
        %v1878 = vunpack.c.l.b16 %v1673
        %v1879 = vunpack.c.h.b16 %v1673
        %v1880 = vunpack.c.l.b16 %v1674
        %v1881 = vunpack.c.h.b16 %v1674
        %v1882 = vunpack.c.l.b16 %v1675
        %v1883 = vunpack.c.l.b16 %v1676
        %v1884 = vunpack.c.h.b16 %v1676
        %v1885 = vunpack.c.l.b16 %v1677
        %v1886 = vunpack.c.h.b16 %v1677
        %v1887 = vunpack.c.l.b16 %v1678
        %v1888 = vunpack.c.l.b16 %v1679
        %v1889 = vunpack.c.h.b16 %v1679
        %v1890 = vunpack.c.l.b16 %v1680
        %v1891 = vunpack.c.h.b16 %v1680
        %v1892 = vunpack.c.l.b16 %v1681
        %v1893 = vunpack.c.l.b16 %v1682
        %v1894 = vunpack.c.h.b16 %v1682
        %v1895 = vunpack.c.l.b16 %v1683
        %v1896 = vunpack.c.h.b16 %v1683
        %v1897 = vunpack.c.l.b16 %v1684
        %v1898 = vunpack.c.l.b16 %v1685
        %v1899 = vunpack.c.h.b16 %v1685
        %v1900 = vunpack.c.l.b16 %v1686
        %v1901 = vunpack.c.h.b16 %v1686
        %v1902 = vunpack.c.l.b16 %v1687
        %v1903 = vunpack.c.l.b16 %v1688
        %v1904 = vunpack.c.h.b16 %v1688
        %v1905 = vunpack.c.l.b16 %v1689
        %v1906 = vunpack.c.h.b16 %v1689
        %v1907 = vunpack.c.l.b16 %v1690
        %v1908 = vunpack.c.l.b16 %v1691
        %v1909 = vunpack.c.h.b16 %v1691
        %v1910 = vunpack.c.l.b16 %v1692
        %v1911 = vunpack.c.h.b16 %v1692
        %v1912 = vunpack.c.l.b16 %v1693
        %v1913 = vpack.c.b16 %v1798, %v1793
        %v1914 = vpack.c.b16 %v1799, %v1794
        %v1915 = vpack.c.b16 %v1800, %v1795
        %v1916 = vpack.c.b16 %v1801, %v1796
        %v1917 = vpack.c.b16 %v1802, %v1797
        %v1918 = vpack.c.b16 %v1808, %v1803
        %v1919 = vpack.c.b16 %v1809, %v1804
        %v1920 = vpack.c.b16 %v1810, %v1805
        %v1921 = vpack.c.b16 %v1811, %v1806
        %v1922 = vpack.c.b16 %v1812, %v1807
        %v1923 = vpack.c.b16 %v1818, %v1813
        %v1924 = vpack.c.b16 %v1819, %v1814
        %v1925 = vpack.c.b16 %v1820, %v1815
        %v1926 = vpack.c.b16 %v1821, %v1816
        %v1927 = vpack.c.b16 %v1822, %v1817
        %v1928 = vpack.c.b16 %v1828, %v1823
        %v1929 = vpack.c.b16 %v1829, %v1824
        %v1930 = vpack.c.b16 %v1830, %v1825
        %v1931 = vpack.c.b16 %v1831, %v1826
        %v1932 = vpack.c.b16 %v1832, %v1827
        %v1933 = vpack.c.b16 %v1838, %v1833
        %v1934 = vpack.c.b16 %v1839, %v1834
        %v1935 = vpack.c.b16 %v1840, %v1835
        %v1936 = vpack.c.b16 %v1841, %v1836
        %v1937 = vpack.c.b16 %v1842, %v1837
        %v1938 = vpack.c.b16 %v1848, %v1843
        %v1939 = vpack.c.b16 %v1849, %v1844
        %v1940 = vpack.c.b16 %v1850, %v1845
        %v1941 = vpack.c.b16 %v1851, %v1846
        %v1942 = vpack.c.b16 %v1852, %v1847
        %v1943 = vpack.c.b16 %v1858, %v1853
        %v1944 = vpack.c.b16 %v1859, %v1854
        %v1945 = vpack.c.b16 %v1860, %v1855
        %v1946 = vpack.c.b16 %v1861, %v1856
        %v1947 = vpack.c.b16 %v1862, %v1857
        %v1948 = vpack.c.b16 %v1868, %v1863
        %v1949 = vpack.c.b16 %v1869, %v1864
        %v1950 = vpack.c.b16 %v1870, %v1865
        %v1951 = vpack.c.b16 %v1871, %v1866
        %v1952 = vpack.c.b16 %v1872, %v1867
        %v1953 = vpack.c.b16 %v1878, %v1873
        %v1954 = vpack.c.b16 %v1879, %v1874
        %v1955 = vpack.c.b16 %v1880, %v1875
        %v1956 = vpack.c.b16 %v1881, %v1876
        %v1957 = vpack.c.b16 %v1882, %v1877
        %v1958 = vpack.c.b16 %v1888, %v1883
        %v1959 = vpack.c.b16 %v1889, %v1884
        %v1960 = vpack.c.b16 %v1890, %v1885
        %v1961 = vpack.c.b16 %v1891, %v1886
        %v1962 = vpack.c.b16 %v1892, %v1887
        %v1963 = vpack.c.b16 %v1898, %v1893
        %v1964 = vpack.c.b16 %v1899, %v1894
        %v1965 = vpack.c.b16 %v1900, %v1895
        %v1966 = vpack.c.b16 %v1901, %v1896
        %v1967 = vpack.c.b16 %v1902, %v1897
        %v1968 = vpack.c.b16 %v1908, %v1903
        %v1969 = vpack.c.b16 %v1909, %v1904
        %v1970 = vpack.c.b16 %v1910, %v1905
        %v1971 = vpack.c.b16 %v1911, %v1906
        %v1972 = vpack.c.b16 %v1912, %v1907
        %v2034 = vsel %vm1574, %v1621, 0
        %2036 = vmatprep.subr.bf16.mxu0 %v1914
        %2037 = vmatpush1.bf16.msra.mxu0 %v1913
        %2038 = vmatprep.subr.bf16.mxu0 %v1919
        %2039 = vmatpush1.bf16.msra.mxu0 %v1918
        %2040 = vmatprep.subr.bf16.mxu0 %v1924
        %2041 = vmatpush1.bf16.msra.mxu0 %v1923
        %2042 = vmatprep.subr.bf16.mxu0 %v1929
        %2043 = vmatpush1.bf16.msra.mxu0 %v1928
        %2044 = vmatprep.subr.bf16.mxu0 %v1934
        %2045 = vmatpush1.bf16.msra.mxu0 %v1933
        %2046 = vmatprep.subr.bf16.mxu0 %v1939
        %2047 = vmatpush1.bf16.msra.mxu0 %v1938
        %2048 = vmatprep.subr.bf16.mxu0 %v1944
        %2049 = vmatpush1.bf16.msra.mxu0 %v1943
        %2050 = vmatprep.subr.bf16.mxu0 %v1949
        %2051 = vmatpush1.bf16.msra.mxu0 %v1948
        %2052 = vmatprep.subr.bf16.mxu0 %v1954
        %2053 = vmatpush1.bf16.msra.mxu0 %v1953
        %2054 = vmatprep.subr.bf16.mxu0 %v1959
        %2055 = vmatpush1.bf16.msra.mxu0 %v1958
        %2056 = vmatprep.subr.bf16.mxu0 %v1964
        %2057 = vmatpush1.bf16.msra.mxu0 %v1963
        %2058 = vmatprep.subr.bf16.mxu0 %v1969
        %2059 = vmatpush1.bf16.msra.mxu0 %v1968
        %2060 = vmatprep.subr.bf16.mxu0 0
        %2061 = vmatpush1.bf16.msra.mxu0 0
        %2062 = vmatprep.subr.bf16.mxu0 0
        %2063 = vmatpush1.bf16.msra.mxu0 0
        %2064 = vmatprep.subr.bf16.mxu0 0
        %2065 = vmatpush1.bf16.msra.mxu0 0
        %2066 = vmatprep.subr.bf16.mxu0 0
        %2067 = vmatpush1.bf16.msra.mxu0 0
        %2068 = vmatprep.mubr.bf16.mxu0 %v2034
        %2069 = vmatmul.mubr.bf16.gmra.mrb[0].mxu0 %v1620
        %v2070 = vpop.f32.mrb[0].mxu0
        %v2071 = vadd.f32 %v1699, %v2070
        %v2072 = vpop.f32.mrb[0].mxu0
        %v2073 = vadd.f32 %v1703, %v2072
        %v2074 = vpop.f32.mrb[0].mxu0
        %v2075 = vpop.f32.mrb[0].mxu0
        %2076 = vdwg.mxu0
        %2077 = vmatprep.subr.bf16.mxu0 %v1916
        %2078 = vmatpush1.bf16.msra.mxu0 %v1915
        %2079 = vmatprep.subr.bf16.mxu0 %v1921
        %2080 = vmatpush1.bf16.msra.mxu0 %v1920
        %2081 = vmatprep.subr.bf16.mxu0 %v1926
        %2082 = vmatpush1.bf16.msra.mxu0 %v1925
        %2083 = vmatprep.subr.bf16.mxu0 %v1931
        %2084 = vmatpush1.bf16.msra.mxu0 %v1930
        %2085 = vmatprep.subr.bf16.mxu0 %v1936
        %2086 = vmatpush1.bf16.msra.mxu0 %v1935
        %2087 = vmatprep.subr.bf16.mxu0 %v1941
        %2088 = vmatpush1.bf16.msra.mxu0 %v1940
        %2089 = vmatprep.subr.bf16.mxu0 %v1946
        %2090 = vmatpush1.bf16.msra.mxu0 %v1945
        %2091 = vmatprep.subr.bf16.mxu0 %v1951
        %2092 = vmatpush1.bf16.msra.mxu0 %v1950
        %2093 = vmatprep.subr.bf16.mxu0 %v1956
        %2094 = vmatpush1.bf16.msra.mxu0 %v1955
        %2095 = vmatprep.subr.bf16.mxu0 %v1961
        %2096 = vmatpush1.bf16.msra.mxu0 %v1960
        %2097 = vmatprep.subr.bf16.mxu0 %v1966
        %2098 = vmatpush1.bf16.msra.mxu0 %v1965
        %2099 = vmatprep.subr.bf16.mxu0 %v1971
        %2100 = vmatpush1.bf16.msra.mxu0 %v1970
        %2101 = vmatprep.subr.bf16.mxu0 0
        %2102 = vmatpush1.bf16.msra.mxu0 0
        %2103 = vmatprep.subr.bf16.mxu0 0
        %2104 = vmatpush1.bf16.msra.mxu0 0
        %2105 = vmatprep.subr.bf16.mxu0 0
        %2106 = vmatpush1.bf16.msra.mxu0 0
        %2107 = vmatprep.subr.bf16.mxu0 0
        %2108 = vmatpush1.bf16.msra.mxu0 0
        %2109 = vmatprep.mubr.bf16.mxu0 %v2034
        %2110 = vmatmul.mubr.bf16.gmra.mrb[0].mxu0 %v1620
        %v2111 = vpop.f32.mrb[0].mxu0
        %v2112 = vadd.f32 %v1707, %v2111
        %v2113 = vpop.f32.mrb[0].mxu0
        %v2114 = vadd.f32 %v1711, %v2113
        %v2115 = vpop.f32.mrb[0].mxu0
        %v2116 = vpop.f32.mrb[0].mxu0
        %2117 = vdwg.mxu0
        %2118 = vmatprep.subr.bf16.mxu0 0
        %2119 = vmatpush1.bf16.msra.mxu0 %v1917
        %2120 = vmatprep.subr.bf16.mxu0 0
        %2121 = vmatpush1.bf16.msra.mxu0 %v1922
        %2122 = vmatprep.subr.bf16.mxu0 0
        %2123 = vmatpush1.bf16.msra.mxu0 %v1927
        %2124 = vmatprep.subr.bf16.mxu0 0
        %2125 = vmatpush1.bf16.msra.mxu0 %v1932
        %2126 = vmatprep.subr.bf16.mxu0 0
        %2127 = vmatpush1.bf16.msra.mxu0 %v1937
        %2128 = vmatprep.subr.bf16.mxu0 0
        %2129 = vmatpush1.bf16.msra.mxu0 %v1942
        %2130 = vmatprep.subr.bf16.mxu0 0
        %2131 = vmatpush1.bf16.msra.mxu0 %v1947
        %2132 = vmatprep.subr.bf16.mxu0 0
        %2133 = vmatpush1.bf16.msra.mxu0 %v1952
        %2134 = vmatprep.subr.bf16.mxu0 0
        %2135 = vmatpush1.bf16.msra.mxu0 %v1957
        %2136 = vmatprep.subr.bf16.mxu0 0
        %2137 = vmatpush1.bf16.msra.mxu0 %v1962
        %2138 = vmatprep.subr.bf16.mxu0 0
        %2139 = vmatpush1.bf16.msra.mxu0 %v1967
        %2140 = vmatprep.subr.bf16.mxu0 0
        %2141 = vmatpush1.bf16.msra.mxu0 %v1972
        %2142 = vmatprep.subr.bf16.mxu0 0
        %2143 = vmatpush1.bf16.msra.mxu0 0
        %2144 = vmatprep.subr.bf16.mxu0 0
        %2145 = vmatpush1.bf16.msra.mxu0 0
        %2146 = vmatprep.subr.bf16.mxu0 0
        %2147 = vmatpush1.bf16.msra.mxu0 0
        %2148 = vmatprep.subr.bf16.mxu0 0
        %2149 = vmatpush1.bf16.msra.mxu0 0
        %2150 = vmatprep.mubr.bf16.mxu0 %v2034
        %2151 = vmatmul.mubr.bf16.gmra.mrb[0].mxu0 %v1620
        %v2152 = vpop.f32.mrb[0].mxu0
        %v2153 = vadd.f32 %v1715, %v2152
        %v2154 = vpop.f32.mrb[0].mxu0
        %v2155 = vpop.f32.mrb[0].mxu0
        %v2156 = vpop.f32.mrb[0].mxu0
        %2157 = vdwg.mxu0
        %v2158 = vlaneseq
        %v2159 = vand.u32 %v2158, 127
        %vm2160 = vcmp.lt.s32.totalorder %v2159, 5
        %v2161 = vld [vmem:[%s751] sm:$0xff]
        %v2162 = vld [vmem:[%s751 + $0x8] sm:$0xff]
        %v2163 = vld [vmem:[%s751 + $0x10] sm:$0xff]
        %v2164 = vld [vmem:[%s751 + $0x18] sm:$0xff]
        %v2165 = vld [vmem:[%s751 + $0x20] sm:$0xff]
        %v2166 = vld [vmem:[%s751 + $0x28] sm:$0xff]
        %v2167 = vld [vmem:[%s751 + $0x30] sm:$0xff]
        %v2168 = vld [vmem:[%s751 + $0x38] sm:$0xff]
        %v2169 = vld [vmem:[%s751 + $0x40] sm:$0xff]
        %v2170 = vld [vmem:[%s751 + $0x48] sm:$0xff]
        %v2171 = vld [vmem:[%s751 + $0x50] sm:$0xff]
        %v2172 = vld [vmem:[%s751 + $0x58] sm:$0xff]
        %v2173 = vld [vmem:[%s751 + $0x60] sm:$0xff]
        %v2174 = vld [vmem:[%s751 + $0x68] sm:$0xff]
        %v2175 = vld [vmem:[%s751 + $0x70] sm:$0xff]
        %v2176 = vld [vmem:[%s751 + $0x78] sm:$0xff]
        %v2177 = vld [vmem:[%s751 + $0x80] sm:$0xff]
        %v2178 = vld [vmem:[%s751 + $0x88] sm:$0xff]
        %v2179 = vld [vmem:[%s751 + $0x90] sm:$0xff]
        %v2180 = vld [vmem:[%s751 + $0x98] sm:$0xff]
        %v2181 = vld [vmem:[%s751 + $0xa0] sm:$0xff]
        %v2182 = vld [vmem:[%s751 + $0xa8] sm:$0xff]
        %v2183 = vld [vmem:[%s751 + $0xb0] sm:$0xff]
        %v2184 = vld [vmem:[%s751 + $0xb8] sm:$0xff]
        %v2185 = vmul.f32 %v2071, 0.125
        %v2186 = vpack.c.bf16 %v2185, %v2185
        %v2187 = vpack.c.bf16 %v2073, %v2073
        %2189 = vrot.lane.b32.xlu0 %v2187, 64
        %v2190 = vpop.permute.xlu0 %2189
        %v2192 = vsel %vm1574, %v2186, 0
        %v2195 = vsel %vm1574, %v2190, 0
        %2197 = vmatprep.subr.bf16.mxu0 0
        %2198 = vmatpush1.bf16.xpose.msra.mxu0 %v2195
        %2199 = vmatprep.subr.bf16.mxu0 0
        %2200 = vmatpush1.bf16.xpose.msra.mxu0 0
        %2201 = vmatprep.subr.bf16.mxu0 0
        %2202 = vmatpush1.bf16.xpose.msra.mxu0 0
        %2203 = vmatprep.subr.bf16.mxu0 0
        %2204 = vmatpush1.bf16.xpose.msra.mxu0 0
        %2205 = vmatprep.subr.bf16.mxu0 0
        %2206 = vmatpush1.bf16.xpose.msra.mxu0 0
        %2207 = vmatprep.subr.bf16.mxu0 0
        %2208 = vmatpush1.bf16.xpose.msra.mxu0 0
        %2209 = vmatprep.subr.bf16.mxu0 0
        %2210 = vmatpush1.bf16.xpose.msra.mxu0 0
        %2211 = vmatprep.subr.bf16.mxu0 0
        %2212 = vmatpush1.bf16.xpose.msra.mxu0 0
        %2213 = vmatprep.subr.bf16.mxu0 0
        %2214 = vmatpush1.bf16.xpose.msra.mxu0 0
        %2215 = vmatprep.subr.bf16.mxu0 0
        %2216 = vmatpush1.bf16.xpose.msra.mxu0 0
        %2217 = vmatprep.subr.bf16.mxu0 0
        %2218 = vmatpush1.bf16.xpose.msra.mxu0 0
        %2219 = vmatprep.subr.bf16.mxu0 0
        %2220 = vmatpush1.bf16.xpose.msra.mxu0 0
        %2221 = vmatprep.subr.bf16.mxu0 0
        %2222 = vmatpush1.bf16.xpose.msra.mxu0 0
        %2223 = vmatprep.subr.bf16.mxu0 0
        %2224 = vmatpush1.bf16.xpose.msra.mxu0 0
        %2225 = vmatprep.subr.bf16.mxu0 0
        %2226 = vmatpush1.bf16.xpose.msra.mxu0 0
        %2227 = vmatprep.subr.bf16.mxu0 0
        %2228 = vmatpush1.bf16.xpose.msra.mxu0 0
        %2229 = vmatprep.mubr.bf16.mxu0 0
        %2230 = vmatmul.mubr.bf16.gmra.mrb[0].mxu0 %v2192
        %v2231 = vpop.f32.mrb[0].mxu0
        %v2232 = vadd.f32 0.0, %v2231
        %v2233 = vpop.f32.mrb[0].mxu0
        %v2234 = vpop.f32.mrb[0].mxu0
        %v2235 = vpop.f32.mrb[0].mxu0
        %2236 = vdwg.mxu0
        %v2237 = vsel %vm2160, 1, 0
        %vm2238 = vcmp.eq.s32.totalorder %v2237, 1
        %v2239 = vsel %vm2238, %v2232, -1e+30
        %vm2240 = vcmask 64512
        %v2241 = vsel %vm2240, %v2239, -inf
        %2242 = vmax.xlane.f32.xlu0 %v2241
        %v2243 = vpop.xlane.xlu0 %2242
        %v2244 = vsub.f32 %v2239, %v2243
        %v2245 = vmul.f32 %v2244, 1.442695
        %v2246 = vpow.pop %v2245
        %v2247 = vsel %vm2240, %v2246, 0.0
        %2248 = vadd.xlane.f32.xlu0 %v2247
        %v2249 = vpop.xlane.xlu0 %2248
        %v2250 = vrcp.pop %v2249
        %v2251 = vmul.f32 %v2246, %v2250
        %v2252 = vpack.c.bf16 %v2251, %v2251
        %v2253 = vpack.c.bf16 %v2114, %v2114
        %v2255 = vsel %vm2240, %v2252, 0
        %vm2257 = vcmask 1043456
        %v2259 = vsel %vm2257, %v2253, 0
        %2261 = vmatprep.subr.bf16.mxu0 0
        %2262 = vmatpush1.bf16.msra.mxu0 %v2259
        %2263 = vmatprep.subr.bf16.mxu0 0
        %2264 = vmatpush1.bf16.msra.mxu0 0
        %2265 = vmatprep.subr.bf16.mxu0 0
        %2266 = vmatpush1.bf16.msra.mxu0 0
        %2267 = vmatprep.subr.bf16.mxu0 0
        %2268 = vmatpush1.bf16.msra.mxu0 0
        %2269 = vmatprep.subr.bf16.mxu0 0
        %2270 = vmatpush1.bf16.msra.mxu0 0
        %2271 = vmatprep.subr.bf16.mxu0 0
        %2272 = vmatpush1.bf16.msra.mxu0 0
        %2273 = vmatprep.subr.bf16.mxu0 0
        %2274 = vmatpush1.bf16.msra.mxu0 0
        %2275 = vmatprep.subr.bf16.mxu0 0
        %2276 = vmatpush1.bf16.msra.mxu0 0
        %2277 = vmatprep.subr.bf16.mxu0 0
        %2278 = vmatpush1.bf16.msra.mxu0 0
        %2279 = vmatprep.subr.bf16.mxu0 0
        %2280 = vmatpush1.bf16.msra.mxu0 0
        %2281 = vmatprep.subr.bf16.mxu0 0
        %2282 = vmatpush1.bf16.msra.mxu0 0
        %2283 = vmatprep.subr.bf16.mxu0 0
        %2284 = vmatpush1.bf16.msra.mxu0 0
        %2285 = vmatprep.subr.bf16.mxu0 0
        %2286 = vmatpush1.bf16.msra.mxu0 0
        %2287 = vmatprep.subr.bf16.mxu0 0
        %2288 = vmatpush1.bf16.msra.mxu0 0
        %2289 = vmatprep.subr.bf16.mxu0 0
        %2290 = vmatpush1.bf16.msra.mxu0 0
        %2291 = vmatprep.subr.bf16.mxu0 0
        %2292 = vmatpush1.bf16.msra.mxu0 0
        %2293 = vmatprep.mubr.bf16.mxu0 0
        %2294 = vmatmul.mubr.bf16.gmra.mrb[0].mxu0 %v2255
        %v2295 = vpop.f32.mrb[0].mxu0
        %v2296 = vadd.f32 0.0, %v2295
        %v2297 = vpop.f32.mrb[0].mxu0
        %v2298 = vpop.f32.mrb[0].mxu0
        %v2299 = vpop.f32.mrb[0].mxu0
        %2300 = vdwg.mxu0
        %v2301 = vpack.c.bf16 %v2296, %v2296
        %v2302 = vpack.c.bf16 %v2112, %v2112
        %2304 = vrot.lane.b32.xlu0 %v2186, 64
        %v2305 = vpop.permute.xlu0 %2304
        %v2307 = vsel %vm1574, %v2305, 0
        %v2310 = vsel %vm1574, %v2302, 0
        %2312 = vmatprep.subr.bf16.mxu0 0
        %2313 = vmatpush1.bf16.xpose.msra.mxu0 %v2310
        %2314 = vmatprep.subr.bf16.mxu0 0
        %2315 = vmatpush1.bf16.xpose.msra.mxu0 0
        %2316 = vmatprep.subr.bf16.mxu0 0
        %2317 = vmatpush1.bf16.xpose.msra.mxu0 0
        %2318 = vmatprep.subr.bf16.mxu0 0
        %2319 = vmatpush1.bf16.xpose.msra.mxu0 0
        %2320 = vmatprep.subr.bf16.mxu0 0
        %2321 = vmatpush1.bf16.xpose.msra.mxu0 0
        %2322 = vmatprep.subr.bf16.mxu0 0
        %2323 = vmatpush1.bf16.xpose.msra.mxu0 0
        %2324 = vmatprep.subr.bf16.mxu0 0
        %2325 = vmatpush1.bf16.xpose.msra.mxu0 0
        %2326 = vmatprep.subr.bf16.mxu0 0
        %2327 = vmatpush1.bf16.xpose.msra.mxu0 0
        %2328 = vmatprep.subr.bf16.mxu0 0
        %2329 = vmatpush1.bf16.xpose.msra.mxu0 0
        %2330 = vmatprep.subr.bf16.mxu0 0
        %2331 = vmatpush1.bf16.xpose.msra.mxu0 0
        %2332 = vmatprep.subr.bf16.mxu0 0
        %2333 = vmatpush1.bf16.xpose.msra.mxu0 0
        %2334 = vmatprep.subr.bf16.mxu0 0
        %2335 = vmatpush1.bf16.xpose.msra.mxu0 0
        %2336 = vmatprep.subr.bf16.mxu0 0
        %2337 = vmatpush1.bf16.xpose.msra.mxu0 0
        %2338 = vmatprep.subr.bf16.mxu0 0
        %2339 = vmatpush1.bf16.xpose.msra.mxu0 0
        %2340 = vmatprep.subr.bf16.mxu0 0
        %2341 = vmatpush1.bf16.xpose.msra.mxu0 0
        %2342 = vmatprep.subr.bf16.mxu0 0
        %2343 = vmatpush1.bf16.xpose.msra.mxu0 0
        %2344 = vmatprep.mubr.bf16.mxu0 0
        %2345 = vmatmul.mubr.bf16.gmra.mrb[0].mxu0 %v2307
        %v2346 = vpop.f32.mrb[0].mxu0
        %v2347 = vadd.f32 0.0, %v2346
        %v2348 = vpop.f32.mrb[0].mxu0
        %v2349 = vpop.f32.mrb[0].mxu0
        %v2350 = vpop.f32.mrb[0].mxu0
        %2351 = vdwg.mxu0
        %v2352 = vsel %vm2238, %v2347, -1e+30
        %v2353 = vsel %vm2240, %v2352, -inf
        %2354 = vmax.xlane.f32.xlu0 %v2353
        %v2355 = vpop.xlane.xlu0 %2354
        %v2356 = vsub.f32 %v2352, %v2355
        %v2357 = vmul.f32 %v2356, 1.442695
        %v2358 = vpow.pop %v2357
        %v2359 = vsel %vm2240, %v2358, 0.0
        %2360 = vadd.xlane.f32.xlu0 %v2359
        %v2361 = vpop.xlane.xlu0 %2360
        %v2362 = vrcp.pop %v2361
        %v2363 = vmul.f32 %v2358, %v2362
        %v2364 = vpack.c.bf16 %v2363, %v2363
        %2366 = vrot.lane.b32.xlu0 %v2253, 64
        %v2367 = vpop.permute.xlu0 %2366
        %v2369 = vsel %vm2240, %v2364, 0
        %v2372 = vsel %vm2257, %v2367, 0
        %2374 = vmatprep.subr.bf16.mxu0 0
        %2375 = vmatpush1.bf16.msra.mxu0 %v2372
        %2376 = vmatprep.subr.bf16.mxu0 0
        %2377 = vmatpush1.bf16.msra.mxu0 0
        %2378 = vmatprep.subr.bf16.mxu0 0
        %2379 = vmatpush1.bf16.msra.mxu0 0
        %2380 = vmatprep.subr.bf16.mxu0 0
        %2381 = vmatpush1.bf16.msra.mxu0 0
        %2382 = vmatprep.subr.bf16.mxu0 0
        %2383 = vmatpush1.bf16.msra.mxu0 0
        %2384 = vmatprep.subr.bf16.mxu0 0
        %2385 = vmatpush1.bf16.msra.mxu0 0
        %2386 = vmatprep.subr.bf16.mxu0 0
        %2387 = vmatpush1.bf16.msra.mxu0 0
        %2388 = vmatprep.subr.bf16.mxu0 0
        %2389 = vmatpush1.bf16.msra.mxu0 0
        %2390 = vmatprep.subr.bf16.mxu0 0
        %2391 = vmatpush1.bf16.msra.mxu0 0
        %2392 = vmatprep.subr.bf16.mxu0 0
        %2393 = vmatpush1.bf16.msra.mxu0 0
        %2394 = vmatprep.subr.bf16.mxu0 0
        %2395 = vmatpush1.bf16.msra.mxu0 0
        %2396 = vmatprep.subr.bf16.mxu0 0
        %2397 = vmatpush1.bf16.msra.mxu0 0
        %2398 = vmatprep.subr.bf16.mxu0 0
        %2399 = vmatpush1.bf16.msra.mxu0 0
        %2400 = vmatprep.subr.bf16.mxu0 0
        %2401 = vmatpush1.bf16.msra.mxu0 0
        %2402 = vmatprep.subr.bf16.mxu0 0
        %2403 = vmatpush1.bf16.msra.mxu0 0
        %2404 = vmatprep.subr.bf16.mxu0 0
        %2405 = vmatpush1.bf16.msra.mxu0 0
        %2406 = vmatprep.mubr.bf16.mxu0 0
        %2407 = vmatmul.mubr.bf16.gmra.mrb[0].mxu0 %v2369
        %v2408 = vpop.f32.mrb[0].mxu0
        %v2409 = vadd.f32 0.0, %v2408
        %v2410 = vpop.f32.mrb[0].mxu0
        %v2411 = vpop.f32.mrb[0].mxu0
        %v2412 = vpop.f32.mrb[0].mxu0
        %2413 = vdwg.mxu0
        %v2414 = vpack.c.bf16 %v2409, %v2409
        %v2423 = vunpack.c.l.b16 %v2169
        %v2424 = vunpack.c.h.b16 %v2169
        %v2425 = vunpack.c.l.b16 %v2170
        %v2426 = vunpack.c.h.b16 %v2170
        %v2427 = vunpack.c.l.b16 %v2171
        %v2428 = vunpack.c.h.b16 %v2171
        %v2429 = vunpack.c.l.b16 %v2172
        %v2430 = vunpack.c.h.b16 %v2172
        %v2431 = vunpack.c.l.b16 %v2173
        %v2432 = vunpack.c.h.b16 %v2173
        %v2433 = vunpack.c.l.b16 %v2174
        %v2434 = vunpack.c.h.b16 %v2174
        %v2435 = vunpack.c.l.b16 %v2175
        %v2436 = vunpack.c.h.b16 %v2175
        %v2437 = vunpack.c.l.b16 %v2176
        %v2438 = vunpack.c.h.b16 %v2176
        %v2439 = vpack.c.b16 %v2425, %v2423
        %v2440 = vpack.c.b16 %v2426, %v2424
        %v2441 = vpack.c.b16 %v2429, %v2427
        %v2442 = vpack.c.b16 %v2430, %v2428
        %v2443 = vpack.c.b16 %v2433, %v2431
        %v2444 = vpack.c.b16 %v2434, %v2432
        %v2445 = vpack.c.b16 %v2437, %v2435
        %v2446 = vpack.c.b16 %v2438, %v2436
        %v2456 = vsel %vm1574, %v2414, 0
        %2458 = vmatprep.subr.bf16.mxu0 %v2440
        %2459 = vmatpush1.bf16.msra.mxu0 %v2439
        %2460 = vmatprep.subr.bf16.mxu0 %v2442
        %2461 = vmatpush1.bf16.msra.mxu0 %v2441
        %2462 = vmatprep.subr.bf16.mxu0 %v2444
        %2463 = vmatpush1.bf16.msra.mxu0 %v2443
        %2464 = vmatprep.subr.bf16.mxu0 %v2446
        %2465 = vmatpush1.bf16.msra.mxu0 %v2445
        %2466 = vmatprep.subr.bf16.mxu0 0
        %2467 = vmatpush1.bf16.msra.mxu0 0
        %2468 = vmatprep.subr.bf16.mxu0 0
        %2469 = vmatpush1.bf16.msra.mxu0 0
        %2470 = vmatprep.subr.bf16.mxu0 0
        %2471 = vmatpush1.bf16.msra.mxu0 0
        %2472 = vmatprep.subr.bf16.mxu0 0
        %2473 = vmatpush1.bf16.msra.mxu0 0
        %2474 = vmatprep.subr.bf16.mxu0 0
        %2475 = vmatpush1.bf16.msra.mxu0 0
        %2476 = vmatprep.subr.bf16.mxu0 0
        %2477 = vmatpush1.bf16.msra.mxu0 0
        %2478 = vmatprep.subr.bf16.mxu0 0
        %2479 = vmatpush1.bf16.msra.mxu0 0
        %2480 = vmatprep.subr.bf16.mxu0 0
        %2481 = vmatpush1.bf16.msra.mxu0 0
        %2482 = vmatprep.subr.bf16.mxu0 0
        %2483 = vmatpush1.bf16.msra.mxu0 0
        %2484 = vmatprep.subr.bf16.mxu0 0
        %2485 = vmatpush1.bf16.msra.mxu0 0
        %2486 = vmatprep.subr.bf16.mxu0 0
        %2487 = vmatpush1.bf16.msra.mxu0 0
        %2488 = vmatprep.subr.bf16.mxu0 0
        %2489 = vmatpush1.bf16.msra.mxu0 0
        %2490 = vmatprep.mubr.bf16.mxu0 0
        %2491 = vmatmul.mubr.bf16.gmra.mrb[0].mxu0 %v2456
        %v2492 = vpop.f32.mrb[0].mxu0
        %v2493 = vadd.f32 0.0, %v2492
        %v2494 = vpop.f32.mrb[0].mxu0
        %v2495 = vadd.f32 0.0, %v2494
        %v2496 = vpop.f32.mrb[0].mxu0
        %v2497 = vpop.f32.mrb[0].mxu0
        %2498 = vdwg.mxu0
        %v2507 = vunpack.c.l.b16 %v2161
        %v2508 = vunpack.c.h.b16 %v2161
        %v2509 = vunpack.c.l.b16 %v2162
        %v2510 = vunpack.c.h.b16 %v2162
        %v2511 = vunpack.c.l.b16 %v2163
        %v2512 = vunpack.c.h.b16 %v2163
        %v2513 = vunpack.c.l.b16 %v2164
        %v2514 = vunpack.c.h.b16 %v2164
        %v2515 = vunpack.c.l.b16 %v2165
        %v2516 = vunpack.c.h.b16 %v2165
        %v2517 = vunpack.c.l.b16 %v2166
        %v2518 = vunpack.c.h.b16 %v2166
        %v2519 = vunpack.c.l.b16 %v2167
        %v2520 = vunpack.c.h.b16 %v2167
        %v2521 = vunpack.c.l.b16 %v2168
        %v2522 = vunpack.c.h.b16 %v2168
        %v2523 = vpack.c.b16 %v2509, %v2507
        %v2524 = vpack.c.b16 %v2510, %v2508
        %v2525 = vpack.c.b16 %v2513, %v2511
        %v2526 = vpack.c.b16 %v2514, %v2512
        %v2527 = vpack.c.b16 %v2517, %v2515
        %v2528 = vpack.c.b16 %v2518, %v2516
        %v2529 = vpack.c.b16 %v2521, %v2519
        %v2530 = vpack.c.b16 %v2522, %v2520
        %v2540 = vsel %vm1574, %v2301, 0
        %2542 = vmatprep.subr.bf16.mxu0 %v2524
        %2543 = vmatpush1.bf16.msra.mxu0 %v2523
        %2544 = vmatprep.subr.bf16.mxu0 %v2526
        %2545 = vmatpush1.bf16.msra.mxu0 %v2525
        %2546 = vmatprep.subr.bf16.mxu0 %v2528
        %2547 = vmatpush1.bf16.msra.mxu0 %v2527
        %2548 = vmatprep.subr.bf16.mxu0 %v2530
        %2549 = vmatpush1.bf16.msra.mxu0 %v2529
        %2550 = vmatprep.subr.bf16.mxu0 0
        %2551 = vmatpush1.bf16.msra.mxu0 0
        %2552 = vmatprep.subr.bf16.mxu0 0
        %2553 = vmatpush1.bf16.msra.mxu0 0
        %2554 = vmatprep.subr.bf16.mxu0 0
        %2555 = vmatpush1.bf16.msra.mxu0 0
        %2556 = vmatprep.subr.bf16.mxu0 0
        %2557 = vmatpush1.bf16.msra.mxu0 0
        %2558 = vmatprep.subr.bf16.mxu0 0
        %2559 = vmatpush1.bf16.msra.mxu0 0
        %2560 = vmatprep.subr.bf16.mxu0 0
        %2561 = vmatpush1.bf16.msra.mxu0 0
        %2562 = vmatprep.subr.bf16.mxu0 0
        %2563 = vmatpush1.bf16.msra.mxu0 0
        %2564 = vmatprep.subr.bf16.mxu0 0
        %2565 = vmatpush1.bf16.msra.mxu0 0
        %2566 = vmatprep.subr.bf16.mxu0 0
        %2567 = vmatpush1.bf16.msra.mxu0 0
        %2568 = vmatprep.subr.bf16.mxu0 0
        %2569 = vmatpush1.bf16.msra.mxu0 0
        %2570 = vmatprep.subr.bf16.mxu0 0
        %2571 = vmatpush1.bf16.msra.mxu0 0
        %2572 = vmatprep.subr.bf16.mxu0 0
        %2573 = vmatpush1.bf16.msra.mxu0 0
        %2574 = vmatprep.mubr.bf16.mxu0 0
        %2575 = vmatmul.mubr.bf16.gmra.mrb[0].mxu0 %v2540
        %v2576 = vpop.f32.mrb[0].mxu0
        %v2577 = vadd.f32 %v2493, %v2576
        %v2578 = vpop.f32.mrb[0].mxu0
        %v2579 = vadd.f32 %v2495, %v2578
        %v2580 = vpop.f32.mrb[0].mxu0
        %v2581 = vpop.f32.mrb[0].mxu0
        %2582 = vdwg.mxu0
        %v2583 = vmul.f32 %v2073, 0.125
        %v2584 = vpack.c.bf16 %v2583, %v2583
        %2586 = vrot.lane.b32.xlu0 %v2302, 64
        %v2587 = vpop.permute.xlu0 %2586
        %v2589 = vsel %vm1574, %v2584, 0
        %v2592 = vsel %vm1574, %v2587, 0
        %2594 = vmatprep.subr.bf16.mxu0 0
        %2595 = vmatpush1.bf16.xpose.msra.mxu0 %v2592
        %2596 = vmatprep.subr.bf16.mxu0 0
        %2597 = vmatpush1.bf16.xpose.msra.mxu0 0
        %2598 = vmatprep.subr.bf16.mxu0 0
        %2599 = vmatpush1.bf16.xpose.msra.mxu0 0
        %2600 = vmatprep.subr.bf16.mxu0 0
        %2601 = vmatpush1.bf16.xpose.msra.mxu0 0
        %2602 = vmatprep.subr.bf16.mxu0 0
        %2603 = vmatpush1.bf16.xpose.msra.mxu0 0
        %2604 = vmatprep.subr.bf16.mxu0 0
        %2605 = vmatpush1.bf16.xpose.msra.mxu0 0
        %2606 = vmatprep.subr.bf16.mxu0 0
        %2607 = vmatpush1.bf16.xpose.msra.mxu0 0
        %2608 = vmatprep.subr.bf16.mxu0 0
        %2609 = vmatpush1.bf16.xpose.msra.mxu0 0
        %2610 = vmatprep.subr.bf16.mxu0 0
        %2611 = vmatpush1.bf16.xpose.msra.mxu0 0
        %2612 = vmatprep.subr.bf16.mxu0 0
        %2613 = vmatpush1.bf16.xpose.msra.mxu0 0
        %2614 = vmatprep.subr.bf16.mxu0 0
        %2615 = vmatpush1.bf16.xpose.msra.mxu0 0
        %2616 = vmatprep.subr.bf16.mxu0 0
        %2617 = vmatpush1.bf16.xpose.msra.mxu0 0
        %2618 = vmatprep.subr.bf16.mxu0 0
        %2619 = vmatpush1.bf16.xpose.msra.mxu0 0
        %2620 = vmatprep.subr.bf16.mxu0 0
        %2621 = vmatpush1.bf16.xpose.msra.mxu0 0
        %2622 = vmatprep.subr.bf16.mxu0 0
        %2623 = vmatpush1.bf16.xpose.msra.mxu0 0
        %2624 = vmatprep.subr.bf16.mxu0 0
        %2625 = vmatpush1.bf16.xpose.msra.mxu0 0
        %2626 = vmatprep.mubr.bf16.mxu0 0
        %2627 = vmatmul.mubr.bf16.gmra.mrb[0].mxu0 %v2589
        %v2628 = vpop.f32.mrb[0].mxu0
        %v2629 = vadd.f32 0.0, %v2628
        %v2630 = vpop.f32.mrb[0].mxu0
        %v2631 = vpop.f32.mrb[0].mxu0
        %v2632 = vpop.f32.mrb[0].mxu0
        %2633 = vdwg.mxu0
        %v2634 = vsel %vm2238, %v2629, -1e+30
        %v2635 = vsel %vm2240, %v2634, -inf
        %2636 = vmax.xlane.f32.xlu0 %v2635
        %v2637 = vpop.xlane.xlu0 %2636
        %v2638 = vsub.f32 %v2634, %v2637
        %v2639 = vmul.f32 %v2638, 1.442695
        %v2640 = vpow.pop %v2639
        %v2641 = vsel %vm2240, %v2640, 0.0
        %2642 = vadd.xlane.f32.xlu0 %v2641
        %v2643 = vpop.xlane.xlu0 %2642
        %v2644 = vrcp.pop %v2643
        %v2645 = vmul.f32 %v2640, %v2644
        %v2646 = vpack.c.bf16 %v2645, %v2645
        %v2647 = vpack.c.bf16 %v2153, %v2153
        %v2649 = vsel %vm2240, %v2646, 0
        %v2652 = vsel %vm2257, %v2647, 0
        %2654 = vmatprep.subr.bf16.mxu0 0
        %2655 = vmatpush1.bf16.msra.mxu0 %v2652
        %2656 = vmatprep.subr.bf16.mxu0 0
        %2657 = vmatpush1.bf16.msra.mxu0 0
        %2658 = vmatprep.subr.bf16.mxu0 0
        %2659 = vmatpush1.bf16.msra.mxu0 0
        %2660 = vmatprep.subr.bf16.mxu0 0
        %2661 = vmatpush1.bf16.msra.mxu0 0
        %2662 = vmatprep.subr.bf16.mxu0 0
        %2663 = vmatpush1.bf16.msra.mxu0 0
        %2664 = vmatprep.subr.bf16.mxu0 0
        %2665 = vmatpush1.bf16.msra.mxu0 0
        %2666 = vmatprep.subr.bf16.mxu0 0
        %2667 = vmatpush1.bf16.msra.mxu0 0
        %2668 = vmatprep.subr.bf16.mxu0 0
        %2669 = vmatpush1.bf16.msra.mxu0 0
        %2670 = vmatprep.subr.bf16.mxu0 0
        %2671 = vmatpush1.bf16.msra.mxu0 0
        %2672 = vmatprep.subr.bf16.mxu0 0
        %2673 = vmatpush1.bf16.msra.mxu0 0
        %2674 = vmatprep.subr.bf16.mxu0 0
        %2675 = vmatpush1.bf16.msra.mxu0 0
        %2676 = vmatprep.subr.bf16.mxu0 0
        %2677 = vmatpush1.bf16.msra.mxu0 0
        %2678 = vmatprep.subr.bf16.mxu0 0
        %2679 = vmatpush1.bf16.msra.mxu0 0
        %2680 = vmatprep.subr.bf16.mxu0 0
        %2681 = vmatpush1.bf16.msra.mxu0 0
        %2682 = vmatprep.subr.bf16.mxu0 0
        %2683 = vmatpush1.bf16.msra.mxu0 0
        %2684 = vmatprep.subr.bf16.mxu0 0
        %2685 = vmatpush1.bf16.msra.mxu0 0
        %2686 = vmatprep.mubr.bf16.mxu0 0
        %2687 = vmatmul.mubr.bf16.gmra.mrb[0].mxu0 %v2649
        %v2688 = vpop.f32.mrb[0].mxu0
        %v2689 = vadd.f32 0.0, %v2688
        %v2690 = vpop.f32.mrb[0].mxu0
        %v2691 = vpop.f32.mrb[0].mxu0
        %v2692 = vpop.f32.mrb[0].mxu0
        %2693 = vdwg.mxu0
        %v2694 = vpack.c.bf16 %v2689, %v2689
        %v2703 = vunpack.c.l.b16 %v2177
        %v2704 = vunpack.c.h.b16 %v2177
        %v2705 = vunpack.c.l.b16 %v2178
        %v2706 = vunpack.c.h.b16 %v2178
        %v2707 = vunpack.c.l.b16 %v2179
        %v2708 = vunpack.c.h.b16 %v2179
        %v2709 = vunpack.c.l.b16 %v2180
        %v2710 = vunpack.c.h.b16 %v2180
        %v2711 = vunpack.c.l.b16 %v2181
        %v2712 = vunpack.c.h.b16 %v2181
        %v2713 = vunpack.c.l.b16 %v2182
        %v2714 = vunpack.c.h.b16 %v2182
        %v2715 = vunpack.c.l.b16 %v2183
        %v2716 = vunpack.c.h.b16 %v2183
        %v2717 = vunpack.c.l.b16 %v2184
        %v2718 = vunpack.c.h.b16 %v2184
        %v2719 = vpack.c.b16 %v2705, %v2703
        %v2720 = vpack.c.b16 %v2706, %v2704
        %v2721 = vpack.c.b16 %v2709, %v2707
        %v2722 = vpack.c.b16 %v2710, %v2708
        %v2723 = vpack.c.b16 %v2713, %v2711
        %v2724 = vpack.c.b16 %v2714, %v2712
        %v2725 = vpack.c.b16 %v2717, %v2715
        %v2726 = vpack.c.b16 %v2718, %v2716
        %v2736 = vsel %vm1574, %v2694, 0
        %2738 = vmatprep.subr.bf16.mxu0 %v2720
        %2739 = vmatpush1.bf16.msra.mxu0 %v2719
        %2740 = vmatprep.subr.bf16.mxu0 %v2722
        %2741 = vmatpush1.bf16.msra.mxu0 %v2721
        %2742 = vmatprep.subr.bf16.mxu0 %v2724
        %2743 = vmatpush1.bf16.msra.mxu0 %v2723
        %2744 = vmatprep.subr.bf16.mxu0 %v2726
        %2745 = vmatpush1.bf16.msra.mxu0 %v2725
        %2746 = vmatprep.subr.bf16.mxu0 0
        %2747 = vmatpush1.bf16.msra.mxu0 0
        %2748 = vmatprep.subr.bf16.mxu0 0
        %2749 = vmatpush1.bf16.msra.mxu0 0
        %2750 = vmatprep.subr.bf16.mxu0 0
        %2751 = vmatpush1.bf16.msra.mxu0 0
        %2752 = vmatprep.subr.bf16.mxu0 0
        %2753 = vmatpush1.bf16.msra.mxu0 0
        %2754 = vmatprep.subr.bf16.mxu0 0
        %2755 = vmatpush1.bf16.msra.mxu0 0
        %2756 = vmatprep.subr.bf16.mxu0 0
        %2757 = vmatpush1.bf16.msra.mxu0 0
        %2758 = vmatprep.subr.bf16.mxu0 0
        %2759 = vmatpush1.bf16.msra.mxu0 0
        %2760 = vmatprep.subr.bf16.mxu0 0
        %2761 = vmatpush1.bf16.msra.mxu0 0
        %2762 = vmatprep.subr.bf16.mxu0 0
        %2763 = vmatpush1.bf16.msra.mxu0 0
        %2764 = vmatprep.subr.bf16.mxu0 0
        %2765 = vmatpush1.bf16.msra.mxu0 0
        %2766 = vmatprep.subr.bf16.mxu0 0
        %2767 = vmatpush1.bf16.msra.mxu0 0
        %2768 = vmatprep.subr.bf16.mxu0 0
        %2769 = vmatpush1.bf16.msra.mxu0 0
        %2770 = vmatprep.mubr.bf16.mxu0 0
        %2771 = vmatmul.mubr.bf16.gmra.mrb[0].mxu0 %v2736
        %v2772 = vpop.f32.mrb[0].mxu0
        %v2773 = vadd.f32 0.0, %v2772
        %v2774 = vpop.f32.mrb[0].mxu0
        %v2775 = vadd.f32 0.0, %v2774
        %v2776 = vpop.f32.mrb[0].mxu0
        %v2777 = vpop.f32.mrb[0].mxu0
        %2778 = vdwg.mxu0
        %v2779 = vadd.f32 %v2577, %v2773
        %v2780 = vadd.f32 %v2579, %v2775
        %v2781 = vadd.f32 %v1570, %v2779
        %v2782 = vadd.f32 %v1571, %v2780
        %v2783 = vld [vmem:[%s755] sm:$0x3]
        %v2785 = vlaneseq
        %v2786 = vshrl.u32 %v2785, 7
        %v2787 = vsub.s32 0, %v2786
        %v2788 = vrot.slane %v2783, %v2787
        %v2789 = vlaneseq
        %v2790 = vshrl.u32 %v2789, 7
        %v2791 = vsub.s32 1, %v2790
        %v2792 = vrot.slane %v2783, %v2791
        %v2795 = vadd.f32 %v2781, %v2788
        %v2796 = vadd.f32 %v2782, %v2792
        %v2797 = vld [vmem:[%s759] sm:$0x3]
        %v2798 = vld [vmem:[%s763] sm:$0x3]
        %v2799 = vsel %vm1574, %v2796, 0.0
        %v2800 = vadd.f32 %v2795, %v2799
        %2801 = vadd.xlane.f32.xlu0 %v2800
        %v2802 = vpop.xlane.xlu0 %2801
        %v2803 = vmul.f32 %v2802, %v1579
        %v2804 = vsub.f32 %v2795, %v2803
        %v2805 = vsub.f32 %v2796, %v2803
        %v2806 = vmul.f32 %v2804, %v2804
        %v2807 = vmul.f32 %v2805, %v2805
        %v2808 = vsel %vm1574, %v2807, 0.0
        %v2809 = vadd.f32 %v2806, %v2808
        %2810 = vadd.xlane.f32.xlu0 %v2809
        %v2811 = vpop.xlane.xlu0 %2810
        %v2812 = vmul.f32 %v2811, %v1579
        %v2813 = vadd.f32 %v2812, 1e-06
        %v2814 = vrsqrt.pop %v2813
        %v2815 = vmul.f32 %v2804, %v2814
        %v2816 = vmul.f32 %v2805, %v2814
        %v2818 = vlaneseq
        %v2819 = vshrl.u32 %v2818, 7
        %v2820 = vsub.s32 0, %v2819
        %v2821 = vrot.slane %v2797, %v2820
        %v2822 = vlaneseq
        %v2823 = vshrl.u32 %v2822, 7
        %v2824 = vsub.s32 1, %v2823
        %v2825 = vrot.slane %v2797, %v2824
        %v2828 = vmul.f32 %v2815, %v2821
        %v2829 = vmul.f32 %v2816, %v2825
        %v2831 = vlaneseq
        %v2832 = vshrl.u32 %v2831, 7
        %v2833 = vsub.s32 0, %v2832
        %v2834 = vrot.slane %v2798, %v2833
        %v2835 = vlaneseq
        %v2836 = vshrl.u32 %v2835, 7
        %v2837 = vsub.s32 1, %v2836
        %v2838 = vrot.slane %v2798, %v2837
        %v2841 = vadd.f32 %v2828, %v2834
        %v2842 = vadd.f32 %v2829, %v2838
        %v2843 = vpack.c.bf16 %v2841, %v2841
        %v2844 = vpack.c.bf16 %v2842, %v2842
        %v2845 = vld [vmem:[%s768] sm:$0xff]
        %v2846 = vld [vmem:[%s768 + $0x8] sm:$0xff]
        %v2847 = vld [vmem:[%s768 + $0x10] sm:$0xff]
        %v2848 = vld [vmem:[%s768 + $0x18] sm:$0xff]
        %v2849 = vld [vmem:[%s768 + $0x20] sm:$0xff]
        %v2850 = vld [vmem:[%s768 + $0x28] sm:$0xff]
        %v2851 = vld [vmem:[%s768 + $0x30] sm:$0xff]
        %v2852 = vld [vmem:[%s768 + $0x38] sm:$0xff]
        %v2853 = vld [vmem:[%s768 + $0x40] sm:$0xff]
        %v2854 = vld [vmem:[%s768 + $0x48] sm:$0xff]
        %v2855 = vld [vmem:[%s768 + $0x50] sm:$0xff]
        %v2856 = vld [vmem:[%s768 + $0x58] sm:$0xff]
        %v2857 = vld [vmem:[%s768 + $0x60] sm:$0xff]
        %v2858 = vld [vmem:[%s768 + $0x68] sm:$0xff]
        %v2859 = vld [vmem:[%s768 + $0x70] sm:$0xff]
        %v2860 = vld [vmem:[%s768 + $0x78] sm:$0xff]
        %v2861 = vld [vmem:[%s768 + $0x80] sm:$0xff]
        %v2862 = vld [vmem:[%s768 + $0x88] sm:$0xff]
        %v2863 = vld [vmem:[%s768 + $0x90] sm:$0xff]
        %v2864 = vld [vmem:[%s768 + $0x98] sm:$0xff]
        %v2865 = vld [vmem:[%s768 + $0xa0] sm:$0xff]
        %v2866 = vld [vmem:[%s768 + $0xa8] sm:$0xff]
        %v2867 = vld [vmem:[%s768 + $0xb0] sm:$0xff]
        %v2868 = vld [vmem:[%s768 + $0xb8] sm:$0xff]
        %v2869 = vld [vmem:[%s768 + $0xc0] sm:$0xff]
        %v2870 = vld [vmem:[%s768 + $0xc8] sm:$0xff]
        %v2871 = vld [vmem:[%s768 + $0xd0] sm:$0xff]
        %v2872 = vld [vmem:[%s768 + $0xd8] sm:$0xff]
        %v2873 = vld [vmem:[%s768 + $0xe0] sm:$0xff]
        %v2874 = vld [vmem:[%s768 + $0xe8] sm:$0xff]
        %v2875 = vld [vmem:[%s768 + $0xf0] sm:$0xff]
        %v2876 = vld [vmem:[%s768 + $0xf8] sm:$0xff]
        %v2877 = vld [vmem:[%s768 + $0x100] sm:$0xff]
        %v2878 = vld [vmem:[%s768 + $0x108] sm:$0xff]
        %v2879 = vld [vmem:[%s768 + $0x110] sm:$0xff]
        %v2880 = vld [vmem:[%s768 + $0x118] sm:$0xff]
        %v2881 = vld [vmem:[%s768 + $0x120] sm:$0xff]
        %v2882 = vld [vmem:[%s768 + $0x128] sm:$0xff]
        %v2883 = vld [vmem:[%s768 + $0x130] sm:$0xff]
        %v2884 = vld [vmem:[%s768 + $0x138] sm:$0xff]
        %v2885 = vld [vmem:[%s768 + $0x140] sm:$0xff]
        %v2886 = vld [vmem:[%s768 + $0x148] sm:$0xff]
        %v2887 = vld [vmem:[%s768 + $0x150] sm:$0xff]
        %v2888 = vld [vmem:[%s768 + $0x158] sm:$0xff]
        %v2889 = vld [vmem:[%s768 + $0x160] sm:$0xff]
        %v2890 = vld [vmem:[%s768 + $0x168] sm:$0xff]
        %v2891 = vld [vmem:[%s768 + $0x170] sm:$0xff]
        %v2892 = vld [vmem:[%s768 + $0x178] sm:$0xff]
        %v2893 = vld [vmem:[%s768 + $0x180] sm:$0xff]
        %v2894 = vld [vmem:[%s768 + $0x188] sm:$0xff]
        %v2895 = vld [vmem:[%s768 + $0x190] sm:$0xff]
        %v2896 = vld [vmem:[%s768 + $0x198] sm:$0xff]
        %v2897 = vld [vmem:[%s768 + $0x1a0] sm:$0xff]
        %v2898 = vld [vmem:[%s768 + $0x1a8] sm:$0xff]
        %v2899 = vld [vmem:[%s768 + $0x1b0] sm:$0xff]
        %v2900 = vld [vmem:[%s768 + $0x1b8] sm:$0xff]
        %v2901 = vld [vmem:[%s768 + $0x1c0] sm:$0xff]
        %v2902 = vld [vmem:[%s768 + $0x1c8] sm:$0xff]
        %v2903 = vld [vmem:[%s768 + $0x1d0] sm:$0xff]
        %v2904 = vld [vmem:[%s768 + $0x1d8] sm:$0xff]
        %v2905 = vld [vmem:[%s768 + $0x1e0] sm:$0xff]
        %v2906 = vld [vmem:[%s768 + $0x1e8] sm:$0xff]
        %v2907 = vld [vmem:[%s768 + $0x1f0] sm:$0xff]
        %v2908 = vld [vmem:[%s768 + $0x1f8] sm:$0xff]
        %v2909 = vld [vmem:[%s768 + $0x200] sm:$0xff]
        %v2910 = vld [vmem:[%s768 + $0x208] sm:$0xff]
        %v2911 = vld [vmem:[%s768 + $0x210] sm:$0xff]
        %v2912 = vld [vmem:[%s768 + $0x218] sm:$0xff]
        %v2913 = vld [vmem:[%s768 + $0x220] sm:$0xff]
        %v2914 = vld [vmem:[%s768 + $0x228] sm:$0xff]
        %v2915 = vld [vmem:[%s768 + $0x230] sm:$0xff]
        %v2916 = vld [vmem:[%s768 + $0x238] sm:$0xff]
        %v2917 = vld [vmem:[%s772] sm:$0x3f]
        %v2919 = vlaneseq
        %v2920 = vshrl.u32 %v2919, 7
        %v2921 = vsub.s32 0, %v2920
        %v2922 = vrot.slane %v2917, %v2921
        %v2923 = vlaneseq
        %v2924 = vshrl.u32 %v2923, 7
        %v2925 = vsub.s32 1, %v2924
        %v2926 = vrot.slane %v2917, %v2925
        %v2927 = vlaneseq
        %v2928 = vshrl.u32 %v2927, 7
        %v2929 = vsub.s32 2, %v2928
        %v2930 = vrot.slane %v2917, %v2929
        %v2931 = vlaneseq
        %v2932 = vshrl.u32 %v2931, 7
        %v2933 = vsub.s32 3, %v2932
        %v2934 = vrot.slane %v2917, %v2933
        %v2935 = vlaneseq
        %v2936 = vshrl.u32 %v2935, 7
        %v2937 = vsub.s32 4, %v2936
        %v2938 = vrot.slane %v2917, %v2937
        %v2939 = vlaneseq
        %v2940 = vshrl.u32 %v2939, 7
        %v2941 = vsub.s32 5, %v2940
        %v2942 = vrot.slane %v2917, %v2941
        %v3021 = vunpack.c.l.b16 %v2845
        %v3022 = vunpack.c.h.b16 %v2845
        %v3023 = vunpack.c.l.b16 %v2846
        %v3024 = vunpack.c.h.b16 %v2846
        %v3025 = vunpack.c.l.b16 %v2847
        %v3026 = vunpack.c.h.b16 %v2847
        %v3027 = vunpack.c.l.b16 %v2848
        %v3028 = vunpack.c.h.b16 %v2848
        %v3029 = vunpack.c.l.b16 %v2849
        %v3030 = vunpack.c.h.b16 %v2849
        %v3031 = vunpack.c.l.b16 %v2850
        %v3032 = vunpack.c.h.b16 %v2850
        %v3033 = vunpack.c.l.b16 %v2851
        %v3034 = vunpack.c.h.b16 %v2851
        %v3035 = vunpack.c.l.b16 %v2852
        %v3036 = vunpack.c.h.b16 %v2852
        %v3037 = vunpack.c.l.b16 %v2853
        %v3038 = vunpack.c.h.b16 %v2853
        %v3039 = vunpack.c.l.b16 %v2854
        %v3040 = vunpack.c.h.b16 %v2854
        %v3041 = vunpack.c.l.b16 %v2855
        %v3042 = vunpack.c.h.b16 %v2855
        %v3043 = vunpack.c.l.b16 %v2856
        %v3044 = vunpack.c.h.b16 %v2856
        %v3045 = vunpack.c.l.b16 %v2857
        %v3046 = vunpack.c.h.b16 %v2857
        %v3047 = vunpack.c.l.b16 %v2858
        %v3048 = vunpack.c.h.b16 %v2858
        %v3049 = vunpack.c.l.b16 %v2859
        %v3050 = vunpack.c.h.b16 %v2859
        %v3051 = vunpack.c.l.b16 %v2860
        %v3052 = vunpack.c.h.b16 %v2860
        %v3053 = vunpack.c.l.b16 %v2861
        %v3054 = vunpack.c.h.b16 %v2861
        %v3055 = vunpack.c.l.b16 %v2862
        %v3056 = vunpack.c.h.b16 %v2862
        %v3057 = vunpack.c.l.b16 %v2863
        %v3058 = vunpack.c.h.b16 %v2863
        %v3059 = vunpack.c.l.b16 %v2864
        %v3060 = vunpack.c.h.b16 %v2864
        %v3061 = vunpack.c.l.b16 %v2865
        %v3062 = vunpack.c.h.b16 %v2865
        %v3063 = vunpack.c.l.b16 %v2866
        %v3064 = vunpack.c.h.b16 %v2866
        %v3065 = vunpack.c.l.b16 %v2867
        %v3066 = vunpack.c.h.b16 %v2867
        %v3067 = vunpack.c.l.b16 %v2868
        %v3068 = vunpack.c.h.b16 %v2868
        %v3069 = vunpack.c.l.b16 %v2869
        %v3070 = vunpack.c.h.b16 %v2869
        %v3071 = vunpack.c.l.b16 %v2870
        %v3072 = vunpack.c.h.b16 %v2870
        %v3073 = vunpack.c.l.b16 %v2871
        %v3074 = vunpack.c.h.b16 %v2871
        %v3075 = vunpack.c.l.b16 %v2872
        %v3076 = vunpack.c.h.b16 %v2872
        %v3077 = vunpack.c.l.b16 %v2873
        %v3078 = vunpack.c.h.b16 %v2873
        %v3079 = vunpack.c.l.b16 %v2874
        %v3080 = vunpack.c.h.b16 %v2874
        %v3081 = vunpack.c.l.b16 %v2875
        %v3082 = vunpack.c.h.b16 %v2875
        %v3083 = vunpack.c.l.b16 %v2876
        %v3084 = vunpack.c.h.b16 %v2876
        %v3085 = vunpack.c.l.b16 %v2877
        %v3086 = vunpack.c.h.b16 %v2877
        %v3087 = vunpack.c.l.b16 %v2878
        %v3088 = vunpack.c.h.b16 %v2878
        %v3089 = vunpack.c.l.b16 %v2879
        %v3090 = vunpack.c.h.b16 %v2879
        %v3091 = vunpack.c.l.b16 %v2880
        %v3092 = vunpack.c.h.b16 %v2880
        %v3093 = vunpack.c.l.b16 %v2881
        %v3094 = vunpack.c.h.b16 %v2881
        %v3095 = vunpack.c.l.b16 %v2882
        %v3096 = vunpack.c.h.b16 %v2882
        %v3097 = vunpack.c.l.b16 %v2883
        %v3098 = vunpack.c.h.b16 %v2883
        %v3099 = vunpack.c.l.b16 %v2884
        %v3100 = vunpack.c.h.b16 %v2884
        %v3101 = vunpack.c.l.b16 %v2885
        %v3102 = vunpack.c.h.b16 %v2885
        %v3103 = vunpack.c.l.b16 %v2886
        %v3104 = vunpack.c.h.b16 %v2886
        %v3105 = vunpack.c.l.b16 %v2887
        %v3106 = vunpack.c.h.b16 %v2887
        %v3107 = vunpack.c.l.b16 %v2888
        %v3108 = vunpack.c.h.b16 %v2888
        %v3109 = vunpack.c.l.b16 %v2889
        %v3110 = vunpack.c.h.b16 %v2889
        %v3111 = vunpack.c.l.b16 %v2890
        %v3112 = vunpack.c.h.b16 %v2890
        %v3113 = vunpack.c.l.b16 %v2891
        %v3114 = vunpack.c.h.b16 %v2891
        %v3115 = vunpack.c.l.b16 %v2892
        %v3116 = vunpack.c.h.b16 %v2892
        %v3117 = vunpack.c.l.b16 %v2893
        %v3118 = vunpack.c.h.b16 %v2893
        %v3119 = vunpack.c.l.b16 %v2894
        %v3120 = vunpack.c.h.b16 %v2894
        %v3121 = vunpack.c.l.b16 %v2895
        %v3122 = vunpack.c.h.b16 %v2895
        %v3123 = vunpack.c.l.b16 %v2896
        %v3124 = vunpack.c.h.b16 %v2896
        %v3125 = vunpack.c.l.b16 %v2897
        %v3126 = vunpack.c.h.b16 %v2897
        %v3127 = vunpack.c.l.b16 %v2898
        %v3128 = vunpack.c.h.b16 %v2898
        %v3129 = vunpack.c.l.b16 %v2899
        %v3130 = vunpack.c.h.b16 %v2899
        %v3131 = vunpack.c.l.b16 %v2900
        %v3132 = vunpack.c.h.b16 %v2900
        %v3133 = vunpack.c.l.b16 %v2901
        %v3134 = vunpack.c.h.b16 %v2901
        %v3135 = vunpack.c.l.b16 %v2902
        %v3136 = vunpack.c.h.b16 %v2902
        %v3137 = vunpack.c.l.b16 %v2903
        %v3138 = vunpack.c.h.b16 %v2903
        %v3139 = vunpack.c.l.b16 %v2904
        %v3140 = vunpack.c.h.b16 %v2904
        %v3141 = vunpack.c.l.b16 %v2905
        %v3142 = vunpack.c.h.b16 %v2905
        %v3143 = vunpack.c.l.b16 %v2906
        %v3144 = vunpack.c.h.b16 %v2906
        %v3145 = vunpack.c.l.b16 %v2907
        %v3146 = vunpack.c.h.b16 %v2907
        %v3147 = vunpack.c.l.b16 %v2908
        %v3148 = vunpack.c.h.b16 %v2908
        %v3149 = vunpack.c.l.b16 %v2909
        %v3150 = vunpack.c.h.b16 %v2909
        %v3151 = vunpack.c.l.b16 %v2910
        %v3152 = vunpack.c.h.b16 %v2910
        %v3153 = vunpack.c.l.b16 %v2911
        %v3154 = vunpack.c.h.b16 %v2911
        %v3155 = vunpack.c.l.b16 %v2912
        %v3156 = vunpack.c.h.b16 %v2912
        %v3157 = vunpack.c.l.b16 %v2913
        %v3158 = vunpack.c.h.b16 %v2913
        %v3159 = vunpack.c.l.b16 %v2914
        %v3160 = vunpack.c.h.b16 %v2914
        %v3161 = vunpack.c.l.b16 %v2915
        %v3162 = vunpack.c.h.b16 %v2915
        %v3163 = vunpack.c.l.b16 %v2916
        %v3164 = vunpack.c.h.b16 %v2916
        %v3165 = vpack.c.b16 %v3027, %v3021
        %v3166 = vpack.c.b16 %v3028, %v3022
        %v3167 = vpack.c.b16 %v3029, %v3023
        %v3168 = vpack.c.b16 %v3030, %v3024
        %v3169 = vpack.c.b16 %v3031, %v3025
        %v3170 = vpack.c.b16 %v3032, %v3026
        %v3171 = vpack.c.b16 %v3039, %v3033
        %v3172 = vpack.c.b16 %v3040, %v3034
        %v3173 = vpack.c.b16 %v3041, %v3035
        %v3174 = vpack.c.b16 %v3042, %v3036
        %v3175 = vpack.c.b16 %v3043, %v3037
        %v3176 = vpack.c.b16 %v3044, %v3038
        %v3177 = vpack.c.b16 %v3051, %v3045
        %v3178 = vpack.c.b16 %v3052, %v3046
        %v3179 = vpack.c.b16 %v3053, %v3047
        %v3180 = vpack.c.b16 %v3054, %v3048
        %v3181 = vpack.c.b16 %v3055, %v3049
        %v3182 = vpack.c.b16 %v3056, %v3050
        %v3183 = vpack.c.b16 %v3063, %v3057
        %v3184 = vpack.c.b16 %v3064, %v3058
        %v3185 = vpack.c.b16 %v3065, %v3059
        %v3186 = vpack.c.b16 %v3066, %v3060
        %v3187 = vpack.c.b16 %v3067, %v3061
        %v3188 = vpack.c.b16 %v3068, %v3062
        %v3189 = vpack.c.b16 %v3075, %v3069
        %v3190 = vpack.c.b16 %v3076, %v3070
        %v3191 = vpack.c.b16 %v3077, %v3071
        %v3192 = vpack.c.b16 %v3078, %v3072
        %v3193 = vpack.c.b16 %v3079, %v3073
        %v3194 = vpack.c.b16 %v3080, %v3074
        %v3195 = vpack.c.b16 %v3087, %v3081
        %v3196 = vpack.c.b16 %v3088, %v3082
        %v3197 = vpack.c.b16 %v3089, %v3083
        %v3198 = vpack.c.b16 %v3090, %v3084
        %v3199 = vpack.c.b16 %v3091, %v3085
        %v3200 = vpack.c.b16 %v3092, %v3086
        %v3201 = vpack.c.b16 %v3099, %v3093
        %v3202 = vpack.c.b16 %v3100, %v3094
        %v3203 = vpack.c.b16 %v3101, %v3095
        %v3204 = vpack.c.b16 %v3102, %v3096
        %v3205 = vpack.c.b16 %v3103, %v3097
        %v3206 = vpack.c.b16 %v3104, %v3098
        %v3207 = vpack.c.b16 %v3111, %v3105
        %v3208 = vpack.c.b16 %v3112, %v3106
        %v3209 = vpack.c.b16 %v3113, %v3107
        %v3210 = vpack.c.b16 %v3114, %v3108
        %v3211 = vpack.c.b16 %v3115, %v3109
        %v3212 = vpack.c.b16 %v3116, %v3110
        %v3213 = vpack.c.b16 %v3123, %v3117
        %v3214 = vpack.c.b16 %v3124, %v3118
        %v3215 = vpack.c.b16 %v3125, %v3119
        %v3216 = vpack.c.b16 %v3126, %v3120
        %v3217 = vpack.c.b16 %v3127, %v3121
        %v3218 = vpack.c.b16 %v3128, %v3122
        %v3219 = vpack.c.b16 %v3135, %v3129
        %v3220 = vpack.c.b16 %v3136, %v3130
        %v3221 = vpack.c.b16 %v3137, %v3131
        %v3222 = vpack.c.b16 %v3138, %v3132
        %v3223 = vpack.c.b16 %v3139, %v3133
        %v3224 = vpack.c.b16 %v3140, %v3134
        %v3225 = vpack.c.b16 %v3147, %v3141
        %v3226 = vpack.c.b16 %v3148, %v3142
        %v3227 = vpack.c.b16 %v3149, %v3143
        %v3228 = vpack.c.b16 %v3150, %v3144
        %v3229 = vpack.c.b16 %v3151, %v3145
        %v3230 = vpack.c.b16 %v3152, %v3146
        %v3231 = vpack.c.b16 %v3159, %v3153
        %v3232 = vpack.c.b16 %v3160, %v3154
        %v3233 = vpack.c.b16 %v3161, %v3155
        %v3234 = vpack.c.b16 %v3162, %v3156
        %v3235 = vpack.c.b16 %v3163, %v3157
        %v3236 = vpack.c.b16 %v3164, %v3158
        %v3310 = vsel %vm1574, %v2844, 0
        %3312 = vmatprep.subr.bf16.mxu0 %v3166
        %3313 = vmatpush1.bf16.msra.mxu0 %v3165
        %3314 = vmatprep.subr.bf16.mxu0 %v3172
        %3315 = vmatpush1.bf16.msra.mxu0 %v3171
        %3316 = vmatprep.subr.bf16.mxu0 %v3178
        %3317 = vmatpush1.bf16.msra.mxu0 %v3177
        %3318 = vmatprep.subr.bf16.mxu0 %v3184
        %3319 = vmatpush1.bf16.msra.mxu0 %v3183
        %3320 = vmatprep.subr.bf16.mxu0 %v3190
        %3321 = vmatpush1.bf16.msra.mxu0 %v3189
        %3322 = vmatprep.subr.bf16.mxu0 %v3196
        %3323 = vmatpush1.bf16.msra.mxu0 %v3195
        %3324 = vmatprep.subr.bf16.mxu0 %v3202
        %3325 = vmatpush1.bf16.msra.mxu0 %v3201
        %3326 = vmatprep.subr.bf16.mxu0 %v3208
        %3327 = vmatpush1.bf16.msra.mxu0 %v3207
        %3328 = vmatprep.subr.bf16.mxu0 %v3214
        %3329 = vmatpush1.bf16.msra.mxu0 %v3213
        %3330 = vmatprep.subr.bf16.mxu0 %v3220
        %3331 = vmatpush1.bf16.msra.mxu0 %v3219
        %3332 = vmatprep.subr.bf16.mxu0 %v3226
        %3333 = vmatpush1.bf16.msra.mxu0 %v3225
        %3334 = vmatprep.subr.bf16.mxu0 %v3232
        %3335 = vmatpush1.bf16.msra.mxu0 %v3231
        %3336 = vmatprep.subr.bf16.mxu0 0
        %3337 = vmatpush1.bf16.msra.mxu0 0
        %3338 = vmatprep.subr.bf16.mxu0 0
        %3339 = vmatpush1.bf16.msra.mxu0 0
        %3340 = vmatprep.subr.bf16.mxu0 0
        %3341 = vmatpush1.bf16.msra.mxu0 0
        %3342 = vmatprep.subr.bf16.mxu0 0
        %3343 = vmatpush1.bf16.msra.mxu0 0
        %3344 = vmatprep.mubr.bf16.mxu0 %v3310
        %3345 = vmatmul.mubr.bf16.gmra.mrb[0].mxu0 %v2843
        %v3346 = vpop.f32.mrb[0].mxu0
        %v3347 = vadd.f32 %v2922, %v3346
        %v3348 = vpop.f32.mrb[0].mxu0
        %v3349 = vadd.f32 %v2926, %v3348
        %v3350 = vpop.f32.mrb[0].mxu0
        %v3351 = vpop.f32.mrb[0].mxu0
        %3352 = vdwg.mxu0
        %3353 = vmatprep.subr.bf16.mxu0 %v3168
        %3354 = vmatpush1.bf16.msra.mxu0 %v3167
        %3355 = vmatprep.subr.bf16.mxu0 %v3174
        %3356 = vmatpush1.bf16.msra.mxu0 %v3173
        %3357 = vmatprep.subr.bf16.mxu0 %v3180
        %3358 = vmatpush1.bf16.msra.mxu0 %v3179
        %3359 = vmatprep.subr.bf16.mxu0 %v3186
        %3360 = vmatpush1.bf16.msra.mxu0 %v3185
        %3361 = vmatprep.subr.bf16.mxu0 %v3192
        %3362 = vmatpush1.bf16.msra.mxu0 %v3191
        %3363 = vmatprep.subr.bf16.mxu0 %v3198
        %3364 = vmatpush1.bf16.msra.mxu0 %v3197
        %3365 = vmatprep.subr.bf16.mxu0 %v3204
        %3366 = vmatpush1.bf16.msra.mxu0 %v3203
        %3367 = vmatprep.subr.bf16.mxu0 %v3210
        %3368 = vmatpush1.bf16.msra.mxu0 %v3209
        %3369 = vmatprep.subr.bf16.mxu0 %v3216
        %3370 = vmatpush1.bf16.msra.mxu0 %v3215
        %3371 = vmatprep.subr.bf16.mxu0 %v3222
        %3372 = vmatpush1.bf16.msra.mxu0 %v3221
        %3373 = vmatprep.subr.bf16.mxu0 %v3228
        %3374 = vmatpush1.bf16.msra.mxu0 %v3227
        %3375 = vmatprep.subr.bf16.mxu0 %v3234
        %3376 = vmatpush1.bf16.msra.mxu0 %v3233
        %3377 = vmatprep.subr.bf16.mxu0 0
        %3378 = vmatpush1.bf16.msra.mxu0 0
        %3379 = vmatprep.subr.bf16.mxu0 0
        %3380 = vmatpush1.bf16.msra.mxu0 0
        %3381 = vmatprep.subr.bf16.mxu0 0
        %3382 = vmatpush1.bf16.msra.mxu0 0
        %3383 = vmatprep.subr.bf16.mxu0 0
        %3384 = vmatpush1.bf16.msra.mxu0 0
        %3385 = vmatprep.mubr.bf16.mxu0 %v3310
        %3386 = vmatmul.mubr.bf16.gmra.mrb[0].mxu0 %v2843
        %v3387 = vpop.f32.mrb[0].mxu0
        %v3388 = vadd.f32 %v2930, %v3387
        %v3389 = vpop.f32.mrb[0].mxu0
        %v3390 = vadd.f32 %v2934, %v3389
        %v3391 = vpop.f32.mrb[0].mxu0
        %v3392 = vpop.f32.mrb[0].mxu0
        %3393 = vdwg.mxu0
        %3394 = vmatprep.subr.bf16.mxu0 %v3170
        %3395 = vmatpush1.bf16.msra.mxu0 %v3169
        %3396 = vmatprep.subr.bf16.mxu0 %v3176
        %3397 = vmatpush1.bf16.msra.mxu0 %v3175
        %3398 = vmatprep.subr.bf16.mxu0 %v3182
        %3399 = vmatpush1.bf16.msra.mxu0 %v3181
        %3400 = vmatprep.subr.bf16.mxu0 %v3188
        %3401 = vmatpush1.bf16.msra.mxu0 %v3187
        %3402 = vmatprep.subr.bf16.mxu0 %v3194
        %3403 = vmatpush1.bf16.msra.mxu0 %v3193
        %3404 = vmatprep.subr.bf16.mxu0 %v3200
        %3405 = vmatpush1.bf16.msra.mxu0 %v3199
        %3406 = vmatprep.subr.bf16.mxu0 %v3206
        %3407 = vmatpush1.bf16.msra.mxu0 %v3205
        %3408 = vmatprep.subr.bf16.mxu0 %v3212
        %3409 = vmatpush1.bf16.msra.mxu0 %v3211
        %3410 = vmatprep.subr.bf16.mxu0 %v3218
        %3411 = vmatpush1.bf16.msra.mxu0 %v3217
        %3412 = vmatprep.subr.bf16.mxu0 %v3224
        %3413 = vmatpush1.bf16.msra.mxu0 %v3223
        %3414 = vmatprep.subr.bf16.mxu0 %v3230
        %3415 = vmatpush1.bf16.msra.mxu0 %v3229
        %3416 = vmatprep.subr.bf16.mxu0 %v3236
        %3417 = vmatpush1.bf16.msra.mxu0 %v3235
        %3418 = vmatprep.subr.bf16.mxu0 0
        %3419 = vmatpush1.bf16.msra.mxu0 0
        %3420 = vmatprep.subr.bf16.mxu0 0
        %3421 = vmatpush1.bf16.msra.mxu0 0
        %3422 = vmatprep.subr.bf16.mxu0 0
        %3423 = vmatpush1.bf16.msra.mxu0 0
        %3424 = vmatprep.subr.bf16.mxu0 0
        %3425 = vmatpush1.bf16.msra.mxu0 0
        %3426 = vmatprep.mubr.bf16.mxu0 %v3310
        %3427 = vmatmul.mubr.bf16.gmra.mrb[0].mxu0 %v2843
        %v3428 = vpop.f32.mrb[0].mxu0
        %v3429 = vadd.f32 %v2938, %v3428
        %v3430 = vpop.f32.mrb[0].mxu0
        %v3431 = vadd.f32 %v2942, %v3430
        %v3432 = vpop.f32.mrb[0].mxu0
        %v3433 = vpop.f32.mrb[0].mxu0
        %3434 = vdwg.mxu0
        %v3435 = vmul.f32 %v3347, 0.5
        %v3436 = vmul.f32 %v3349, 0.5
        %v3437 = vmul.f32 %v3388, 0.5
        %v3438 = vmul.f32 %v3390, 0.5
        %v3439 = vmul.f32 %v3429, 0.5
        %v3440 = vmul.f32 %v3431, 0.5
        %v3441 = vmul.f32 %v3347, 0.044715
        %v3442 = vmul.f32 %v3349, 0.044715
        %v3443 = vmul.f32 %v3388, 0.044715
        %v3444 = vmul.f32 %v3390, 0.044715
        %v3445 = vmul.f32 %v3429, 0.044715
        %v3446 = vmul.f32 %v3431, 0.044715
        %v3447 = vmul.f32 %v3441, %v3347
        %v3448 = vmul.f32 %v3442, %v3349
        %v3449 = vmul.f32 %v3443, %v3388
        %v3450 = vmul.f32 %v3444, %v3390
        %v3451 = vmul.f32 %v3445, %v3429
        %v3452 = vmul.f32 %v3446, %v3431
        %v3453 = vmul.f32 %v3447, %v3347
        %v3454 = vmul.f32 %v3448, %v3349
        %v3455 = vmul.f32 %v3449, %v3388
        %v3456 = vmul.f32 %v3450, %v3390
        %v3457 = vmul.f32 %v3451, %v3429
        %v3458 = vmul.f32 %v3452, %v3431
        %v3459 = vadd.f32 %v3347, %v3453
        %v3460 = vadd.f32 %v3349, %v3454
        %v3461 = vadd.f32 %v3388, %v3455
        %v3462 = vadd.f32 %v3390, %v3456
        %v3463 = vadd.f32 %v3429, %v3457
        %v3464 = vadd.f32 %v3431, %v3458
        %v3465 = vmul.f32 %v3459, 0.7978846
        %v3466 = vmul.f32 %v3460, 0.7978846
        %v3467 = vmul.f32 %v3461, 0.7978846
        %v3468 = vmul.f32 %v3462, 0.7978846
        %v3469 = vmul.f32 %v3463, 0.7978846
        %v3470 = vmul.f32 %v3464, 0.7978846
        %v3471 = vtanh.pop %v3465
        %v3472 = vtanh.pop %v3466
        %v3473 = vtanh.pop %v3467
        %v3474 = vtanh.pop %v3468
        %v3475 = vtanh.pop %v3469
        %v3476 = vtanh.pop %v3470
        %v3477 = vadd.f32 %v3471, 1.0
        %v3478 = vadd.f32 %v3472, 1.0
        %v3479 = vadd.f32 %v3473, 1.0
        %v3480 = vadd.f32 %v3474, 1.0
        %v3481 = vadd.f32 %v3475, 1.0
        %v3482 = vadd.f32 %v3476, 1.0
        %v3483 = vmul.f32 %v3435, %v3477
        %v3484 = vmul.f32 %v3436, %v3478
        %v3485 = vmul.f32 %v3437, %v3479
        %v3486 = vmul.f32 %v3438, %v3480
        %v3487 = vmul.f32 %v3439, %v3481
        %v3488 = vmul.f32 %v3440, %v3482
        %v3489 = vpack.c.bf16 %v3483, %v3483
        %v3490 = vpack.c.bf16 %v3484, %v3484
        %v3491 = vpack.c.bf16 %v3485, %v3485
        %v3492 = vpack.c.bf16 %v3486, %v3486
        %v3493 = vpack.c.bf16 %v3487, %v3487
        %v3494 = vpack.c.bf16 %v3488, %v3488
        %v3495 = vld [vmem:[%s777] sm:$0xff]
        %v3496 = vld [vmem:[%s777 + $0x8] sm:$0xff]
        %v3497 = vld [vmem:[%s777 + $0x10] sm:$0xff]
        %v3498 = vld [vmem:[%s777 + $0x18] sm:$0xff]
        %v3499 = vld [vmem:[%s777 + $0x20] sm:$0xff]
        %v3500 = vld [vmem:[%s777 + $0x28] sm:$0xff]
        %v3501 = vld [vmem:[%s777 + $0x30] sm:$0xff]
        %v3502 = vld [vmem:[%s777 + $0x38] sm:$0xff]
        %v3503 = vld [vmem:[%s777 + $0x40] sm:$0xff]
        %v3504 = vld [vmem:[%s777 + $0x48] sm:$0xff]
        %v3505 = vld [vmem:[%s777 + $0x50] sm:$0xff]
        %v3506 = vld [vmem:[%s777 + $0x58] sm:$0xff]
        %v3507 = vld [vmem:[%s777 + $0x60] sm:$0xff]
        %v3508 = vld [vmem:[%s777 + $0x68] sm:$0xff]
        %v3509 = vld [vmem:[%s777 + $0x70] sm:$0xff]
        %v3510 = vld [vmem:[%s777 + $0x78] sm:$0xff]
        %v3511 = vld [vmem:[%s777 + $0x80] sm:$0xff]
        %v3512 = vld [vmem:[%s777 + $0x88] sm:$0xff]
        %v3513 = vld [vmem:[%s777 + $0x90] sm:$0xff]
        %v3514 = vld [vmem:[%s777 + $0x98] sm:$0xff]
        %v3515 = vld [vmem:[%s777 + $0xa0] sm:$0xff]
        %v3516 = vld [vmem:[%s777 + $0xa8] sm:$0xff]
        %v3517 = vld [vmem:[%s777 + $0xb0] sm:$0xff]
        %v3518 = vld [vmem:[%s777 + $0xb8] sm:$0xff]
        %v3519 = vld [vmem:[%s777 + $0xc0] sm:$0xff]
        %v3520 = vld [vmem:[%s777 + $0xc8] sm:$0xff]
        %v3521 = vld [vmem:[%s777 + $0xd0] sm:$0xff]
        %v3522 = vld [vmem:[%s777 + $0xd8] sm:$0xff]
        %v3523 = vld [vmem:[%s777 + $0xe0] sm:$0xff]
        %v3524 = vld [vmem:[%s777 + $0xe8] sm:$0xff]
        %v3525 = vld [vmem:[%s777 + $0xf0] sm:$0xff]
        %v3526 = vld [vmem:[%s777 + $0xf8] sm:$0xff]
        %v3527 = vld [vmem:[%s777 + $0x100] sm:$0xff]
        %v3528 = vld [vmem:[%s777 + $0x108] sm:$0xff]
        %v3529 = vld [vmem:[%s777 + $0x110] sm:$0xff]
        %v3530 = vld [vmem:[%s777 + $0x118] sm:$0xff]
        %v3531 = vld [vmem:[%s777 + $0x120] sm:$0xff]
        %v3532 = vld [vmem:[%s777 + $0x128] sm:$0xff]
        %v3533 = vld [vmem:[%s777 + $0x130] sm:$0xff]
        %v3534 = vld [vmem:[%s777 + $0x138] sm:$0xff]
        %v3535 = vld [vmem:[%s777 + $0x140] sm:$0xff]
        %v3536 = vld [vmem:[%s777 + $0x148] sm:$0xff]
        %v3537 = vld [vmem:[%s777 + $0x150] sm:$0xff]
        %v3538 = vld [vmem:[%s777 + $0x158] sm:$0xff]
        %v3539 = vld [vmem:[%s777 + $0x160] sm:$0xff]
        %v3540 = vld [vmem:[%s777 + $0x168] sm:$0xff]
        %v3541 = vld [vmem:[%s777 + $0x170] sm:$0xff]
        %v3542 = vld [vmem:[%s777 + $0x178] sm:$0xff]
        %v3543 = vld [vmem:[%s777 + $0x180] sm:$0xff]
        %v3544 = vld [vmem:[%s777 + $0x188] sm:$0xff]
        %v3545 = vld [vmem:[%s777 + $0x190] sm:$0xff]
        %v3546 = vld [vmem:[%s777 + $0x198] sm:$0xff]
        %v3547 = vld [vmem:[%s777 + $0x1a0] sm:$0xff]
        %v3548 = vld [vmem:[%s777 + $0x1a8] sm:$0xff]
        %v3549 = vld [vmem:[%s777 + $0x1b0] sm:$0xff]
        %v3550 = vld [vmem:[%s777 + $0x1b8] sm:$0xff]
        %v3551 = vld [vmem:[%s777 + $0x1c0] sm:$0xff]
        %v3552 = vld [vmem:[%s777 + $0x1c8] sm:$0xff]
        %v3553 = vld [vmem:[%s777 + $0x1d0] sm:$0xff]
        %v3554 = vld [vmem:[%s777 + $0x1d8] sm:$0xff]
        %v3555 = vld [vmem:[%s777 + $0x1e0] sm:$0xff]
        %v3556 = vld [vmem:[%s777 + $0x1e8] sm:$0xff]
        %v3557 = vld [vmem:[%s777 + $0x1f0] sm:$0xff]
        %v3558 = vld [vmem:[%s777 + $0x1f8] sm:$0xff]
        %v3559 = vld [vmem:[%s777 + $0x200] sm:$0xff]
        %v3560 = vld [vmem:[%s777 + $0x208] sm:$0xff]
        %v3561 = vld [vmem:[%s777 + $0x210] sm:$0xff]
        %v3562 = vld [vmem:[%s777 + $0x218] sm:$0xff]
        %v3563 = vld [vmem:[%s777 + $0x220] sm:$0xff]
        %v3564 = vld [vmem:[%s777 + $0x228] sm:$0xff]
        %v3565 = vld [vmem:[%s777 + $0x230] sm:$0xff]
        %v3566 = vld [vmem:[%s777 + $0x238] sm:$0xff]
        %v3567 = vld [vmem:[%s777 + $0x240] sm:$0xff]
        %v3568 = vld [vmem:[%s777 + $0x248] sm:$0xff]
        %v3569 = vld [vmem:[%s777 + $0x250] sm:$0xff]
        %v3570 = vld [vmem:[%s777 + $0x258] sm:$0xff]
        %v3571 = vld [vmem:[%s777 + $0x260] sm:$0xff]
        %v3572 = vld [vmem:[%s777 + $0x268] sm:$0xff]
        %v3573 = vld [vmem:[%s777 + $0x270] sm:$0xff]
        %v3574 = vld [vmem:[%s777 + $0x278] sm:$0xff]
        %v3575 = vld [vmem:[%s777 + $0x280] sm:$0xff]
        %v3576 = vld [vmem:[%s777 + $0x288] sm:$0xff]
        %v3577 = vld [vmem:[%s777 + $0x290] sm:$0xff]
        %v3578 = vld [vmem:[%s777 + $0x298] sm:$0xff]
        %v3579 = vld [vmem:[%s777 + $0x2a0] sm:$0xff]
        %v3580 = vld [vmem:[%s777 + $0x2a8] sm:$0xff]
        %v3581 = vld [vmem:[%s777 + $0x2b0] sm:$0xff]
        %v3582 = vld [vmem:[%s777 + $0x2b8] sm:$0xff]
        %v3583 = vld [vmem:[%s777 + $0x2c0] sm:$0xff]
        %v3584 = vld [vmem:[%s777 + $0x2c8] sm:$0xff]
        %v3585 = vld [vmem:[%s777 + $0x2d0] sm:$0xff]
        %v3586 = vld [vmem:[%s777 + $0x2d8] sm:$0xff]
        %v3587 = vld [vmem:[%s777 + $0x2e0] sm:$0xff]
        %v3588 = vld [vmem:[%s777 + $0x2e8] sm:$0xff]
        %v3589 = vld [vmem:[%s777 + $0x2f0] sm:$0xff]
        %v3590 = vld [vmem:[%s777 + $0x2f8] sm:$0xff]
        %v3591 = vld [vmem:[%s781] sm:$0x3]
        %v3593 = vlaneseq
        %v3594 = vshrl.u32 %v3593, 7
        %v3595 = vsub.s32 0, %v3594
        %v3596 = vrot.slane %v3591, %v3595
        %v3597 = vlaneseq
        %v3598 = vshrl.u32 %v3597, 7
        %v3599 = vsub.s32 1, %v3598
        %v3600 = vrot.slane %v3591, %v3599
        %v3699 = vunpack.c.l.b16 %v3495
        %v3700 = vunpack.c.h.b16 %v3495
        %v3701 = vunpack.c.l.b16 %v3496
        %v3702 = vunpack.c.h.b16 %v3496
        %v3703 = vunpack.c.l.b16 %v3497
        %v3704 = vunpack.c.h.b16 %v3497
        %v3705 = vunpack.c.l.b16 %v3498
        %v3706 = vunpack.c.h.b16 %v3498
        %v3707 = vunpack.c.l.b16 %v3499
        %v3708 = vunpack.c.h.b16 %v3499
        %v3709 = vunpack.c.l.b16 %v3500
        %v3710 = vunpack.c.h.b16 %v3500
        %v3711 = vunpack.c.l.b16 %v3501
        %v3712 = vunpack.c.h.b16 %v3501
        %v3713 = vunpack.c.l.b16 %v3502
        %v3714 = vunpack.c.h.b16 %v3502
        %v3715 = vunpack.c.l.b16 %v3503
        %v3716 = vunpack.c.h.b16 %v3503
        %v3717 = vunpack.c.l.b16 %v3504
        %v3718 = vunpack.c.h.b16 %v3504
        %v3719 = vunpack.c.l.b16 %v3505
        %v3720 = vunpack.c.h.b16 %v3505
        %v3721 = vunpack.c.l.b16 %v3506
        %v3722 = vunpack.c.h.b16 %v3506
        %v3723 = vunpack.c.l.b16 %v3507
        %v3724 = vunpack.c.h.b16 %v3507
        %v3725 = vunpack.c.l.b16 %v3508
        %v3726 = vunpack.c.h.b16 %v3508
        %v3727 = vunpack.c.l.b16 %v3509
        %v3728 = vunpack.c.h.b16 %v3509
        %v3729 = vunpack.c.l.b16 %v3510
        %v3730 = vunpack.c.h.b16 %v3510
        %v3731 = vunpack.c.l.b16 %v3511
        %v3732 = vunpack.c.h.b16 %v3511
        %v3733 = vunpack.c.l.b16 %v3512
        %v3734 = vunpack.c.h.b16 %v3512
        %v3735 = vunpack.c.l.b16 %v3513
        %v3736 = vunpack.c.h.b16 %v3513
        %v3737 = vunpack.c.l.b16 %v3514
        %v3738 = vunpack.c.h.b16 %v3514
        %v3739 = vunpack.c.l.b16 %v3515
        %v3740 = vunpack.c.h.b16 %v3515
        %v3741 = vunpack.c.l.b16 %v3516
        %v3742 = vunpack.c.h.b16 %v3516
        %v3743 = vunpack.c.l.b16 %v3517
        %v3744 = vunpack.c.h.b16 %v3517
        %v3745 = vunpack.c.l.b16 %v3518
        %v3746 = vunpack.c.h.b16 %v3518
        %v3747 = vunpack.c.l.b16 %v3519
        %v3748 = vunpack.c.h.b16 %v3519
        %v3749 = vunpack.c.l.b16 %v3520
        %v3750 = vunpack.c.h.b16 %v3520
        %v3751 = vunpack.c.l.b16 %v3521
        %v3752 = vunpack.c.h.b16 %v3521
        %v3753 = vunpack.c.l.b16 %v3522
        %v3754 = vunpack.c.h.b16 %v3522
        %v3755 = vunpack.c.l.b16 %v3523
        %v3756 = vunpack.c.h.b16 %v3523
        %v3757 = vunpack.c.l.b16 %v3524
        %v3758 = vunpack.c.h.b16 %v3524
        %v3759 = vunpack.c.l.b16 %v3525
        %v3760 = vunpack.c.h.b16 %v3525
        %v3761 = vunpack.c.l.b16 %v3526
        %v3762 = vunpack.c.h.b16 %v3526
        %v3763 = vunpack.c.l.b16 %v3527
        %v3764 = vunpack.c.h.b16 %v3527
        %v3765 = vunpack.c.l.b16 %v3528
        %v3766 = vunpack.c.h.b16 %v3528
        %v3767 = vunpack.c.l.b16 %v3529
        %v3768 = vunpack.c.h.b16 %v3529
        %v3769 = vunpack.c.l.b16 %v3530
        %v3770 = vunpack.c.h.b16 %v3530
        %v3771 = vunpack.c.l.b16 %v3531
        %v3772 = vunpack.c.h.b16 %v3531
        %v3773 = vunpack.c.l.b16 %v3532
        %v3774 = vunpack.c.h.b16 %v3532
        %v3775 = vunpack.c.l.b16 %v3533
        %v3776 = vunpack.c.h.b16 %v3533
        %v3777 = vunpack.c.l.b16 %v3534
        %v3778 = vunpack.c.h.b16 %v3534
        %v3779 = vunpack.c.l.b16 %v3535
        %v3780 = vunpack.c.h.b16 %v3535
        %v3781 = vunpack.c.l.b16 %v3536
        %v3782 = vunpack.c.h.b16 %v3536
        %v3783 = vunpack.c.l.b16 %v3537
        %v3784 = vunpack.c.h.b16 %v3537
        %v3785 = vunpack.c.l.b16 %v3538
        %v3786 = vunpack.c.h.b16 %v3538
        %v3787 = vunpack.c.l.b16 %v3539
        %v3788 = vunpack.c.h.b16 %v3539
        %v3789 = vunpack.c.l.b16 %v3540
        %v3790 = vunpack.c.h.b16 %v3540
        %v3791 = vunpack.c.l.b16 %v3541
        %v3792 = vunpack.c.h.b16 %v3541
        %v3793 = vunpack.c.l.b16 %v3542
        %v3794 = vunpack.c.h.b16 %v3542
        %v3795 = vunpack.c.l.b16 %v3543
        %v3796 = vunpack.c.h.b16 %v3543
        %v3797 = vunpack.c.l.b16 %v3544
        %v3798 = vunpack.c.h.b16 %v3544
        %v3799 = vunpack.c.l.b16 %v3545
        %v3800 = vunpack.c.h.b16 %v3545
        %v3801 = vunpack.c.l.b16 %v3546
        %v3802 = vunpack.c.h.b16 %v3546
        %v3803 = vunpack.c.l.b16 %v3547
        %v3804 = vunpack.c.h.b16 %v3547
        %v3805 = vunpack.c.l.b16 %v3548
        %v3806 = vunpack.c.h.b16 %v3548
        %v3807 = vunpack.c.l.b16 %v3549
        %v3808 = vunpack.c.h.b16 %v3549
        %v3809 = vunpack.c.l.b16 %v3550
        %v3810 = vunpack.c.h.b16 %v3550
        %v3811 = vunpack.c.l.b16 %v3551
        %v3812 = vunpack.c.h.b16 %v3551
        %v3813 = vunpack.c.l.b16 %v3552
        %v3814 = vunpack.c.h.b16 %v3552
        %v3815 = vunpack.c.l.b16 %v3553
        %v3816 = vunpack.c.h.b16 %v3553
        %v3817 = vunpack.c.l.b16 %v3554
        %v3818 = vunpack.c.h.b16 %v3554
        %v3819 = vunpack.c.l.b16 %v3555
        %v3820 = vunpack.c.h.b16 %v3555
        %v3821 = vunpack.c.l.b16 %v3556
        %v3822 = vunpack.c.h.b16 %v3556
        %v3823 = vunpack.c.l.b16 %v3557
        %v3824 = vunpack.c.h.b16 %v3557
        %v3825 = vunpack.c.l.b16 %v3558
        %v3826 = vunpack.c.h.b16 %v3558
        %v3827 = vunpack.c.l.b16 %v3559
        %v3828 = vunpack.c.h.b16 %v3559
        %v3829 = vunpack.c.l.b16 %v3560
        %v3830 = vunpack.c.h.b16 %v3560
        %v3831 = vunpack.c.l.b16 %v3561
        %v3832 = vunpack.c.h.b16 %v3561
        %v3833 = vunpack.c.l.b16 %v3562
        %v3834 = vunpack.c.h.b16 %v3562
        %v3835 = vunpack.c.l.b16 %v3563
        %v3836 = vunpack.c.h.b16 %v3563
        %v3837 = vunpack.c.l.b16 %v3564
        %v3838 = vunpack.c.h.b16 %v3564
        %v3839 = vunpack.c.l.b16 %v3565
        %v3840 = vunpack.c.h.b16 %v3565
        %v3841 = vunpack.c.l.b16 %v3566
        %v3842 = vunpack.c.h.b16 %v3566
        %v3843 = vunpack.c.l.b16 %v3567
        %v3844 = vunpack.c.h.b16 %v3567
        %v3845 = vunpack.c.l.b16 %v3568
        %v3846 = vunpack.c.h.b16 %v3568
        %v3847 = vunpack.c.l.b16 %v3569
        %v3848 = vunpack.c.h.b16 %v3569
        %v3849 = vunpack.c.l.b16 %v3570
        %v3850 = vunpack.c.h.b16 %v3570
        %v3851 = vunpack.c.l.b16 %v3571
        %v3852 = vunpack.c.h.b16 %v3571
        %v3853 = vunpack.c.l.b16 %v3572
        %v3854 = vunpack.c.h.b16 %v3572
        %v3855 = vunpack.c.l.b16 %v3573
        %v3856 = vunpack.c.h.b16 %v3573
        %v3857 = vunpack.c.l.b16 %v3574
        %v3858 = vunpack.c.h.b16 %v3574
        %v3859 = vunpack.c.l.b16 %v3575
        %v3860 = vunpack.c.h.b16 %v3575
        %v3861 = vunpack.c.l.b16 %v3576
        %v3862 = vunpack.c.h.b16 %v3576
        %v3863 = vunpack.c.l.b16 %v3577
        %v3864 = vunpack.c.h.b16 %v3577
        %v3865 = vunpack.c.l.b16 %v3578
        %v3866 = vunpack.c.h.b16 %v3578
        %v3867 = vunpack.c.l.b16 %v3579
        %v3868 = vunpack.c.h.b16 %v3579
        %v3869 = vunpack.c.l.b16 %v3580
        %v3870 = vunpack.c.h.b16 %v3580
        %v3871 = vunpack.c.l.b16 %v3581
        %v3872 = vunpack.c.h.b16 %v3581
        %v3873 = vunpack.c.l.b16 %v3582
        %v3874 = vunpack.c.h.b16 %v3582
        %v3875 = vunpack.c.l.b16 %v3583
        %v3876 = vunpack.c.h.b16 %v3583
        %v3877 = vunpack.c.l.b16 %v3584
        %v3878 = vunpack.c.h.b16 %v3584
        %v3879 = vunpack.c.l.b16 %v3585
        %v3880 = vunpack.c.h.b16 %v3585
        %v3881 = vunpack.c.l.b16 %v3586
        %v3882 = vunpack.c.h.b16 %v3586
        %v3883 = vunpack.c.l.b16 %v3587
        %v3884 = vunpack.c.h.b16 %v3587
        %v3885 = vunpack.c.l.b16 %v3588
        %v3886 = vunpack.c.h.b16 %v3588
        %v3887 = vunpack.c.l.b16 %v3589
        %v3888 = vunpack.c.h.b16 %v3589
        %v3889 = vunpack.c.l.b16 %v3590
        %v3890 = vunpack.c.h.b16 %v3590
        %v3891 = vpack.c.b16 %v3701, %v3699
        %v3892 = vpack.c.b16 %v3702, %v3700
        %v3893 = vpack.c.b16 %v3705, %v3703
        %v3894 = vpack.c.b16 %v3706, %v3704
        %v3895 = vpack.c.b16 %v3709, %v3707
        %v3896 = vpack.c.b16 %v3710, %v3708
        %v3897 = vpack.c.b16 %v3713, %v3711
        %v3898 = vpack.c.b16 %v3714, %v3712
        %v3899 = vpack.c.b16 %v3717, %v3715
        %v3900 = vpack.c.b16 %v3718, %v3716
        %v3901 = vpack.c.b16 %v3721, %v3719
        %v3902 = vpack.c.b16 %v3722, %v3720
        %v3903 = vpack.c.b16 %v3725, %v3723
        %v3904 = vpack.c.b16 %v3726, %v3724
        %v3905 = vpack.c.b16 %v3729, %v3727
        %v3906 = vpack.c.b16 %v3730, %v3728
        %v3907 = vpack.c.b16 %v3733, %v3731
        %v3908 = vpack.c.b16 %v3734, %v3732
        %v3909 = vpack.c.b16 %v3737, %v3735
        %v3910 = vpack.c.b16 %v3738, %v3736
        %v3911 = vpack.c.b16 %v3741, %v3739
        %v3912 = vpack.c.b16 %v3742, %v3740
        %v3913 = vpack.c.b16 %v3745, %v3743
        %v3914 = vpack.c.b16 %v3746, %v3744
        %v3915 = vpack.c.b16 %v3749, %v3747
        %v3916 = vpack.c.b16 %v3750, %v3748
        %v3917 = vpack.c.b16 %v3753, %v3751
        %v3918 = vpack.c.b16 %v3754, %v3752
        %v3919 = vpack.c.b16 %v3757, %v3755
        %v3920 = vpack.c.b16 %v3758, %v3756
        %v3921 = vpack.c.b16 %v3761, %v3759
        %v3922 = vpack.c.b16 %v3762, %v3760
        %v3923 = vpack.c.b16 %v3765, %v3763
        %v3924 = vpack.c.b16 %v3766, %v3764
        %v3925 = vpack.c.b16 %v3769, %v3767
        %v3926 = vpack.c.b16 %v3770, %v3768
        %v3927 = vpack.c.b16 %v3773, %v3771
        %v3928 = vpack.c.b16 %v3774, %v3772
        %v3929 = vpack.c.b16 %v3777, %v3775
        %v3930 = vpack.c.b16 %v3778, %v3776
        %v3931 = vpack.c.b16 %v3781, %v3779
        %v3932 = vpack.c.b16 %v3782, %v3780
        %v3933 = vpack.c.b16 %v3785, %v3783
        %v3934 = vpack.c.b16 %v3786, %v3784
        %v3935 = vpack.c.b16 %v3789, %v3787
        %v3936 = vpack.c.b16 %v3790, %v3788
        %v3937 = vpack.c.b16 %v3793, %v3791
        %v3938 = vpack.c.b16 %v3794, %v3792
        %v3939 = vpack.c.b16 %v3797, %v3795
        %v3940 = vpack.c.b16 %v3798, %v3796
        %v3941 = vpack.c.b16 %v3801, %v3799
        %v3942 = vpack.c.b16 %v3802, %v3800
        %v3943 = vpack.c.b16 %v3805, %v3803
        %v3944 = vpack.c.b16 %v3806, %v3804
        %v3945 = vpack.c.b16 %v3809, %v3807
        %v3946 = vpack.c.b16 %v3810, %v3808
        %v3947 = vpack.c.b16 %v3813, %v3811
        %v3948 = vpack.c.b16 %v3814, %v3812
        %v3949 = vpack.c.b16 %v3817, %v3815
        %v3950 = vpack.c.b16 %v3818, %v3816
        %v3951 = vpack.c.b16 %v3821, %v3819
        %v3952 = vpack.c.b16 %v3822, %v3820
        %v3953 = vpack.c.b16 %v3825, %v3823
        %v3954 = vpack.c.b16 %v3826, %v3824
        %v3955 = vpack.c.b16 %v3829, %v3827
        %v3956 = vpack.c.b16 %v3830, %v3828
        %v3957 = vpack.c.b16 %v3833, %v3831
        %v3958 = vpack.c.b16 %v3834, %v3832
        %v3959 = vpack.c.b16 %v3837, %v3835
        %v3960 = vpack.c.b16 %v3838, %v3836
        %v3961 = vpack.c.b16 %v3841, %v3839
        %v3962 = vpack.c.b16 %v3842, %v3840
        %v3963 = vpack.c.b16 %v3845, %v3843
        %v3964 = vpack.c.b16 %v3846, %v3844
        %v3965 = vpack.c.b16 %v3849, %v3847
        %v3966 = vpack.c.b16 %v3850, %v3848
        %v3967 = vpack.c.b16 %v3853, %v3851
        %v3968 = vpack.c.b16 %v3854, %v3852
        %v3969 = vpack.c.b16 %v3857, %v3855
        %v3970 = vpack.c.b16 %v3858, %v3856
        %v3971 = vpack.c.b16 %v3861, %v3859
        %v3972 = vpack.c.b16 %v3862, %v3860
        %v3973 = vpack.c.b16 %v3865, %v3863
        %v3974 = vpack.c.b16 %v3866, %v3864
        %v3975 = vpack.c.b16 %v3869, %v3867
        %v3976 = vpack.c.b16 %v3870, %v3868
        %v3977 = vpack.c.b16 %v3873, %v3871
        %v3978 = vpack.c.b16 %v3874, %v3872
        %v3979 = vpack.c.b16 %v3877, %v3875
        %v3980 = vpack.c.b16 %v3878, %v3876
        %v3981 = vpack.c.b16 %v3881, %v3879
        %v3982 = vpack.c.b16 %v3882, %v3880
        %v3983 = vpack.c.b16 %v3885, %v3883
        %v3984 = vpack.c.b16 %v3886, %v3884
        %v3985 = vpack.c.b16 %v3889, %v3887
        %v3986 = vpack.c.b16 %v3890, %v3888
        %4083 = vmatprep.subr.bf16.mxu0 %v3892
        %4084 = vmatpush1.bf16.msra.mxu0 %v3891
        %4085 = vmatprep.subr.bf16.mxu0 %v3894
        %4086 = vmatpush1.bf16.msra.mxu0 %v3893
        %4087 = vmatprep.subr.bf16.mxu0 %v3896
        %4088 = vmatpush1.bf16.msra.mxu0 %v3895
        %4089 = vmatprep.subr.bf16.mxu0 %v3898
        %4090 = vmatpush1.bf16.msra.mxu0 %v3897
        %4091 = vmatprep.subr.bf16.mxu0 %v3900
        %4092 = vmatpush1.bf16.msra.mxu0 %v3899
        %4093 = vmatprep.subr.bf16.mxu0 %v3902
        %4094 = vmatpush1.bf16.msra.mxu0 %v3901
        %4095 = vmatprep.subr.bf16.mxu0 %v3904
        %4096 = vmatpush1.bf16.msra.mxu0 %v3903
        %4097 = vmatprep.subr.bf16.mxu0 %v3906
        %4098 = vmatpush1.bf16.msra.mxu0 %v3905
        %4099 = vmatprep.subr.bf16.mxu0 %v3908
        %4100 = vmatpush1.bf16.msra.mxu0 %v3907
        %4101 = vmatprep.subr.bf16.mxu0 %v3910
        %4102 = vmatpush1.bf16.msra.mxu0 %v3909
        %4103 = vmatprep.subr.bf16.mxu0 %v3912
        %4104 = vmatpush1.bf16.msra.mxu0 %v3911
        %4105 = vmatprep.subr.bf16.mxu0 %v3914
        %4106 = vmatpush1.bf16.msra.mxu0 %v3913
        %4107 = vmatprep.subr.bf16.mxu0 %v3916
        %4108 = vmatpush1.bf16.msra.mxu0 %v3915
        %4109 = vmatprep.subr.bf16.mxu0 %v3918
        %4110 = vmatpush1.bf16.msra.mxu0 %v3917
        %4111 = vmatprep.subr.bf16.mxu0 %v3920
        %4112 = vmatpush1.bf16.msra.mxu0 %v3919
        %4113 = vmatprep.subr.bf16.mxu0 %v3922
        %4114 = vmatpush1.bf16.msra.mxu0 %v3921
        %4115 = vmatprep.mubr.bf16.mxu0 %v3490
        %4116 = vmatmul.mubr.bf16.gmra.mrb[0].mxu0 %v3489
        %v4117 = vpop.f32.mrb[0].mxu0
        %v4118 = vadd.f32 %v3596, %v4117
        %v4119 = vpop.f32.mrb[0].mxu0
        %v4120 = vadd.f32 %v3600, %v4119
        %v4121 = vpop.f32.mrb[0].mxu0
        %v4122 = vpop.f32.mrb[0].mxu0
        %4123 = vdwg.mxu0
        %4124 = vmatprep.subr.bf16.mxu0 %v3924
        %4125 = vmatpush1.bf16.msra.mxu0 %v3923
        %4126 = vmatprep.subr.bf16.mxu0 %v3926
        %4127 = vmatpush1.bf16.msra.mxu0 %v3925
        %4128 = vmatprep.subr.bf16.mxu0 %v3928
        %4129 = vmatpush1.bf16.msra.mxu0 %v3927
        %4130 = vmatprep.subr.bf16.mxu0 %v3930
        %4131 = vmatpush1.bf16.msra.mxu0 %v3929
        %4132 = vmatprep.subr.bf16.mxu0 %v3932
        %4133 = vmatpush1.bf16.msra.mxu0 %v3931
        %4134 = vmatprep.subr.bf16.mxu0 %v3934
        %4135 = vmatpush1.bf16.msra.mxu0 %v3933
        %4136 = vmatprep.subr.bf16.mxu0 %v3936
        %4137 = vmatpush1.bf16.msra.mxu0 %v3935
        %4138 = vmatprep.subr.bf16.mxu0 %v3938
        %4139 = vmatpush1.bf16.msra.mxu0 %v3937
        %4140 = vmatprep.subr.bf16.mxu0 %v3940
        %4141 = vmatpush1.bf16.msra.mxu0 %v3939
        %4142 = vmatprep.subr.bf16.mxu0 %v3942
        %4143 = vmatpush1.bf16.msra.mxu0 %v3941
        %4144 = vmatprep.subr.bf16.mxu0 %v3944
        %4145 = vmatpush1.bf16.msra.mxu0 %v3943
        %4146 = vmatprep.subr.bf16.mxu0 %v3946
        %4147 = vmatpush1.bf16.msra.mxu0 %v3945
        %4148 = vmatprep.subr.bf16.mxu0 %v3948
        %4149 = vmatpush1.bf16.msra.mxu0 %v3947
        %4150 = vmatprep.subr.bf16.mxu0 %v3950
        %4151 = vmatpush1.bf16.msra.mxu0 %v3949
        %4152 = vmatprep.subr.bf16.mxu0 %v3952
        %4153 = vmatpush1.bf16.msra.mxu0 %v3951
        %4154 = vmatprep.subr.bf16.mxu0 %v3954
        %4155 = vmatpush1.bf16.msra.mxu0 %v3953
        %4156 = vmatprep.mubr.bf16.mxu0 %v3492
        %4157 = vmatmul.mubr.bf16.gmra.mrb[0].mxu0 %v3491
        %v4158 = vpop.f32.mrb[0].mxu0
        %v4159 = vadd.f32 %v4118, %v4158
        %v4160 = vpop.f32.mrb[0].mxu0
        %v4161 = vadd.f32 %v4120, %v4160
        %v4162 = vpop.f32.mrb[0].mxu0
        %v4163 = vpop.f32.mrb[0].mxu0
        %4164 = vdwg.mxu0
        %4165 = vmatprep.subr.bf16.mxu0 %v3956
        %4166 = vmatpush1.bf16.msra.mxu0 %v3955
        %4167 = vmatprep.subr.bf16.mxu0 %v3958
        %4168 = vmatpush1.bf16.msra.mxu0 %v3957
        %4169 = vmatprep.subr.bf16.mxu0 %v3960
        %4170 = vmatpush1.bf16.msra.mxu0 %v3959
        %4171 = vmatprep.subr.bf16.mxu0 %v3962
        %4172 = vmatpush1.bf16.msra.mxu0 %v3961
        %4173 = vmatprep.subr.bf16.mxu0 %v3964
        %4174 = vmatpush1.bf16.msra.mxu0 %v3963
        %4175 = vmatprep.subr.bf16.mxu0 %v3966
        %4176 = vmatpush1.bf16.msra.mxu0 %v3965
        %4177 = vmatprep.subr.bf16.mxu0 %v3968
        %4178 = vmatpush1.bf16.msra.mxu0 %v3967
        %4179 = vmatprep.subr.bf16.mxu0 %v3970
        %4180 = vmatpush1.bf16.msra.mxu0 %v3969
        %4181 = vmatprep.subr.bf16.mxu0 %v3972
        %4182 = vmatpush1.bf16.msra.mxu0 %v3971
        %4183 = vmatprep.subr.bf16.mxu0 %v3974
        %4184 = vmatpush1.bf16.msra.mxu0 %v3973
        %4185 = vmatprep.subr.bf16.mxu0 %v3976
        %4186 = vmatpush1.bf16.msra.mxu0 %v3975
        %4187 = vmatprep.subr.bf16.mxu0 %v3978
        %4188 = vmatpush1.bf16.msra.mxu0 %v3977
        %4189 = vmatprep.subr.bf16.mxu0 %v3980
        %4190 = vmatpush1.bf16.msra.mxu0 %v3979
        %4191 = vmatprep.subr.bf16.mxu0 %v3982
        %4192 = vmatpush1.bf16.msra.mxu0 %v3981
        %4193 = vmatprep.subr.bf16.mxu0 %v3984
        %4194 = vmatpush1.bf16.msra.mxu0 %v3983
        %4195 = vmatprep.subr.bf16.mxu0 %v3986
        %4196 = vmatpush1.bf16.msra.mxu0 %v3985
        %4197 = vmatprep.mubr.bf16.mxu0 %v3494
        %4198 = vmatmul.mubr.bf16.gmra.mrb[0].mxu0 %v3493
        %v4199 = vpop.f32.mrb[0].mxu0
        %v4200 = vadd.f32 %v4159, %v4199
        %v4201 = vpop.f32.mrb[0].mxu0
        %v4202 = vadd.f32 %v4161, %v4201
        %v4203 = vpop.f32.mrb[0].mxu0
        %v4204 = vpop.f32.mrb[0].mxu0
        %4205 = vdwg.mxu0
        %v4206 = vadd.f32 %v2795, %v4200
        %v4207 = vadd.f32 %v2796, %v4202
        %4208 = vst [vmem:[#allocation2] sm:$0xff] %v4206
        %4209 = vst.msk [vmem:[#allocation2 + $0x8] sm:$0xff] %vm1574, %v4207
        %p4210 = scmp.eq.s32.totalorder %s38, 11
        // Predicated region
        $region132: #{vit_forward_fused.1} parent=91 // pred_check
          %p4211 = pneg %p4210
        $region133: #{vit_forward_fused.1} parent=91 // pred_check_branch
          %4213 = sbr.rel (%p4211) target = $region135
        $region134: #{vit_forward_fused.1} parent=91 // pred_region
          %v4214 = vld [vmem:[%s15] sm:$0x3]
          %v4215 = vld [vmem:[%s16] sm:$0x3]
          %vm4216 = vcmask 1040384
          %v4217 = vsel %vm4216, %v4206, 0.0
          %vm4218 = vcmask 516096
          %v4219 = vsel %vm4218, %v4207, 0.0
          %v4220 = vadd.f32 %v4217, %v4219
          %4221 = vadd.xlane.f32.xlu0 %v4220
          %v4222 = vpop.xlane.xlu0 %4221
          %v4223 = vmul.f32 %v4222, %v1579
          %v4224 = vsub.f32 %v4206, %v4223
          %v4225 = vsub.f32 %v4207, %v4223
          %v4226 = vmul.f32 %v4224, %v4224
          %v4227 = vmul.f32 %v4225, %v4225
          %v4228 = vsel %vm4216, %v4226, 0.0
          %v4229 = vsel %vm4218, %v4227, 0.0
          %v4230 = vadd.f32 %v4228, %v4229
          %4231 = vadd.xlane.f32.xlu0 %v4230
          %v4232 = vpop.xlane.xlu0 %4231
          %v4233 = vmul.f32 %v4232, %v1579
          %v4234 = vadd.f32 %v4233, 1e-06
          %v4235 = vrsqrt.pop %v4234
          %v4236 = vmul.f32 %v4224, %v4235
          %v4237 = vmul.f32 %v4225, %v4235
          %v4239 = vlaneseq
          %v4240 = vshrl.u32 %v4239, 7
          %v4241 = vsub.s32 0, %v4240
          %v4242 = vrot.slane %v4214, %v4241
          %v4243 = vlaneseq
          %v4244 = vshrl.u32 %v4243, 7
          %v4245 = vsub.s32 1, %v4244
          %v4246 = vrot.slane %v4214, %v4245
          %v4249 = vmul.f32 %v4236, %v4242
          %v4250 = vmul.f32 %v4237, %v4246
          %v4252 = vlaneseq
          %v4253 = vshrl.u32 %v4252, 7
          %v4254 = vsub.s32 0, %v4253
          %v4255 = vrot.slane %v4215, %v4254
          %v4256 = vlaneseq
          %v4257 = vshrl.u32 %v4256, 7
          %v4258 = vsub.s32 1, %v4257
          %v4259 = vrot.slane %v4215, %v4258
          %v4262 = vadd.f32 %v4249, %v4255
          %v4263 = vadd.f32 %v4250, %v4259
          %v4264 = vpack.c.bf16 %v4262, %v4262
          %v4265 = vpack.c.bf16 %v4263, %v4263
          %v4266 = vld [vmem:[%s17] sm:$0xf]
          %v4267 = vld [vmem:[%s17 + $0x4] sm:$0xf]
          %v4268 = vld [vmem:[%s17 + $0x8] sm:$0xf]
          %v4269 = vld [vmem:[%s17 + $0xc] sm:$0xf]
          %v4270 = vld [vmem:[%s17 + $0x10] sm:$0xf]
          %v4271 = vld [vmem:[%s17 + $0x14] sm:$0xf]
          %v4272 = vld [vmem:[%s17 + $0x18] sm:$0xf]
          %v4273 = vld [vmem:[%s17 + $0x1c] sm:$0xf]
          %v4274 = vld [vmem:[%s17 + $0x20] sm:$0xf]
          %v4275 = vld [vmem:[%s17 + $0x24] sm:$0xf]
          %v4276 = vld [vmem:[%s17 + $0x28] sm:$0xf]
          %v4277 = vld [vmem:[%s17 + $0x2c] sm:$0xf]
          %v4278 = vld [vmem:[%s17 + $0x30] sm:$0xf]
          %v4279 = vld [vmem:[%s17 + $0x34] sm:$0xf]
          %v4280 = vld [vmem:[%s17 + $0x38] sm:$0xf]
          %v4281 = vld [vmem:[%s17 + $0x3c] sm:$0xf]
          %v4282 = vld [vmem:[%s17 + $0x40] sm:$0xf]
          %v4283 = vld [vmem:[%s17 + $0x44] sm:$0xf]
          %v4284 = vld [vmem:[%s17 + $0x48] sm:$0xf]
          %v4285 = vld [vmem:[%s17 + $0x4c] sm:$0xf]
          %v4286 = vld [vmem:[%s17 + $0x50] sm:$0xf]
          %v4287 = vld [vmem:[%s17 + $0x54] sm:$0xf]
          %v4288 = vld [vmem:[%s17 + $0x58] sm:$0xf]
          %v4289 = vld [vmem:[%s17 + $0x5c] sm:$0xf]
          %v4290 = vld [vmem:[%s18] sm:$0x1]
          %v4315 = vunpack.c.l.b16 %v4266
          %v4316 = vunpack.c.l.b16 %v4267
          %v4317 = vunpack.c.l.b16 %v4268
          %v4318 = vunpack.c.l.b16 %v4269
          %v4319 = vunpack.c.l.b16 %v4270
          %v4320 = vunpack.c.l.b16 %v4271
          %v4321 = vunpack.c.l.b16 %v4272
          %v4322 = vunpack.c.l.b16 %v4273
          %v4323 = vunpack.c.l.b16 %v4274
          %v4324 = vunpack.c.l.b16 %v4275
          %v4325 = vunpack.c.l.b16 %v4276
          %v4326 = vunpack.c.l.b16 %v4277
          %v4327 = vunpack.c.l.b16 %v4278
          %v4328 = vunpack.c.l.b16 %v4279
          %v4329 = vunpack.c.l.b16 %v4280
          %v4330 = vunpack.c.l.b16 %v4281
          %v4331 = vunpack.c.l.b16 %v4282
          %v4332 = vunpack.c.l.b16 %v4283
          %v4333 = vunpack.c.l.b16 %v4284
          %v4334 = vunpack.c.l.b16 %v4285
          %v4335 = vunpack.c.l.b16 %v4286
          %v4336 = vunpack.c.l.b16 %v4287
          %v4337 = vunpack.c.l.b16 %v4288
          %v4338 = vunpack.c.l.b16 %v4289
          %v4339 = vpack.c.b16 %v4316, %v4315
          %v4340 = vpack.c.b16 %v4318, %v4317
          %v4341 = vpack.c.b16 %v4320, %v4319
          %v4342 = vpack.c.b16 %v4322, %v4321
          %v4343 = vpack.c.b16 %v4324, %v4323
          %v4344 = vpack.c.b16 %v4326, %v4325
          %v4345 = vpack.c.b16 %v4328, %v4327
          %v4346 = vpack.c.b16 %v4330, %v4329
          %v4347 = vpack.c.b16 %v4332, %v4331
          %v4348 = vpack.c.b16 %v4334, %v4333
          %v4349 = vpack.c.b16 %v4336, %v4335
          %v4350 = vpack.c.b16 %v4338, %v4337
          %v4364 = vsel %vm1574, %v4265, 0
          %4366 = vmatprep.subr.bf16.mxu0 0
          %4367 = vmatpush1.bf16.msra.mxu0 %v4339
          %4368 = vmatprep.subr.bf16.mxu0 0
          %4369 = vmatpush1.bf16.msra.mxu0 %v4340
          %4370 = vmatprep.subr.bf16.mxu0 0
          %4371 = vmatpush1.bf16.msra.mxu0 %v4341
          %4372 = vmatprep.subr.bf16.mxu0 0
          %4373 = vmatpush1.bf16.msra.mxu0 %v4342
          %4374 = vmatprep.subr.bf16.mxu0 0
          %4375 = vmatpush1.bf16.msra.mxu0 %v4343
          %4376 = vmatprep.subr.bf16.mxu0 0
          %4377 = vmatpush1.bf16.msra.mxu0 %v4344
          %4378 = vmatprep.subr.bf16.mxu0 0
          %4379 = vmatpush1.bf16.msra.mxu0 %v4345
          %4380 = vmatprep.subr.bf16.mxu0 0
          %4381 = vmatpush1.bf16.msra.mxu0 %v4346
          %4382 = vmatprep.subr.bf16.mxu0 0
          %4383 = vmatpush1.bf16.msra.mxu0 %v4347
          %4384 = vmatprep.subr.bf16.mxu0 0
          %4385 = vmatpush1.bf16.msra.mxu0 %v4348
          %4386 = vmatprep.subr.bf16.mxu0 0
          %4387 = vmatpush1.bf16.msra.mxu0 %v4349
          %4388 = vmatprep.subr.bf16.mxu0 0
          %4389 = vmatpush1.bf16.msra.mxu0 %v4350
          %4390 = vmatprep.subr.bf16.mxu0 0
          %4391 = vmatpush1.bf16.msra.mxu0 0
          %4392 = vmatprep.subr.bf16.mxu0 0
          %4393 = vmatpush1.bf16.msra.mxu0 0
          %4394 = vmatprep.subr.bf16.mxu0 0
          %4395 = vmatpush1.bf16.msra.mxu0 0
          %4396 = vmatprep.subr.bf16.mxu0 0
          %4397 = vmatpush1.bf16.msra.mxu0 0
          %4398 = vmatprep.mubr.bf16.mxu0 %v4364
          %4399 = vmatmul.mubr.bf16.gmra.mrb[0].mxu0 %v4264
          %v4400 = vpop.f32.mrb[0].mxu0
          %v4401 = vadd.f32 %v4290, %v4400
          %v4402 = vpop.f32.mrb[0].mxu0
          %v4403 = vpop.f32.mrb[0].mxu0
          %v4404 = vpop.f32.mrb[0].mxu0
          %4405 = vdwg.mxu0
          %vm4406 = vcmask 73728
          %4407 = vst.msk [vmem:[%s729] sm:$0x1] %vm4406, %v4401
        $region135: #{vit_forward_fused.1} parent=91 // pred_fallthru
          _
        %s4408 = sand.u32 %s491, 1
        %s4409 = scalar_lea.sflag [#allocation4], %s4408
        %s4410 = sand.u32 %s491, 1
        %s4411 = scalar_lea.vmem [#allocation3], %s4410
        // Predicated region
        $region136: #{vit_forward_fused.1} parent=91 // pred_check
          %p4412 = pneg %p501
        $region137: #{vit_forward_fused.1} parent=91 // pred_check_branch
          %4414 = sbr.rel (%p4412) target = $region139
        $region138: #{vit_forward_fused.1} parent=91 // pred_region
          %s4416 = ssub.s32 16, 16
          %4417 = vsyncadd %s4409, %s4416
          %s4418 = smul.addr %s37, 16
          %s4419 = scalar_lea.hbm %s19, %s4418
          %s4421 = sshll.u32 %s4411, 4
          %s4422 = int_to_ptr.vmem [resolvable:$true] %s4421
          %4424 = dma.vmem_to_hbm [thread:$0]  %s4422, 16, %s4419, %s4409
        $region139: #{vit_forward_fused.1} parent=91 // pred_fallthru
          _
      $region92: #{vit_forward_fused.1} parent=5 // pred_fallthru
        _
      %p4425 = scmp.le.s32.totalorder 2, %s28
      // Predicated region
      $region140: #{vit_forward_fused.1} parent=5 // pred_check
        %p4426 = pneg %p4425
      $region141: #{vit_forward_fused.1} parent=5 // pred_check_branch
        %4428 = sbr.rel (%p4426) target = $region143
      $region142: #{vit_forward_fused.1} parent=5 // pred_region
        %s4429 = ssub.s32 %s28, 2
        // Predicated region
        $region144: #{vit_forward_fused.1} parent=142 // pred_check
          %p4430 = pneg %p507
        $region145: #{vit_forward_fused.1} parent=142 // pred_check_branch
          %4432 = sbr.rel (%p4430) target = $region147
        $region146: #{vit_forward_fused.1} parent=142 // pred_region
          %s4433 = sand.u32 %s492, 1
          %s4434 = scalar_lea.sflag [#allocation4], %s4433
          %s4435 = sand.u32 %s492, 1
          %s4436 = scalar_lea.vmem [#allocation3], %s4435
          %4437 = dma.done %s4434, 16
        $region147: #{vit_forward_fused.1} parent=142 // pred_fallthru
          _
      $region143: #{vit_forward_fused.1} parent=5 // pred_fallthru
        _
    $region6: #{vit_forward_fused.1} parent=1 // loop_footer
      %s32 = sadd.s32 1, %s28
    $region7: #{vit_forward_fused.1} parent=1 // loop_footer_branch
      %27 = sbr.rel target = $region3
    $region8: #{vit_forward_fused.1} parent=1 // loop_exit
      _
    %4438 = vsyncpa [#allocation4], 1
    %s4439 = scalar_lea.sflag [#allocation4], 1
    %4440 = vsyncpa %s4439, 1

</llo_original>
